<compile_context>
chip_gen: v5e
topology: v5e:2x2
jax: 0.10.0
libtpu: 0.0.40
codegen_flags: <defaults>
</compile_context>

<pallas_src>
import jax
import jax.numpy as jnp
from jax import lax
from jax.experimental import pallas as pl
from jax.experimental.pallas import tpu as pltpu

VMEM = pltpu.MemorySpace.VMEM
_F32 = jnp.float32
_BF16 = jnp.bfloat16


# ----------------------------------------------------------------------------
# Spec helpers
# ----------------------------------------------------------------------------

def _fixed_spec(*shape):
    zeros = (0,) * len(shape)
    return pl.BlockSpec(tuple(shape), lambda *_: zeros)


def _stacked_spec(*trailing):
    zeros = (0,) * len(trailing)
    return pl.BlockSpec((None,) + tuple(trailing), lambda l: (l,) + zeros)


def _vmem_limit():
    # ~75% of physical VMEM: ~96 MiB on v5e/v6e (128 MiB), ~48 MiB on v7x (64 MiB).
    try:
        return int(pltpu.get_tpu_info().vmem_capacity_bytes * 0.75)
    except Exception:
        return 48 * 1024 * 1024


# ----------------------------------------------------------------------------
# In-kernel math helpers
# ----------------------------------------------------------------------------

def _layer_norm(x, g, b, eps=1e-5):
    mu = jnp.mean(x, axis=-1, keepdims=True)
    var = jnp.mean((x - mu) ** 2, axis=-1, keepdims=True)
    return (x - mu) * lax.rsqrt(var + eps) * g + b


def _prelu(x, a):
    return jnp.where(x >= 0.0, x, a * x)


def _gen_mlp(h, w1, b1, s1, t1, w2, b2):
    """2-layer MLP of the GENConv2 substitute: Linear -> (folded BN) ReLU -> Linear.

    w1/w2 are bf16; activations are cast to bf16 at the MXU boundary only.
    """
    h = jnp.dot(h.astype(_BF16), w1, preferred_element_type=_F32) + b1
    h = jnp.maximum(h * s1 + t1, 0.0)
    return jnp.dot(h.astype(_BF16), w2, preferred_element_type=_F32) + b2


# ----------------------------------------------------------------------------
# Kernels
# ----------------------------------------------------------------------------

def _deepgcn_stack_kernel(x0_ref, adj_ref, invdeg_ref, seed_pre_ref,
                          seed_wm1_ref, seed_wm2_ref, seed_wc1_ref, seed_wc2_ref,
                          seed_vec_ref, deep0_vec_ref,
                          w1_ref, w2_ref, vec_ref, o_ref):
    """Fused: [self.mlp + layers_2[0].conv] seed at step 0, then layers_2[1:].

    grid=(L,), the activation carry lives in o_ref (constant index_map), the
    bf16 edge-count adjacency + f32 1/deg stay resident, per-layer [H,H] bf16
    weights and the packed [8,H] vector block are streamed (double-buffered).
    """
    adj = adj_ref[...]              # (N, N) bf16 edge counts
    invdeg = invdeg_ref[...]        # (N, 1) f32

    @pl.when(pl.program_id(0) == 0)
    def _seed():
        sv = seed_vec_ref[...]      # (16, H): b1, alpha, b2, post_s, post_b,
        pre = seed_pre_ref[...]     #          c_b1, c_s1, c_t1, c_b2, pad...
        h0 = x0_ref[...] * pre[0:1, :] + pre[1:2, :]               # BN(in_dim)
        h0 = jnp.dot(h0.astype(_BF16), seed_wm1_ref[...],
                     preferred_element_type=_F32) + sv[0:1, :]
        h0 = _prelu(h0, sv[1:2, :])
        h0 = jnp.dot(h0.astype(_BF16), seed_wm2_ref[...],
                     preferred_element_type=_F32) + sv[2:3, :]
        h0 = h0 * sv[3:4, :] + sv[4:5, :]                          # BN(H)
        # layers_2[0].conv (GENConv2 substitute): mean aggregation + MLP.
        msg = jnp.dot(adj, h0.astype(_BF16), preferred_element_type=_F32) * invdeg
        o_ref[...] = _gen_mlp(h0 + msg, seed_wc1_ref[...], sv[5:6, :],
                              sv[6:7, :], sv[7:8, :], seed_wc2_ref[...], sv[8:9, :])

    v = vec_ref[...]                # (8, H): ln_g, ln_b, alpha, b1, s1, t1, b2
    d0 = deep0_vec_ref[...]         # (8, H): ln0_g, ln0_b, alpha0
    x = o_ref[...]
    h = _layer_norm(x, v[0:1, :], v[1:2, :])
    h = _prelu(h, v[2:3, :])
    # TODO(synk): dropout(p=0.3) omitted (eval mode).
    msg = jnp.dot(adj, h.astype(_BF16), preferred_element_type=_F32) * invdeg
    m = _gen_mlp(h + msg, w1_ref[...], v[3:4, :], v[4:5, :], v[5:6, :],
                 w2_ref[...], v[6:7, :])
    out = x + m                                        # res+
    out = _layer_norm(out, d0[0:1, :], d0[1:2, :])     # layers_2[0].norm
    o_ref[...] = _prelu(out, d0[2:3, :])               # layers_2[0].act


def _gen_elu_stack_kernel(cat_ref, adj_ref, invdeg_ref, m3_w1_ref, m3_w2_ref,
                          m3_vec_ref, w1_ref, w2_ref, vec_ref, o_ref):
    """Fused: self.mlp3 seed at step 0 (single [M,2H]@[2H,H] matmul), then the
    self.layers GEN+ELU stack.  grid=(L,)."""
    adj = adj_ref[...]              # (M, M) bf16 edge counts
    invdeg = invdeg_ref[...]        # (M, 1) f32

    @pl.when(pl.program_id(0) == 0)
    def _seed():
        sv = m3_vec_ref[...]        # (8, H): b1, alpha, b2, post_s, post_b
        h = jnp.dot(cat_ref[...].astype(_BF16), m3_w1_ref[...],
                    preferred_element_type=_F32) + sv[0:1, :]
        h = _prelu(h, sv[1:2, :])
        h = jnp.dot(h.astype(_BF16), m3_w2_ref[...],
                    preferred_element_type=_F32) + sv[2:3, :]
        o_ref[...] = h * sv[3:4, :] + sv[4:5, :]

    v = vec_ref[...]                # (8, H): b1, s1, t1, b2
    x = o_ref[...]
    msg = jnp.dot(adj, x.astype(_BF16), preferred_element_type=_F32) * invdeg
    h = _gen_mlp(x + msg, w1_ref[...], v[0:1, :], v[1:2, :], v[2:3, :],
                 w2_ref[...], v[3:4, :])
    # ELU.  TODO(synk): exp(h)-1 instead of expm1 (Mosaic expm1 lowering unverified).
    o_ref[...] = jnp.where(h > 0.0, h, jnp.exp(h) - 1.0)


def _pool_arrmlp_kernel(x_ref, m2n_mn_ref, m2n_nm_ref, w_ref, b_ref,
                        motif_ref, mx_s, mn_s):
    """Max/Min/Mean aggregation over node->motif edges + self.arrmlp fused as
    one [M,3H]@[3H,H] bf16 matmul.  (Dead global_max_pool path removed.)"""
    x = x_ref[...]                               # [N, H] f32
    cnt = m2n_mn_ref[...]                        # [M, N] edge counts (f32)
    counts = jnp.sum(cnt, axis=1, keepdims=True)                    # [M, 1]
    mean = (jnp.dot(cnt.astype(_BF16), x.astype(_BF16),
                    preferred_element_type=_F32)
            * pl.reciprocal(jnp.maximum(counts, 1.0), approx=True))

    nm = m2n_nm_ref[...]                         # [N, M]
    num_motifs = motif_ref.shape[0]
    # TODO(synk): switch to lax.fori_loop with dynamic row loads for large M.
    for m in range(num_motifs):      # small static loop, one [N,H] tile per step
        col = nm[:, m:m + 1]                     # [N, 1]
        mask = col > 0.0
        has = jnp.sum(col) > 0.0
        mx = jnp.max(jnp.where(mask, x, -jnp.inf), axis=0, keepdims=True)
        mn = jnp.min(jnp.where(mask, x, jnp.inf), axis=0, keepdims=True)
        mx_s[m:m + 1, :] = jnp.where(has, mx, 0.0)
        mn_s[m:m + 1, :] = jnp.where(has, mn, 0.0)

    cat = jnp.concatenate([mx_s[...], mn_s[...], mean], axis=-1)    # [M, 3H]
    motif_ref[...] = (jnp.dot(cat.astype(_BF16), w_ref[...],
                              preferred_element_type=_F32) + b_ref[...])


# ----------------------------------------------------------------------------
# pallas_call wrappers
# ----------------------------------------------------------------------------

def deepgcn_stack_call(atom_x, adj, inv_deg, seed, deep0_vecs, stack):
    n, in_dim = atom_x.shape
    num_layers, h = stack["w1"].shape[0], stack["w1"].shape[-1]
    flops = (num_layers * (2 * n * n * h + 4 * n * h * h)
             + 2 * n * n * h + 2 * n * h * (in_dim + 3 * h))
    bytes_acc = (int(adj.size) * adj.dtype.itemsize + int(atom_x.size) * 4
                 + n * h * 4
                 + sum(int(v.size) * v.dtype.itemsize for v in stack.values())
                 + sum(int(v.size) * v.dtype.itemsize for v in seed.values()))
    return pl.pallas_call(
        _deepgcn_stack_kernel,
        out_shape=jax.ShapeDtypeStruct((n, h), _F32),
        grid=(num_layers,),
        in_specs=[
            _fixed_spec(n, in_dim),    # raw atom features (seed only, resident)
            _fixed_spec(n, n),         # adjacency counts (bf16, resident)
            _fixed_spec(n, 1),         # 1/deg (f32, resident)
            _fixed_spec(2, in_dim),    # folded input BN scale/shift
            _fixed_spec(in_dim, h),    # mlp w1 (bf16)
            _fixed_spec(h, h),         # mlp w2 (bf16)
            _fixed_spec(h, h),         # conv0 w1 (bf16)
            _fixed_spec(h, h),         # conv0 w2 (bf16)
            _fixed_spec(16, h),        # packed seed vectors
            _fixed_spec(8, h),         # packed layers_2[0].norm/act vectors
            _stacked_spec(h, h),       # per-layer w1 (bf16, streamed)
            _stacked_spec(h, h),       # per-layer w2 (bf16, streamed)
            _stacked_spec(8, h),       # per-layer packed vectors (streamed)
        ],
        out_specs=_fixed_spec(n, h),
        compiler_params=pltpu.CompilerParams(
            dimension_semantics=("arbitrary",),
            vmem_limit_bytes=_vmem_limit()),
        cost_estimate=pl.CostEstimate(flops=int(flops), transcendentals=0,
                                      bytes_accessed=int(bytes_acc)),
    )(atom_x, adj, inv_deg, seed["pre"], seed["w_mlp1"], seed["w_mlp2"],
      seed["w_c1"], seed["w_c2"], seed["vecs"], deep0_vecs,
      stack["w1"], stack["w2"], stack["vecs"])


def gen_elu_stack_call(cat_in, adj, inv_deg, mlp3, stack):
    m, two_h = cat_in.shape
    num_layers, h = stack["w1"].shape[0], stack["w1"].shape[-1]
    flops = num_layers * (2 * m * m * h + 4 * m * h * h) + 2 * m * h * (two_h + h)
    bytes_acc = (int(adj.size) * adj.dtype.itemsize + int(cat_in.size) * 4
                 + m * h * 4
                 + sum(int(v.size) * v.dtype.itemsize for v in stack.values())
                 + sum(int(v.size) * v.dtype.itemsize for v in mlp3.values()))
    return pl.pallas_call(
        _gen_elu_stack_kernel,
        out_shape=jax.ShapeDtypeStruct((m, h), _F32),
        grid=(num_layers,),
        in_specs=[
            _fixed_spec(m, two_h),     # [local | global] concat (seed, resident)
            _fixed_spec(m, m),         # motif adjacency counts (bf16, resident)
            _fixed_spec(m, 1),         # 1/deg (f32, resident)
            _fixed_spec(two_h, h),     # mlp3 w1 (bf16, K=2H fused concat)
            _fixed_spec(h, h),         # mlp3 w2 (bf16)
            _fixed_spec(8, h),         # packed mlp3 vectors
            _stacked_spec(h, h),       # per-layer w1 (bf16, streamed)
            _stacked_spec(h, h),       # per-layer w2 (bf16, streamed)
            _stacked_spec(8, h),       # per-layer packed vectors (streamed)
        ],
        out_specs=_fixed_spec(m, h),
        compiler_params=pltpu.CompilerParams(
            dimension_semantics=("arbitrary",),
            vmem_limit_bytes=_vmem_limit()),
        cost_estimate=pl.CostEstimate(flops=int(flops),
                                      transcendentals=num_layers * m * h,
                                      bytes_accessed=int(bytes_acc)),
    )(cat_in, adj, inv_deg, mlp3["w1"], mlp3["w2"], mlp3["vecs"],
      stack["w1"], stack["w2"], stack["vecs"])


def pool_arrmlp_call(x, m2n_mn, m2n_nm, arrmlp):
    n, h = x.shape
    num_motifs = m2n_mn.shape[0]
    return pl.pallas_call(
        _pool_arrmlp_kernel,
        out_shape=jax.ShapeDtypeStruct((num_motifs, h), _F32),
        in_specs=[pl.BlockSpec(memory_space=VMEM)] * 5,
        out_specs=pl.BlockSpec(memory_space=VMEM),
        scratch_shapes=[pltpu.VMEM((num_motifs, h), _F32),
                        pltpu.VMEM((num_motifs, h), _F32)],
    )(x, m2n_mn, m2n_nm, arrmlp["w"], arrmlp["b"])


# ----------------------------------------------------------------------------
# Glue (adjacency / membership construction, parameter init, forward)
# ----------------------------------------------------------------------------

def dense_counts(edge_index, n):
    """Un-normalized bf16 edge counts (exact small integers) + f32 1/deg."""
    src, dst = edge_index[0], edge_index[1]
    a = jnp.zeros((n, n), _F32).at[dst, src].add(1.0)
    deg = jnp.sum(a, axis=1, keepdims=True)
    inv = 1.0 / jnp.maximum(deg, 1.0)
    return a.astype(_BF16), inv


def edge_count_matrix(edge_index, n_dst, n_src):
    src, dst = edge_index[0], edge_index[1]
    return jnp.zeros((n_dst, n_src), _F32).at[dst, src].add(1.0)


def init_params(key, in_dim, hidden, n_layer, n_deep):
    h = hidden
    ks = iter(jax.random.split(key, 256))

    def nrm(shape, scale=0.1):
        return scale * jax.random.normal(next(ks), shape, _F32)

    def bn_fold(width):
        # eval-mode BatchNorm1d folded to scale/shift.
        # TODO(synk): derive from real running stats when loading a checkpoint.
        gamma = 1.0 + 0.05 * jax.random.normal(next(ks), (1, width), _F32)
        beta = 0.05 * jax.random.normal(next(ks), (1, width), _F32)
        return gamma / jnp.sqrt(1.0 + 1e-5), beta

    def pack_rows(rows, total):
        out = jnp.zeros((total, h), _F32)
        for i, r in enumerate(rows):
            out = out.at[i:i + 1, :].set(r)
        return out

    alpha = jnp.full((1, h), 0.25, _F32)   # PReLU single param, pre-broadcast

    # --- seed of the DeepGCN stack: self.mlp + layers_2[0].conv ---
    pre_s, pre_b = bn_fold(in_dim)
    post_s, post_b = bn_fold(h)
    cs1, ct1 = bn_fold(h)
    seed = {
        "pre": jnp.concatenate([pre_s, pre_b], axis=0),        # (2, in_dim) f32
        "w_mlp1": nrm((in_dim, h)).astype(_BF16),
        "w_mlp2": nrm((h, h)).astype(_BF16),
        "w_c1": nrm((h, h)).astype(_BF16),
        "w_c2": nrm((h, h)).astype(_BF16),
        "vecs": pack_rows([nrm((1, h), 0.01), alpha, nrm((1, h), 0.01),
                           post_s, post_b,
                           nrm((1, h), 0.01), cs1, ct1, nrm((1, h), 0.01)], 16),
    }

    # layers_2[0].norm / layers_2[0].act (applied after every deep layer)
    deep0_vecs = pack_rows([jnp.ones((1, h), _F32), jnp.zeros((1, h), _F32),
                            alpha], 8)

    def conv_vec_rows():
        s1, t1 = bn_fold(h)
        return [nrm((1, h), 0.01), s1, t1, nrm((1, h), 0.01)]   # b1, s1, t1, b2

    # DeepGCN stack over layers_2[1:] (rows: ln_g, ln_b, alpha, b1, s1, t1, b2)
    n_deep_layers = n_deep - 1
    deep = {
        "w1": nrm((n_deep_layers, h, h)).astype(_BF16),
        "w2": nrm((n_deep_layers, h, h)).astype(_BF16),
        "vecs": jnp.stack(
            [pack_rows([jnp.ones((1, h), _F32), jnp.zeros((1, h), _F32), alpha]
                       + conv_vec_rows(), 8) for _ in range(n_deep_layers)],
            axis=0),
    }

    # GEN+ELU stack over self.layers (rows: b1, s1, t1, b2)
    gen = {
        "w1": nrm((n_layer, h, h)).astype(_BF16),
        "w2": nrm((n_layer, h, h)).astype(_BF16),
        "vecs": jnp.stack([pack_rows(conv_vec_rows(), 8) for _ in range(n_layer)],
                          axis=0),
    }

    # mlp3 (seed of the GEN+ELU stack); first Linear packed as a single [2H,H]
    p3s, p3b = bn_fold(h)
    mlp3 = {
        "w1": nrm((2 * h, h)).astype(_BF16),
        "w2": nrm((h, h)).astype(_BF16),
        "vecs": pack_rows([nrm((1, h), 0.01), alpha, nrm((1, h), 0.01),
                           p3s, p3b], 8),
    }

    # arrmlp over concat([max, min, mean]) as a single [3H,H] weight
    arrmlp = {"w": nrm((3 * h, h)).astype(_BF16), "b": nrm((1, h), 0.01)}

    return {"seed": seed, "deep0_vecs": deep0_vecs, "deep": deep,
            "gen": gen, "mlp3": mlp3, "arrmlp": arrmlp}


def encoder_node_local(params, data, num_motifs):
    atom_x = data["atom_x"]
    n_atoms = atom_x.shape[0]
    adj, inv_deg = dense_counts(data["atom_edge_index"], n_atoms)
    x = deepgcn_stack_call(atom_x, adj, inv_deg, params["seed"],
                           params["deep0_vecs"], params["deep"])
    m2n_mn = edge_count_matrix(data["n2m_edge_index"], num_motifs, n_atoms)
    m2n_nm = jnp.transpose(m2n_mn)
    local = pool_arrmlp_call(x, m2n_mn, m2n_nm, params["arrmlp"])
    # x_graph = global_max_pool(x, batch) is discarded by forward(); omitted.
    return local


def drug_encoder_forward(params, data, mm_x, num_motifs):
    local = encoder_node_local(params, data, num_motifs)
    glob = jnp.take(mm_x, data["motif_type"].reshape(-1).astype(jnp.int32), axis=0)
    cat = jnp.concatenate([local, glob], axis=1)           # [M, 2H] for fused mlp3
    adj_m, inv_deg_m = dense_counts(data["motif_edge_index"], num_motifs)
    x = gen_elu_stack_call(cat, adj_m, inv_deg_m, params["mlp3"], params["gen"])
    new_x = []
    return x, new_x


# ----------------------------------------------------------------------------
# Demo
# ----------------------------------------------------------------------------

if __name__ == "__main__":
    key = jax.random.PRNGKey(0)
    in_dim, hidden = 16, 128          # hidden_dim=128 is the module default (lane-dense)
    n_layer, n_deep = 10, 12
    n_atoms, n_motifs, num_types = 32, 8, 6
    e_atom, e_motif = 64, 16

    ks = jax.random.split(key, 10)
    atom_x = jax.random.normal(ks[0], (n_atoms, in_dim), _F32)
    atom_ei = jax.random.randint(ks[1], (2, e_atom), 0, n_atoms, jnp.int32)
    motif_ei = jax.random.randint(ks[2], (2, e_motif), 0, n_motifs, jnp.int32)
    n2m_ei = jnp.stack([jnp.arange(n_atoms, dtype=jnp.int32),
                        jax.random.randint(ks[4], (n_atoms,), 0, n_motifs, jnp.int32)])
    motif_type = jax.random.randint(ks[5], (n_motifs, 1), 0, num_types, jnp.int32)
    mm_x = jax.random.normal(ks[6], (num_types, hidden), _F32)

    data = {"atom_x": atom_x,
            "atom_edge_index": atom_ei,
            "motif_edge_index": motif_ei,
            "n2m_edge_index": n2m_ei,
            "motif_type": motif_type}

    params = init_params(ks[7], in_dim, hidden, n_layer, n_deep)

    fwd = jax.jit(drug_encoder_forward, static_argnums=(3,))
    out, new_x = fwd(params, data, mm_x, n_motifs)
    jax.block_until_ready(out)
    assert out.shape == (n_motifs, hidden) and out.dtype == jnp.float32
    print("KERNEL_OK")
</pallas_src>

<mosaic_0001>
module attributes {stable_mosaic.version = 11 : i64} {
  func.func @_deepgcn_stack_kernel(%arg0: i32, %arg1: memref<32x16xf32, #tpu.memory_space<vmem>>, %arg2: memref<32x32xbf16, #tpu.memory_space<vmem>>, %arg3: memref<32x1xf32, #tpu.memory_space<vmem>>, %arg4: memref<2x16xf32, #tpu.memory_space<vmem>>, %arg5: memref<16x128xbf16, #tpu.memory_space<vmem>>, %arg6: memref<128x128xbf16, #tpu.memory_space<vmem>>, %arg7: memref<128x128xbf16, #tpu.memory_space<vmem>>, %arg8: memref<128x128xbf16, #tpu.memory_space<vmem>>, %arg9: memref<16x128xf32, #tpu.memory_space<vmem>>, %arg10: memref<8x128xf32, #tpu.memory_space<vmem>>, %arg11: memref<1x128x128xbf16, #tpu.memory_space<vmem>>, %arg12: memref<1x128x128xbf16, #tpu.memory_space<vmem>>, %arg13: memref<1x8x128xf32, #tpu.memory_space<vmem>>, %arg14: memref<32x128xf32, #tpu.memory_space<vmem>>) attributes {dimension_semantics = [#tpu.dimension_semantics<arbitrary>], iteration_bounds = array<i64: 11>, scalar_prefetch = 0 : i64, scratch_operands = 0 : i64, tpu.core_type = #tpu.core_type<tc>, window_params = [{pipeline_mode = #tpu.pipeline_mode<synchronous>, transform_indices = @transform_0, window_bounds = array<i64: 32, 16>}, {pipeline_mode = #tpu.pipeline_mode<synchronous>, transform_indices = @transform_1, window_bounds = array<i64: 32, 32>}, {pipeline_mode = #tpu.pipeline_mode<synchronous>, transform_indices = @transform_2, window_bounds = array<i64: 32, 1>}, {pipeline_mode = #tpu.pipeline_mode<synchronous>, transform_indices = @transform_3, window_bounds = array<i64: 2, 16>}, {pipeline_mode = #tpu.pipeline_mode<synchronous>, transform_indices = @transform_4, window_bounds = array<i64: 16, 128>}, {pipeline_mode = #tpu.pipeline_mode<synchronous>, transform_indices = @transform_5, window_bounds = array<i64: 128, 128>}, {pipeline_mode = #tpu.pipeline_mode<synchronous>, transform_indices = @transform_6, window_bounds = array<i64: 128, 128>}, {pipeline_mode = #tpu.pipeline_mode<synchronous>, transform_indices = @transform_7, window_bounds = array<i64: 128, 128>}, {pipeline_mode = #tpu.pipeline_mode<synchronous>, transform_indices = @transform_8, window_bounds = array<i64: 16, 128>}, {pipeline_mode = #tpu.pipeline_mode<synchronous>, transform_indices = @transform_9, window_bounds = array<i64: 8, 128>}, {transform_indices = @transform_10, window_bounds = array<i64: 1, 128, 128>}, {transform_indices = @transform_11, window_bounds = array<i64: 1, 128, 128>}, {transform_indices = @transform_12, window_bounds = array<i64: 1, 8, 128>}, {pipeline_mode = #tpu.pipeline_mode<synchronous>, transform_indices = @transform_13, window_bounds = array<i64: 32, 128>}]} {
    %c0 = arith.constant 0 : index
    %c0_0 = arith.constant 0 : index
    %0 = vector.load %arg2[%c0, %c0_0] : memref<32x32xbf16, #tpu.memory_space<vmem>>, vector<32x32xbf16>
    %c0_1 = arith.constant 0 : index
    %c0_2 = arith.constant 0 : index
    %1 = vector.load %arg3[%c0_1, %c0_2] : memref<32x1xf32, #tpu.memory_space<vmem>>, vector<32x1xf32>
    %c0_i32 = arith.constant 0 : i32
    %2 = arith.cmpi eq, %arg0, %c0_i32 : i32
    %3 = arith.extui %2 : i1 to i32
    %c0_i32_3 = arith.constant 0 : i32
    %4 = arith.cmpi ne, %3, %c0_i32_3 : i32
    scf.if %4 {
      %c0_34 = arith.constant 0 : index
      %c0_35 = arith.constant 0 : index
      %98 = vector.load %arg9[%c0_34, %c0_35] : memref<16x128xf32, #tpu.memory_space<vmem>>, vector<16x128xf32>
      %c0_36 = arith.constant 0 : index
      %c0_37 = arith.constant 0 : index
      %99 = vector.load %arg4[%c0_36, %c0_37] : memref<2x16xf32, #tpu.memory_space<vmem>>, vector<2x16xf32>
      %c0_38 = arith.constant 0 : index
      %c0_39 = arith.constant 0 : index
      %100 = vector.load %arg1[%c0_38, %c0_39] : memref<32x16xf32, #tpu.memory_space<vmem>>, vector<32x16xf32>
      %101 = vector.extract_strided_slice %99 {offsets = [0, 0], sizes = [1, 16], strides = [1, 1]} : vector<2x16xf32> to vector<1x16xf32>
      %102 = vector.broadcast %101 : vector<1x16xf32> to vector<32x16xf32>
      %103 = arith.mulf %100, %102 : vector<32x16xf32>
      %104 = vector.extract_strided_slice %99 {offsets = [1, 0], sizes = [1, 16], strides = [1, 1]} : vector<2x16xf32> to vector<1x16xf32>
      %105 = vector.broadcast %104 : vector<1x16xf32> to vector<32x16xf32>
      %106 = arith.addf %103, %105 : vector<32x16xf32>
      %107 = arith.truncf %106 : vector<32x16xf32> to vector<32x16xbf16>
      %c0_40 = arith.constant 0 : index
      %c0_41 = arith.constant 0 : index
      %108 = vector.load %arg5[%c0_40, %c0_41] : memref<16x128xbf16, #tpu.memory_space<vmem>>, vector<16x128xbf16>
      %cst_42 = arith.constant dense<0.000000e+00> : vector<32x128xf32>
      %109 = tpu.matmul %107, %108, %cst_42 {dimension_numbers = #tpu.dot_dimension_numbers<[1], [0], [0], [1], [0, 0, 1, 1], [], []>} : vector<32x16xbf16>, vector<16x128xbf16>, vector<32x128xf32> -> vector<32x128xf32>
      %110 = vector.extract_strided_slice %98 {offsets = [0, 0], sizes = [1, 128], strides = [1, 1]} : vector<16x128xf32> to vector<1x128xf32>
      %111 = vector.broadcast %110 : vector<1x128xf32> to vector<32x128xf32>
      %112 = arith.addf %109, %111 : vector<32x128xf32>
      %113 = vector.extract_strided_slice %98 {offsets = [1, 0], sizes = [1, 128], strides = [1, 1]} : vector<16x128xf32> to vector<1x128xf32>
      %cst_43 = arith.constant 0.000000e+00 : f32
      %114 = vector.broadcast %cst_43 : f32 to vector<32x128xf32>
      %115 = arith.cmpf oge, %112, %114 : vector<32x128xf32>
      %116 = vector.broadcast %113 : vector<1x128xf32> to vector<32x128xf32>
      %117 = arith.mulf %116, %112 : vector<32x128xf32>
      %118 = arith.select %115, %112, %117 : vector<32x128xi1>, vector<32x128xf32>
      %119 = arith.truncf %118 : vector<32x128xf32> to vector<32x128xbf16>
      %c0_44 = arith.constant 0 : index
      %c0_45 = arith.constant 0 : index
      %120 = vector.load %arg6[%c0_44, %c0_45] : memref<128x128xbf16, #tpu.memory_space<vmem>>, vector<128x128xbf16>
      %cst_46 = arith.constant dense<0.000000e+00> : vector<32x128xf32>
      %121 = tpu.matmul %119, %120, %cst_46 {dimension_numbers = #tpu.dot_dimension_numbers<[1], [0], [0], [1], [0, 0, 1, 1], [], []>} : vector<32x128xbf16>, vector<128x128xbf16>, vector<32x128xf32> -> vector<32x128xf32>
      %122 = vector.extract_strided_slice %98 {offsets = [2, 0], sizes = [1, 128], strides = [1, 1]} : vector<16x128xf32> to vector<1x128xf32>
      %123 = vector.broadcast %122 : vector<1x128xf32> to vector<32x128xf32>
      %124 = arith.addf %121, %123 : vector<32x128xf32>
      %125 = vector.extract_strided_slice %98 {offsets = [3, 0], sizes = [1, 128], strides = [1, 1]} : vector<16x128xf32> to vector<1x128xf32>
      %126 = vector.broadcast %125 : vector<1x128xf32> to vector<32x128xf32>
      %127 = arith.mulf %124, %126 : vector<32x128xf32>
      %128 = vector.extract_strided_slice %98 {offsets = [4, 0], sizes = [1, 128], strides = [1, 1]} : vector<16x128xf32> to vector<1x128xf32>
      %129 = vector.broadcast %128 : vector<1x128xf32> to vector<32x128xf32>
      %130 = arith.addf %127, %129 : vector<32x128xf32>
      %131 = arith.truncf %130 : vector<32x128xf32> to vector<32x128xbf16>
      %cst_47 = arith.constant dense<0.000000e+00> : vector<32x128xf32>
      %132 = tpu.matmul %0, %131, %cst_47 {dimension_numbers = #tpu.dot_dimension_numbers<[1], [0], [0], [1], [0, 0, 1, 1], [], []>} : vector<32x32xbf16>, vector<32x128xbf16>, vector<32x128xf32> -> vector<32x128xf32>
      %133 = vector.broadcast %1 : vector<32x1xf32> to vector<32x128xf32>
      %134 = arith.mulf %132, %133 : vector<32x128xf32>
      %135 = arith.addf %130, %134 : vector<32x128xf32>
      %c0_48 = arith.constant 0 : index
      %c0_49 = arith.constant 0 : index
      %136 = vector.load %arg7[%c0_48, %c0_49] : memref<128x128xbf16, #tpu.memory_space<vmem>>, vector<128x128xbf16>
      %137 = vector.extract_strided_slice %98 {offsets = [5, 0], sizes = [1, 128], strides = [1, 1]} : vector<16x128xf32> to vector<1x128xf32>
      %138 = vector.extract_strided_slice %98 {offsets = [6, 0], sizes = [1, 128], strides = [1, 1]} : vector<16x128xf32> to vector<1x128xf32>
      %139 = vector.extract_strided_slice %98 {offsets = [7, 0], sizes = [1, 128], strides = [1, 1]} : vector<16x128xf32> to vector<1x128xf32>
      %c0_50 = arith.constant 0 : index
      %c0_51 = arith.constant 0 : index
      %140 = vector.load %arg8[%c0_50, %c0_51] : memref<128x128xbf16, #tpu.memory_space<vmem>>, vector<128x128xbf16>
      %141 = vector.extract_strided_slice %98 {offsets = [8, 0], sizes = [1, 128], strides = [1, 1]} : vector<16x128xf32> to vector<1x128xf32>
      %142 = arith.truncf %135 : vector<32x128xf32> to vector<32x128xbf16>
      %cst_52 = arith.constant dense<0.000000e+00> : vector<32x128xf32>
      %143 = tpu.matmul %142, %136, %cst_52 {dimension_numbers = #tpu.dot_dimension_numbers<[1], [0], [0], [1], [0, 0, 1, 1], [], []>} : vector<32x128xbf16>, vector<128x128xbf16>, vector<32x128xf32> -> vector<32x128xf32>
      %144 = vector.broadcast %137 : vector<1x128xf32> to vector<32x128xf32>
      %145 = arith.addf %143, %144 : vector<32x128xf32>
      %146 = vector.broadcast %138 : vector<1x128xf32> to vector<32x128xf32>
      %147 = arith.mulf %145, %146 : vector<32x128xf32>
      %148 = vector.broadcast %139 : vector<1x128xf32> to vector<32x128xf32>
      %149 = arith.addf %147, %148 : vector<32x128xf32>
      %cst_53 = arith.constant 0.000000e+00 : f32
      %150 = vector.broadcast %cst_53 : f32 to vector<32x128xf32>
      %151 = arith.maximumf %149, %150 : vector<32x128xf32>
      %152 = arith.truncf %151 : vector<32x128xf32> to vector<32x128xbf16>
      %cst_54 = arith.constant dense<0.000000e+00> : vector<32x128xf32>
      %153 = tpu.matmul %152, %140, %cst_54 {dimension_numbers = #tpu.dot_dimension_numbers<[1], [0], [0], [1], [0, 0, 1, 1], [], []>} : vector<32x128xbf16>, vector<128x128xbf16>, vector<32x128xf32> -> vector<32x128xf32>
      %154 = vector.broadcast %141 : vector<1x128xf32> to vector<32x128xf32>
      %155 = arith.addf %153, %154 : vector<32x128xf32>
      %c0_55 = arith.constant 0 : index
      %c0_56 = arith.constant 0 : index
      %156 = vector.load %arg14[%c0_55, %c0_56] : memref<32x128xf32, #tpu.memory_space<vmem>>, vector<32x128xf32>
      tpu.vector_store %arg14[%c0_55, %c0_56], %155 {strides = array<i32>} : memref<32x128xf32, #tpu.memory_space<vmem>>, vector<32x128xf32>,
    } else {
    }
    %c0_4 = arith.constant 0 : index
    %c0_5 = arith.constant 0 : index
    %c0_6 = arith.constant 0 : index
    %5 = vector.load %arg13[%c0_4, %c0_5, %c0_6] : memref<1x8x128xf32, #tpu.memory_space<vmem>>, vector<1x8x128xf32>
    %6 = vector.shape_cast %5 : vector<1x8x128xf32> to vector<8x128xf32>
    %c0_7 = arith.constant 0 : index
    %c0_8 = arith.constant 0 : index
    %7 = vector.load %arg10[%c0_7, %c0_8] : memref<8x128xf32, #tpu.memory_space<vmem>>, vector<8x128xf32>
    %c0_9 = arith.constant 0 : index
    %c0_10 = arith.constant 0 : index
    %8 = vector.load %arg14[%c0_9, %c0_10] : memref<32x128xf32, #tpu.memory_space<vmem>>, vector<32x128xf32>
    %9 = vector.extract_strided_slice %6 {offsets = [0, 0], sizes = [1, 128], strides = [1, 1]} : vector<8x128xf32> to vector<1x128xf32>
    %10 = vector.extract_strided_slice %6 {offsets = [1, 0], sizes = [1, 128], strides = [1, 1]} : vector<8x128xf32> to vector<1x128xf32>
    %cst = arith.constant dense<0.000000e+00> : vector<32xf32>
    %11 = vector.multi_reduction <add>, %8, %cst [1] : vector<32x128xf32> to vector<32xf32>
    %12 = vector.shape_cast %11 : vector<32xf32> to vector<32x1xf32>
    %cst_11 = arith.constant 1.280000e+02 : f32
    %13 = vector.broadcast %cst_11 : f32 to vector<32x1xf32>
    %14 = arith.divf %12, %13 : vector<32x1xf32>
    %15 = vector.broadcast %14 : vector<32x1xf32> to vector<32x128xf32>
    %16 = arith.subf %8, %15 : vector<32x128xf32>
    %17 = arith.mulf %16, %16 : vector<32x128xf32>
    %cst_12 = arith.constant dense<0.000000e+00> : vector<32xf32>
    %18 = vector.multi_reduction <add>, %17, %cst_12 [1] : vector<32x128xf32> to vector<32xf32>
    %19 = vector.shape_cast %18 : vector<32xf32> to vector<32x1xf32>
    %cst_13 = arith.constant 1.280000e+02 : f32
    %20 = vector.broadcast %cst_13 : f32 to vector<32x1xf32>
    %21 = arith.divf %19, %20 : vector<32x1xf32>
    %22 = vector.broadcast %14 : vector<32x1xf32> to vector<32x128xf32>
    %23 = arith.subf %8, %22 : vector<32x128xf32>
    %cst_14 = arith.constant 9.99999974E-6 : f32
    %24 = vector.broadcast %cst_14 : f32 to vector<32x1xf32>
    %25 = arith.addf %21, %24 : vector<32x1xf32>
    %26 = math.rsqrt %25 : vector<32x1xf32>
    %27 = vector.broadcast %26 : vector<32x1xf32> to vector<32x128xf32>
    %28 = arith.mulf %23, %27 : vector<32x128xf32>
    %29 = vector.broadcast %9 : vector<1x128xf32> to vector<32x128xf32>
    %30 = arith.mulf %28, %29 : vector<32x128xf32>
    %31 = vector.broadcast %10 : vector<1x128xf32> to vector<32x128xf32>
    %32 = arith.addf %30, %31 : vector<32x128xf32>
    %33 = vector.extract_strided_slice %6 {offsets = [2, 0], sizes = [1, 128], strides = [1, 1]} : vector<8x128xf32> to vector<1x128xf32>
    %cst_15 = arith.constant 0.000000e+00 : f32
    %34 = vector.broadcast %cst_15 : f32 to vector<32x128xf32>
    %35 = arith.cmpf oge, %32, %34 : vector<32x128xf32>
    %36 = vector.broadcast %33 : vector<1x128xf32> to vector<32x128xf32>
    %37 = arith.mulf %36, %32 : vector<32x128xf32>
    %38 = arith.select %35, %32, %37 : vector<32x128xi1>, vector<32x128xf32>
    %39 = arith.truncf %38 : vector<32x128xf32> to vector<32x128xbf16>
    %cst_16 = arith.constant dense<0.000000e+00> : vector<32x128xf32>
    %40 = tpu.matmul %0, %39, %cst_16 {dimension_numbers = #tpu.dot_dimension_numbers<[1], [0], [0], [1], [0, 0, 1, 1], [], []>} : vector<32x32xbf16>, vector<32x128xbf16>, vector<32x128xf32> -> vector<32x128xf32>
    %41 = vector.broadcast %1 : vector<32x1xf32> to vector<32x128xf32>
    %42 = arith.mulf %40, %41 : vector<32x128xf32>
    %43 = arith.addf %38, %42 : vector<32x128xf32>
    %c0_17 = arith.constant 0 : index
    %c0_18 = arith.constant 0 : index
    %c0_19 = arith.constant 0 : index
    %44 = vector.load %arg11[%c0_17, %c0_18, %c0_19] : memref<1x128x128xbf16, #tpu.memory_space<vmem>>, vector<1x128x128xbf16>
    %45 = vector.shape_cast %44 : vector<1x128x128xbf16> to vector<128x128xbf16>
    %46 = vector.extract_strided_slice %6 {offsets = [3, 0], sizes = [1, 128], strides = [1, 1]} : vector<8x128xf32> to vector<1x128xf32>
    %47 = vector.extract_strided_slice %6 {offsets = [4, 0], sizes = [1, 128], strides = [1, 1]} : vector<8x128xf32> to vector<1x128xf32>
    %48 = vector.extract_strided_slice %6 {offsets = [5, 0], sizes = [1, 128], strides = [1, 1]} : vector<8x128xf32> to vector<1x128xf32>
    %c0_20 = arith.constant 0 : index
    %c0_21 = arith.constant 0 : index
    %c0_22 = arith.constant 0 : index
    %49 = vector.load %arg12[%c0_20, %c0_21, %c0_22] : memref<1x128x128xbf16, #tpu.memory_space<vmem>>, vector<1x128x128xbf16>
    %50 = vector.shape_cast %49 : vector<1x128x128xbf16> to vector<128x128xbf16>
    %51 = vector.extract_strided_slice %6 {offsets = [6, 0], sizes = [1, 128], strides = [1, 1]} : vector<8x128xf32> to vector<1x128xf32>
    %52 = arith.truncf %43 : vector<32x128xf32> to vector<32x128xbf16>
    %cst_23 = arith.constant dense<0.000000e+00> : vector<32x128xf32>
    %53 = tpu.matmul %52, %45, %cst_23 {dimension_numbers = #tpu.dot_dimension_numbers<[1], [0], [0], [1], [0, 0, 1, 1], [], []>} : vector<32x128xbf16>, vector<128x128xbf16>, vector<32x128xf32> -> vector<32x128xf32>
    %54 = vector.broadcast %46 : vector<1x128xf32> to vector<32x128xf32>
    %55 = arith.addf %53, %54 : vector<32x128xf32>
    %56 = vector.broadcast %47 : vector<1x128xf32> to vector<32x128xf32>
    %57 = arith.mulf %55, %56 : vector<32x128xf32>
    %58 = vector.broadcast %48 : vector<1x128xf32> to vector<32x128xf32>
    %59 = arith.addf %57, %58 : vector<32x128xf32>
    %cst_24 = arith.constant 0.000000e+00 : f32
    %60 = vector.broadcast %cst_24 : f32 to vector<32x128xf32>
    %61 = arith.maximumf %59, %60 : vector<32x128xf32>
    %62 = arith.truncf %61 : vector<32x128xf32> to vector<32x128xbf16>
    %cst_25 = arith.constant dense<0.000000e+00> : vector<32x128xf32>
    %63 = tpu.matmul %62, %50, %cst_25 {dimension_numbers = #tpu.dot_dimension_numbers<[1], [0], [0], [1], [0, 0, 1, 1], [], []>} : vector<32x128xbf16>, vector<128x128xbf16>, vector<32x128xf32> -> vector<32x128xf32>
    %64 = vector.broadcast %51 : vector<1x128xf32> to vector<32x128xf32>
    %65 = arith.addf %63, %64 : vector<32x128xf32>
    %66 = arith.addf %8, %65 : vector<32x128xf32>
    %67 = vector.extract_strided_slice %7 {offsets = [0, 0], sizes = [1, 128], strides = [1, 1]} : vector<8x128xf32> to vector<1x128xf32>
    %68 = vector.extract_strided_slice %7 {offsets = [1, 0], sizes = [1, 128], strides = [1, 1]} : vector<8x128xf32> to vector<1x128xf32>
    %cst_26 = arith.constant dense<0.000000e+00> : vector<32xf32>
    %69 = vector.multi_reduction <add>, %66, %cst_26 [1] : vector<32x128xf32> to vector<32xf32>
    %70 = vector.shape_cast %69 : vector<32xf32> to vector<32x1xf32>
    %cst_27 = arith.constant 1.280000e+02 : f32
    %71 = vector.broadcast %cst_27 : f32 to vector<32x1xf32>
    %72 = arith.divf %70, %71 : vector<32x1xf32>
    %73 = vector.broadcast %72 : vector<32x1xf32> to vector<32x128xf32>
    %74 = arith.subf %66, %73 : vector<32x128xf32>
    %75 = arith.mulf %74, %74 : vector<32x128xf32>
    %cst_28 = arith.constant dense<0.000000e+00> : vector<32xf32>
    %76 = vector.multi_reduction <add>, %75, %cst_28 [1] : vector<32x128xf32> to vector<32xf32>
    %77 = vector.shape_cast %76 : vector<32xf32> to vector<32x1xf32>
    %cst_29 = arith.constant 1.280000e+02 : f32
    %78 = vector.broadcast %cst_29 : f32 to vector<32x1xf32>
    %79 = arith.divf %77, %78 : vector<32x1xf32>
    %80 = vector.broadcast %72 : vector<32x1xf32> to vector<32x128xf32>
    %81 = arith.subf %66, %80 : vector<32x128xf32>
    %cst_30 = arith.constant 9.99999974E-6 : f32
    %82 = vector.broadcast %cst_30 : f32 to vector<32x1xf32>
    %83 = arith.addf %79, %82 : vector<32x1xf32>
    %84 = math.rsqrt %83 : vector<32x1xf32>
    %85 = vector.broadcast %84 : vector<32x1xf32> to vector<32x128xf32>
    %86 = arith.mulf %81, %85 : vector<32x128xf32>
    %87 = vector.broadcast %67 : vector<1x128xf32> to vector<32x128xf32>
    %88 = arith.mulf %86, %87 : vector<32x128xf32>
    %89 = vector.broadcast %68 : vector<1x128xf32> to vector<32x128xf32>
    %90 = arith.addf %88, %89 : vector<32x128xf32>
    %91 = vector.extract_strided_slice %7 {offsets = [2, 0], sizes = [1, 128], strides = [1, 1]} : vector<8x128xf32> to vector<1x128xf32>
    %cst_31 = arith.constant 0.000000e+00 : f32
    %92 = vector.broadcast %cst_31 : f32 to vector<32x128xf32>
    %93 = arith.cmpf oge, %90, %92 : vector<32x128xf32>
    %94 = vector.broadcast %91 : vector<1x128xf32> to vector<32x128xf32>
    %95 = arith.mulf %94, %90 : vector<32x128xf32>
    %96 = arith.select %93, %90, %95 : vector<32x128xi1>, vector<32x128xf32>
    %c0_32 = arith.constant 0 : index
    %c0_33 = arith.constant 0 : index
    %97 = vector.load %arg14[%c0_32, %c0_33] : memref<32x128xf32, #tpu.memory_space<vmem>>, vector<32x128xf32>
    tpu.vector_store %arg14[%c0_32, %c0_33], %96 {strides = array<i32>} : memref<32x128xf32, #tpu.memory_space<vmem>>, vector<32x128xf32>,
    return
  }
  func.func @transform_0(%arg0: i32) -> (i32, i32) {
    %c0_i32 = arith.constant 0 : i32
    %c0_i32_0 = arith.constant 0 : i32
    %c0_i32_1 = arith.constant 0 : i32
    return %c0_i32, %c0_i32_0 : i32, i32
  }
  func.func @transform_1(%arg0: i32) -> (i32, i32) {
    %c0_i32 = arith.constant 0 : i32
    %c0_i32_0 = arith.constant 0 : i32
    %c0_i32_1 = arith.constant 0 : i32
    return %c0_i32, %c0_i32_0 : i32, i32
  }
  func.func @transform_2(%arg0: i32) -> (i32, i32) {
    %c0_i32 = arith.constant 0 : i32
    %c0_i32_0 = arith.constant 0 : i32
    %c0_i32_1 = arith.constant 0 : i32
    return %c0_i32, %c0_i32_0 : i32, i32
  }
  func.func @transform_3(%arg0: i32) -> (i32, i32) {
    %c0_i32 = arith.constant 0 : i32
    %c0_i32_0 = arith.constant 0 : i32
    %c0_i32_1 = arith.constant 0 : i32
    return %c0_i32, %c0_i32_0 : i32, i32
  }
  func.func @transform_4(%arg0: i32) -> (i32, i32) {
    %c0_i32 = arith.constant 0 : i32
    %c0_i32_0 = arith.constant 0 : i32
    %c0_i32_1 = arith.constant 0 : i32
    return %c0_i32, %c0_i32_0 : i32, i32
  }
  func.func @transform_5(%arg0: i32) -> (i32, i32) {
    %c0_i32 = arith.constant 0 : i32
    %c0_i32_0 = arith.constant 0 : i32
    %c0_i32_1 = arith.constant 0 : i32
    return %c0_i32, %c0_i32_0 : i32, i32
  }
  func.func @transform_6(%arg0: i32) -> (i32, i32) {
    %c0_i32 = arith.constant 0 : i32
    %c0_i32_0 = arith.constant 0 : i32
    %c0_i32_1 = arith.constant 0 : i32
    return %c0_i32, %c0_i32_0 : i32, i32
  }
  func.func @transform_7(%arg0: i32) -> (i32, i32) {
    %c0_i32 = arith.constant 0 : i32
    %c0_i32_0 = arith.constant 0 : i32
    %c0_i32_1 = arith.constant 0 : i32
    return %c0_i32, %c0_i32_0 : i32, i32
  }
  func.func @transform_8(%arg0: i32) -> (i32, i32) {
    %c0_i32 = arith.constant 0 : i32
    %c0_i32_0 = arith.constant 0 : i32
    %c0_i32_1 = arith.constant 0 : i32
    return %c0_i32, %c0_i32_0 : i32, i32
  }
  func.func @transform_9(%arg0: i32) -> (i32, i32) {
    %c0_i32 = arith.constant 0 : i32
    %c0_i32_0 = arith.constant 0 : i32
    %c0_i32_1 = arith.constant 0 : i32
    return %c0_i32, %c0_i32_0 : i32, i32
  }
  func.func @transform_10(%arg0: i32) -> (i32, i32, i32) {
    %c0_i32 = arith.constant 0 : i32
    %c0_i32_0 = arith.constant 0 : i32
    %c0_i32_1 = arith.constant 0 : i32
    return %arg0, %c0_i32, %c0_i32_0 : i32, i32, i32
  }
  func.func @transform_11(%arg0: i32) -> (i32, i32, i32) {
    %c0_i32 = arith.constant 0 : i32
    %c0_i32_0 = arith.constant 0 : i32
    %c0_i32_1 = arith.constant 0 : i32
    return %arg0, %c0_i32, %c0_i32_0 : i32, i32, i32
  }
  func.func @transform_12(%arg0: i32) -> (i32, i32, i32) {
    %c0_i32 = arith.constant 0 : i32
    %c0_i32_0 = arith.constant 0 : i32
    %c0_i32_1 = arith.constant 0 : i32
    return %arg0, %c0_i32, %c0_i32_0 : i32, i32, i32
  }
  func.func @transform_13(%arg0: i32) -> (i32, i32) {
    %c0_i32 = arith.constant 0 : i32
    %c0_i32_0 = arith.constant 0 : i32
    %c0_i32_1 = arith.constant 0 : i32
    return %c0_i32, %c0_i32_0 : i32, i32
  }
}

module attributes {stable_mosaic.version = 11 : i64} {
  func.func @_pool_arrmlp_kernel(%arg0: memref<32x128xf32, #tpu.memory_space<vmem>>, %arg1: memref<8x32xf32, #tpu.memory_space<vmem>>, %arg2: memref<32x8xf32, #tpu.memory_space<vmem>>, %arg3: memref<384x128xbf16, #tpu.memory_space<vmem>>, %arg4: memref<1x128xf32, #tpu.memory_space<vmem>>, %arg5: memref<8x128xf32, #tpu.memory_space<vmem>>, %arg6: memref<8x128xf32, #tpu.memory_space<vmem>>, %arg7: memref<8x128xf32, #tpu.memory_space<vmem>>) attributes {dimension_semantics = [], scalar_prefetch = 0 : i64, scratch_operands = 2 : i64, tpu.core_type = #tpu.core_type<tc>} {
    %c0 = arith.constant 0 : index
    %c0_0 = arith.constant 0 : index
    %0 = vector.load %arg0[%c0, %c0_0] : memref<32x128xf32, #tpu.memory_space<vmem>>, vector<32x128xf32>
    %c0_1 = arith.constant 0 : index
    %c0_2 = arith.constant 0 : index
    %1 = vector.load %arg1[%c0_1, %c0_2] : memref<8x32xf32, #tpu.memory_space<vmem>>, vector<8x32xf32>
    %cst = arith.constant dense<0.000000e+00> : vector<8xf32>
    %2 = vector.multi_reduction <add>, %1, %cst [1] : vector<8x32xf32> to vector<8xf32>
    %3 = vector.shape_cast %2 : vector<8xf32> to vector<8x1xf32>
    %4 = arith.truncf %1 : vector<8x32xf32> to vector<8x32xbf16>
    %5 = arith.truncf %0 : vector<32x128xf32> to vector<32x128xbf16>
    %cst_3 = arith.constant dense<0.000000e+00> : vector<8x128xf32>
    %6 = tpu.matmul %4, %5, %cst_3 {dimension_numbers = #tpu.dot_dimension_numbers<[1], [0], [0], [1], [0, 0, 1, 1], [], []>} : vector<8x32xbf16>, vector<32x128xbf16>, vector<8x128xf32> -> vector<8x128xf32>
    %cst_4 = arith.constant 1.000000e+00 : f32
    %7 = vector.broadcast %cst_4 : f32 to vector<8x1xf32>
    %8 = arith.maximumf %3, %7 : vector<8x1xf32>
    %9 = tpu.reciprocal %8 {approx = true} : vector<8x1xf32> -> vector<8x1xf32>
    %10 = vector.broadcast %9 : vector<8x1xf32> to vector<8x128xf32>
    %11 = arith.mulf %6, %10 : vector<8x128xf32>
    %c0_5 = arith.constant 0 : index
    %c0_6 = arith.constant 0 : index
    %12 = vector.load %arg2[%c0_5, %c0_6] : memref<32x8xf32, #tpu.memory_space<vmem>>, vector<32x8xf32>
    %13 = vector.extract_strided_slice %12 {offsets = [0, 0], sizes = [32, 1], strides = [1, 1]} : vector<32x8xf32> to vector<32x1xf32>
    %cst_7 = arith.constant 0.000000e+00 : f32
    %14 = vector.broadcast %cst_7 : f32 to vector<32x1xf32>
    %15 = arith.cmpf ogt, %13, %14 : vector<32x1xf32>
    %16 = vector.shape_cast %13 : vector<32x1xf32> to vector<1x32x1xf32>
    %cst_8 = arith.constant dense<0.000000e+00> : vector<1xf32>
    %17 = vector.multi_reduction <add>, %16, %cst_8 [1, 2] : vector<1x32x1xf32> to vector<1xf32>
    %18 = vector.shape_cast %17 : vector<1xf32> to vector<1x1x1xf32>
    %19 = vector.extract %18[0, 0, 0] : f32 from vector<1x1x1xf32>
    %cst_9 = arith.constant 0.000000e+00 : f32
    %20 = arith.cmpf ogt, %19, %cst_9 : f32
    %cst_10 = arith.constant 0xFF800000 : f32
    %21 = vector.shape_cast %15 : vector<32x1xi1> to vector<32x1xi1>
    %22 = vector.broadcast %21 : vector<32x1xi1> to vector<32x128xi1>
    %23 = vector.broadcast %cst_10 : f32 to vector<32x128xf32>
    %24 = arith.select %22, %0, %23 : vector<32x128xi1>, vector<32x128xf32>
    %cst_11 = arith.constant dense<0xFF800000> : vector<128xf32>
    %25 = vector.multi_reduction <maximumf>, %24, %cst_11 [0] : vector<32x128xf32> to vector<128xf32>
    %26 = vector.shape_cast %25 : vector<128xf32> to vector<1x128xf32>
    %cst_12 = arith.constant 0x7F800000 : f32
    %27 = vector.shape_cast %15 : vector<32x1xi1> to vector<32x1xi1>
    %28 = vector.broadcast %27 : vector<32x1xi1> to vector<32x128xi1>
    %29 = vector.broadcast %cst_12 : f32 to vector<32x128xf32>
    %30 = arith.select %28, %0, %29 : vector<32x128xi1>, vector<32x128xf32>
    %cst_13 = arith.constant dense<0x7F800000> : vector<128xf32>
    %31 = vector.multi_reduction <minimumf>, %30, %cst_13 [0] : vector<32x128xf32> to vector<128xf32>
    %32 = vector.shape_cast %31 : vector<128xf32> to vector<1x128xf32>
    %cst_14 = arith.constant 0.000000e+00 : f32
    %33 = vector.broadcast %cst_14 : f32 to vector<1x128xf32>
    %34 = arith.select %20, %26, %33 : vector<1x128xf32>
    %c0_15 = arith.constant 0 : index
    %c0_16 = arith.constant 0 : index
    %35 = vector.load %arg6[%c0_15, %c0_16] : memref<8x128xf32, #tpu.memory_space<vmem>>, vector<1x128xf32>
    tpu.vector_store %arg6[%c0_15, %c0_16], %34 {strides = array<i32>} : memref<8x128xf32, #tpu.memory_space<vmem>>, vector<1x128xf32>,
    %cst_17 = arith.constant 0.000000e+00 : f32
    %36 = vector.broadcast %cst_17 : f32 to vector<1x128xf32>
    %37 = arith.select %20, %32, %36 : vector<1x128xf32>
    %c0_18 = arith.constant 0 : index
    %c0_19 = arith.constant 0 : index
    %38 = vector.load %arg7[%c0_18, %c0_19] : memref<8x128xf32, #tpu.memory_space<vmem>>, vector<1x128xf32>
    tpu.vector_store %arg7[%c0_18, %c0_19], %37 {strides = array<i32>} : memref<8x128xf32, #tpu.memory_space<vmem>>, vector<1x128xf32>,
    %39 = vector.extract_strided_slice %12 {offsets = [0, 1], sizes = [32, 1], strides = [1, 1]} : vector<32x8xf32> to vector<32x1xf32>
    %cst_20 = arith.constant 0.000000e+00 : f32
    %40 = vector.broadcast %cst_20 : f32 to vector<32x1xf32>
    %41 = arith.cmpf ogt, %39, %40 : vector<32x1xf32>
    %42 = vector.shape_cast %39 : vector<32x1xf32> to vector<1x32x1xf32>
    %cst_21 = arith.constant dense<0.000000e+00> : vector<1xf32>
    %43 = vector.multi_reduction <add>, %42, %cst_21 [1, 2] : vector<1x32x1xf32> to vector<1xf32>
    %44 = vector.shape_cast %43 : vector<1xf32> to vector<1x1x1xf32>
    %45 = vector.extract %44[0, 0, 0] : f32 from vector<1x1x1xf32>
    %cst_22 = arith.constant 0.000000e+00 : f32
    %46 = arith.cmpf ogt, %45, %cst_22 : f32
    %cst_23 = arith.constant 0xFF800000 : f32
    %47 = vector.shape_cast %41 : vector<32x1xi1> to vector<32x1xi1>
    %48 = vector.broadcast %47 : vector<32x1xi1> to vector<32x128xi1>
    %49 = vector.broadcast %cst_23 : f32 to vector<32x128xf32>
    %50 = arith.select %48, %0, %49 : vector<32x128xi1>, vector<32x128xf32>
    %cst_24 = arith.constant dense<0xFF800000> : vector<128xf32>
    %51 = vector.multi_reduction <maximumf>, %50, %cst_24 [0] : vector<32x128xf32> to vector<128xf32>
    %52 = vector.shape_cast %51 : vector<128xf32> to vector<1x128xf32>
    %cst_25 = arith.constant 0x7F800000 : f32
    %53 = vector.shape_cast %41 : vector<32x1xi1> to vector<32x1xi1>
    %54 = vector.broadcast %53 : vector<32x1xi1> to vector<32x128xi1>
    %55 = vector.broadcast %cst_25 : f32 to vector<32x128xf32>
    %56 = arith.select %54, %0, %55 : vector<32x128xi1>, vector<32x128xf32>
    %cst_26 = arith.constant dense<0x7F800000> : vector<128xf32>
    %57 = vector.multi_reduction <minimumf>, %56, %cst_26 [0] : vector<32x128xf32> to vector<128xf32>
    %58 = vector.shape_cast %57 : vector<128xf32> to vector<1x128xf32>
    %cst_27 = arith.constant 0.000000e+00 : f32
    %59 = vector.broadcast %cst_27 : f32 to vector<1x128xf32>
    %60 = arith.select %46, %52, %59 : vector<1x128xf32>
    %c1 = arith.constant 1 : index
    %c0_28 = arith.constant 0 : index
    %61 = vector.load %arg6[%c1, %c0_28] : memref<8x128xf32, #tpu.memory_space<vmem>>, vector<1x128xf32>
    tpu.vector_store %arg6[%c1, %c0_28], %60 {strides = array<i32>} : memref<8x128xf32, #tpu.memory_space<vmem>>, vector<1x128xf32>,
    %cst_29 = arith.constant 0.000000e+00 : f32
    %62 = vector.broadcast %cst_29 : f32 to vector<1x128xf32>
    %63 = arith.select %46, %58, %62 : vector<1x128xf32>
    %c1_30 = arith.constant 1 : index
    %c0_31 = arith.constant 0 : index
    %64 = vector.load %arg7[%c1_30, %c0_31] : memref<8x128xf32, #tpu.memory_space<vmem>>, vector<1x128xf32>
    tpu.vector_store %arg7[%c1_30, %c0_31], %63 {strides = array<i32>} : memref<8x128xf32, #tpu.memory_space<vmem>>, vector<1x128xf32>,
    %65 = vector.extract_strided_slice %12 {offsets = [0, 2], sizes = [32, 1], strides = [1, 1]} : vector<32x8xf32> to vector<32x1xf32>
    %cst_32 = arith.constant 0.000000e+00 : f32
    %66 = vector.broadcast %cst_32 : f32 to vector<32x1xf32>
    %67 = arith.cmpf ogt, %65, %66 : vector<32x1xf32>
    %68 = vector.shape_cast %65 : vector<32x1xf32> to vector<1x32x1xf32>
    %cst_33 = arith.constant dense<0.000000e+00> : vector<1xf32>
    %69 = vector.multi_reduction <add>, %68, %cst_33 [1, 2] : vector<1x32x1xf32> to vector<1xf32>
    %70 = vector.shape_cast %69 : vector<1xf32> to vector<1x1x1xf32>
    %71 = vector.extract %70[0, 0, 0] : f32 from vector<1x1x1xf32>
    %cst_34 = arith.constant 0.000000e+00 : f32
    %72 = arith.cmpf ogt, %71, %cst_34 : f32
    %cst_35 = arith.constant 0xFF800000 : f32
    %73 = vector.shape_cast %67 : vector<32x1xi1> to vector<32x1xi1>
    %74 = vector.broadcast %73 : vector<32x1xi1> to vector<32x128xi1>
    %75 = vector.broadcast %cst_35 : f32 to vector<32x128xf32>
    %76 = arith.select %74, %0, %75 : vector<32x128xi1>, vector<32x128xf32>
    %cst_36 = arith.constant dense<0xFF800000> : vector<128xf32>
    %77 = vector.multi_reduction <maximumf>, %76, %cst_36 [0] : vector<32x128xf32> to vector<128xf32>
    %78 = vector.shape_cast %77 : vector<128xf32> to vector<1x128xf32>
    %cst_37 = arith.constant 0x7F800000 : f32
    %79 = vector.shape_cast %67 : vector<32x1xi1> to vector<32x1xi1>
    %80 = vector.broadcast %79 : vector<32x1xi1> to vector<32x128xi1>
    %81 = vector.broadcast %cst_37 : f32 to vector<32x128xf32>
    %82 = arith.select %80, %0, %81 : vector<32x128xi1>, vector<32x128xf32>
    %cst_38 = arith.constant dense<0x7F800000> : vector<128xf32>
    %83 = vector.multi_reduction <minimumf>, %82, %cst_38 [0] : vector<32x128xf32> to vector<128xf32>
    %84 = vector.shape_cast %83 : vector<128xf32> to vector<1x128xf32>
    %cst_39 = arith.constant 0.000000e+00 : f32
    %85 = vector.broadcast %cst_39 : f32 to vector<1x128xf32>
    %86 = arith.select %72, %78, %85 : vector<1x128xf32>
    %c2 = arith.constant 2 : index
    %c0_40 = arith.constant 0 : index
    %87 = vector.load %arg6[%c2, %c0_40] : memref<8x128xf32, #tpu.memory_space<vmem>>, vector<1x128xf32>
    tpu.vector_store %arg6[%c2, %c0_40], %86 {strides = array<i32>} : memref<8x128xf32, #tpu.memory_space<vmem>>, vector<1x128xf32>,
    %cst_41 = arith.constant 0.000000e+00 : f32
    %88 = vector.broadcast %cst_41 : f32 to vector<1x128xf32>
    %89 = arith.select %72, %84, %88 : vector<1x128xf32>
    %c2_42 = arith.constant 2 : index
    %c0_43 = arith.constant 0 : index
    %90 = vector.load %arg7[%c2_42, %c0_43] : memref<8x128xf32, #tpu.memory_space<vmem>>, vector<1x128xf32>
    tpu.vector_store %arg7[%c2_42, %c0_43], %89 {strides = array<i32>} : memref<8x128xf32, #tpu.memory_space<vmem>>, vector<1x128xf32>,
    %91 = vector.extract_strided_slice %12 {offsets = [0, 3], sizes = [32, 1], strides = [1, 1]} : vector<32x8xf32> to vector<32x1xf32>
    %cst_44 = arith.constant 0.000000e+00 : f32
    %92 = vector.broadcast %cst_44 : f32 to vector<32x1xf32>
    %93 = arith.cmpf ogt, %91, %92 : vector<32x1xf32>
    %94 = vector.shape_cast %91 : vector<32x1xf32> to vector<1x32x1xf32>
    %cst_45 = arith.constant dense<0.000000e+00> : vector<1xf32>
    %95 = vector.multi_reduction <add>, %94, %cst_45 [1, 2] : vector<1x32x1xf32> to vector<1xf32>
    %96 = vector.shape_cast %95 : vector<1xf32> to vector<1x1x1xf32>
    %97 = vector.extract %96[0, 0, 0] : f32 from vector<1x1x1xf32>
    %cst_46 = arith.constant 0.000000e+00 : f32
    %98 = arith.cmpf ogt, %97, %cst_46 : f32
    %cst_47 = arith.constant 0xFF800000 : f32
    %99 = vector.shape_cast %93 : vector<32x1xi1> to vector<32x1xi1>
    %100 = vector.broadcast %99 : vector<32x1xi1> to vector<32x128xi1>
    %101 = vector.broadcast %cst_47 : f32 to vector<32x128xf32>
    %102 = arith.select %100, %0, %101 : vector<32x128xi1>, vector<32x128xf32>
    %cst_48 = arith.constant dense<0xFF800000> : vector<128xf32>
    %103 = vector.multi_reduction <maximumf>, %102, %cst_48 [0] : vector<32x128xf32> to vector<128xf32>
    %104 = vector.shape_cast %103 : vector<128xf32> to vector<1x128xf32>
    %cst_49 = arith.constant 0x7F800000 : f32
    %105 = vector.shape_cast %93 : vector<32x1xi1> to vector<32x1xi1>
    %106 = vector.broadcast %105 : vector<32x1xi1> to vector<32x128xi1>
    %107 = vector.broadcast %cst_49 : f32 to vector<32x128xf32>
    %108 = arith.select %106, %0, %107 : vector<32x128xi1>, vector<32x128xf32>
    %cst_50 = arith.constant dense<0x7F800000> : vector<128xf32>
    %109 = vector.multi_reduction <minimumf>, %108, %cst_50 [0] : vector<32x128xf32> to vector<128xf32>
    %110 = vector.shape_cast %109 : vector<128xf32> to vector<1x128xf32>
    %cst_51 = arith.constant 0.000000e+00 : f32
    %111 = vector.broadcast %cst_51 : f32 to vector<1x128xf32>
    %112 = arith.select %98, %104, %111 : vector<1x128xf32>
    %c3 = arith.constant 3 : index
    %c0_52 = arith.constant 0 : index
    %113 = vector.load %arg6[%c3, %c0_52] : memref<8x128xf32, #tpu.memory_space<vmem>>, vector<1x128xf32>
    tpu.vector_store %arg6[%c3, %c0_52], %112 {strides = array<i32>} : memref<8x128xf32, #tpu.memory_space<vmem>>, vector<1x128xf32>,
    %cst_53 = arith.constant 0.000000e+00 : f32
    %114 = vector.broadcast %cst_53 : f32 to vector<1x128xf32>
    %115 = arith.select %98, %110, %114 : vector<1x128xf32>
    %c3_54 = arith.constant 3 : index
    %c0_55 = arith.constant 0 : index
    %116 = vector.load %arg7[%c3_54, %c0_55] : memref<8x128xf32, #tpu.memory_space<vmem>>, vector<1x128xf32>
    tpu.vector_store %arg7[%c3_54, %c0_55], %115 {strides = array<i32>} : memref<8x128xf32, #tpu.memory_space<vmem>>, vector<1x128xf32>,
    %117 = vector.extract_strided_slice %12 {offsets = [0, 4], sizes = [32, 1], strides = [1, 1]} : vector<32x8xf32> to vector<32x1xf32>
    %cst_56 = arith.constant 0.000000e+00 : f32
    %118 = vector.broadcast %cst_56 : f32 to vector<32x1xf32>
    %119 = arith.cmpf ogt, %117, %118 : vector<32x1xf32>
    %120 = vector.shape_cast %117 : vector<32x1xf32> to vector<1x32x1xf32>
    %cst_57 = arith.constant dense<0.000000e+00> : vector<1xf32>
    %121 = vector.multi_reduction <add>, %120, %cst_57 [1, 2] : vector<1x32x1xf32> to vector<1xf32>
    %122 = vector.shape_cast %121 : vector<1xf32> to vector<1x1x1xf32>
    %123 = vector.extract %122[0, 0, 0] : f32 from vector<1x1x1xf32>
    %cst_58 = arith.constant 0.000000e+00 : f32
    %124 = arith.cmpf ogt, %123, %cst_58 : f32
    %cst_59 = arith.constant 0xFF800000 : f32
    %125 = vector.shape_cast %119 : vector<32x1xi1> to vector<32x1xi1>
    %126 = vector.broadcast %125 : vector<32x1xi1> to vector<32x128xi1>
    %127 = vector.broadcast %cst_59 : f32 to vector<32x128xf32>
    %128 = arith.select %126, %0, %127 : vector<32x128xi1>, vector<32x128xf32>
    %cst_60 = arith.constant dense<0xFF800000> : vector<128xf32>
    %129 = vector.multi_reduction <maximumf>, %128, %cst_60 [0] : vector<32x128xf32> to vector<128xf32>
    %130 = vector.shape_cast %129 : vector<128xf32> to vector<1x128xf32>
    %cst_61 = arith.constant 0x7F800000 : f32
    %131 = vector.shape_cast %119 : vector<32x1xi1> to vector<32x1xi1>
    %132 = vector.broadcast %131 : vector<32x1xi1> to vector<32x128xi1>
    %133 = vector.broadcast %cst_61 : f32 to vector<32x128xf32>
    %134 = arith.select %132, %0, %133 : vector<32x128xi1>, vector<32x128xf32>
    %cst_62 = arith.constant dense<0x7F800000> : vector<128xf32>
    %135 = vector.multi_reduction <minimumf>, %134, %cst_62 [0] : vector<32x128xf32> to vector<128xf32>
    %136 = vector.shape_cast %135 : vector<128xf32> to vector<1x128xf32>
    %cst_63 = arith.constant 0.000000e+00 : f32
    %137 = vector.broadcast %cst_63 : f32 to vector<1x128xf32>
    %138 = arith.select %124, %130, %137 : vector<1x128xf32>
    %c4 = arith.constant 4 : index
    %c0_64 = arith.constant 0 : index
    %139 = vector.load %arg6[%c4, %c0_64] : memref<8x128xf32, #tpu.memory_space<vmem>>, vector<1x128xf32>
    tpu.vector_store %arg6[%c4, %c0_64], %138 {strides = array<i32>} : memref<8x128xf32, #tpu.memory_space<vmem>>, vector<1x128xf32>,
    %cst_65 = arith.constant 0.000000e+00 : f32
    %140 = vector.broadcast %cst_65 : f32 to vector<1x128xf32>
    %141 = arith.select %124, %136, %140 : vector<1x128xf32>
    %c4_66 = arith.constant 4 : index
    %c0_67 = arith.constant 0 : index
    %142 = vector.load %arg7[%c4_66, %c0_67] : memref<8x128xf32, #tpu.memory_space<vmem>>, vector<1x128xf32>
    tpu.vector_store %arg7[%c4_66, %c0_67], %141 {strides = array<i32>} : memref<8x128xf32, #tpu.memory_space<vmem>>, vector<1x128xf32>,
    %143 = vector.extract_strided_slice %12 {offsets = [0, 5], sizes = [32, 1], strides = [1, 1]} : vector<32x8xf32> to vector<32x1xf32>
    %cst_68 = arith.constant 0.000000e+00 : f32
    %144 = vector.broadcast %cst_68 : f32 to vector<32x1xf32>
    %145 = arith.cmpf ogt, %143, %144 : vector<32x1xf32>
    %146 = vector.shape_cast %143 : vector<32x1xf32> to vector<1x32x1xf32>
    %cst_69 = arith.constant dense<0.000000e+00> : vector<1xf32>
    %147 = vector.multi_reduction <add>, %146, %cst_69 [1, 2] : vector<1x32x1xf32> to vector<1xf32>
    %148 = vector.shape_cast %147 : vector<1xf32> to vector<1x1x1xf32>
    %149 = vector.extract %148[0, 0, 0] : f32 from vector<1x1x1xf32>
    %cst_70 = arith.constant 0.000000e+00 : f32
    %150 = arith.cmpf ogt, %149, %cst_70 : f32
    %cst_71 = arith.constant 0xFF800000 : f32
    %151 = vector.shape_cast %145 : vector<32x1xi1> to vector<32x1xi1>
    %152 = vector.broadcast %151 : vector<32x1xi1> to vector<32x128xi1>
    %153 = vector.broadcast %cst_71 : f32 to vector<32x128xf32>
    %154 = arith.select %152, %0, %153 : vector<32x128xi1>, vector<32x128xf32>
    %cst_72 = arith.constant dense<0xFF800000> : vector<128xf32>
    %155 = vector.multi_reduction <maximumf>, %154, %cst_72 [0] : vector<32x128xf32> to vector<128xf32>
    %156 = vector.shape_cast %155 : vector<128xf32> to vector<1x128xf32>
    %cst_73 = arith.constant 0x7F800000 : f32
    %157 = vector.shape_cast %145 : vector<32x1xi1> to vector<32x1xi1>
    %158 = vector.broadcast %157 : vector<32x1xi1> to vector<32x128xi1>
    %159 = vector.broadcast %cst_73 : f32 to vector<32x128xf32>
    %160 = arith.select %158, %0, %159 : vector<32x128xi1>, vector<32x128xf32>
    %cst_74 = arith.constant dense<0x7F800000> : vector<128xf32>
    %161 = vector.multi_reduction <minimumf>, %160, %cst_74 [0] : vector<32x128xf32> to vector<128xf32>
    %162 = vector.shape_cast %161 : vector<128xf32> to vector<1x128xf32>
    %cst_75 = arith.constant 0.000000e+00 : f32
    %163 = vector.broadcast %cst_75 : f32 to vector<1x128xf32>
    %164 = arith.select %150, %156, %163 : vector<1x128xf32>
    %c5 = arith.constant 5 : index
    %c0_76 = arith.constant 0 : index
    %165 = vector.load %arg6[%c5, %c0_76] : memref<8x128xf32, #tpu.memory_space<vmem>>, vector<1x128xf32>
    tpu.vector_store %arg6[%c5, %c0_76], %164 {strides = array<i32>} : memref<8x128xf32, #tpu.memory_space<vmem>>, vector<1x128xf32>,
    %cst_77 = arith.constant 0.000000e+00 : f32
    %166 = vector.broadcast %cst_77 : f32 to vector<1x128xf32>
    %167 = arith.select %150, %162, %166 : vector<1x128xf32>
    %c5_78 = arith.constant 5 : index
    %c0_79 = arith.constant 0 : index
    %168 = vector.load %arg7[%c5_78, %c0_79] : memref<8x128xf32, #tpu.memory_space<vmem>>, vector<1x128xf32>
    tpu.vector_store %arg7[%c5_78, %c0_79], %167 {strides = array<i32>} : memref<8x128xf32, #tpu.memory_space<vmem>>, vector<1x128xf32>,
    %169 = vector.extract_strided_slice %12 {offsets = [0, 6], sizes = [32, 1], strides = [1, 1]} : vector<32x8xf32> to vector<32x1xf32>
    %cst_80 = arith.constant 0.000000e+00 : f32
    %170 = vector.broadcast %cst_80 : f32 to vector<32x1xf32>
    %171 = arith.cmpf ogt, %169, %170 : vector<32x1xf32>
    %172 = vector.shape_cast %169 : vector<32x1xf32> to vector<1x32x1xf32>
    %cst_81 = arith.constant dense<0.000000e+00> : vector<1xf32>
    %173 = vector.multi_reduction <add>, %172, %cst_81 [1, 2] : vector<1x32x1xf32> to vector<1xf32>
    %174 = vector.shape_cast %173 : vector<1xf32> to vector<1x1x1xf32>
    %175 = vector.extract %174[0, 0, 0] : f32 from vector<1x1x1xf32>
    %cst_82 = arith.constant 0.000000e+00 : f32
    %176 = arith.cmpf ogt, %175, %cst_82 : f32
    %cst_83 = arith.constant 0xFF800000 : f32
    %177 = vector.shape_cast %171 : vector<32x1xi1> to vector<32x1xi1>
    %178 = vector.broadcast %177 : vector<32x1xi1> to vector<32x128xi1>
    %179 = vector.broadcast %cst_83 : f32 to vector<32x128xf32>
    %180 = arith.select %178, %0, %179 : vector<32x128xi1>, vector<32x128xf32>
    %cst_84 = arith.constant dense<0xFF800000> : vector<128xf32>
    %181 = vector.multi_reduction <maximumf>, %180, %cst_84 [0] : vector<32x128xf32> to vector<128xf32>
    %182 = vector.shape_cast %181 : vector<128xf32> to vector<1x128xf32>
    %cst_85 = arith.constant 0x7F800000 : f32
    %183 = vector.shape_cast %171 : vector<32x1xi1> to vector<32x1xi1>
    %184 = vector.broadcast %183 : vector<32x1xi1> to vector<32x128xi1>
    %185 = vector.broadcast %cst_85 : f32 to vector<32x128xf32>
    %186 = arith.select %184, %0, %185 : vector<32x128xi1>, vector<32x128xf32>
    %cst_86 = arith.constant dense<0x7F800000> : vector<128xf32>
    %187 = vector.multi_reduction <minimumf>, %186, %cst_86 [0] : vector<32x128xf32> to vector<128xf32>
    %188 = vector.shape_cast %187 : vector<128xf32> to vector<1x128xf32>
    %cst_87 = arith.constant 0.000000e+00 : f32
    %189 = vector.broadcast %cst_87 : f32 to vector<1x128xf32>
    %190 = arith.select %176, %182, %189 : vector<1x128xf32>
    %c6 = arith.constant 6 : index
    %c0_88 = arith.constant 0 : index
    %191 = vector.load %arg6[%c6, %c0_88] : memref<8x128xf32, #tpu.memory_space<vmem>>, vector<1x128xf32>
    tpu.vector_store %arg6[%c6, %c0_88], %190 {strides = array<i32>} : memref<8x128xf32, #tpu.memory_space<vmem>>, vector<1x128xf32>,
    %cst_89 = arith.constant 0.000000e+00 : f32
    %192 = vector.broadcast %cst_89 : f32 to vector<1x128xf32>
    %193 = arith.select %176, %188, %192 : vector<1x128xf32>
    %c6_90 = arith.constant 6 : index
    %c0_91 = arith.constant 0 : index
    %194 = vector.load %arg7[%c6_90, %c0_91] : memref<8x128xf32, #tpu.memory_space<vmem>>, vector<1x128xf32>
    tpu.vector_store %arg7[%c6_90, %c0_91], %193 {strides = array<i32>} : memref<8x128xf32, #tpu.memory_space<vmem>>, vector<1x128xf32>,
    %195 = vector.extract_strided_slice %12 {offsets = [0, 7], sizes = [32, 1], strides = [1, 1]} : vector<32x8xf32> to vector<32x1xf32>
    %cst_92 = arith.constant 0.000000e+00 : f32
    %196 = vector.broadcast %cst_92 : f32 to vector<32x1xf32>
    %197 = arith.cmpf ogt, %195, %196 : vector<32x1xf32>
    %198 = vector.shape_cast %195 : vector<32x1xf32> to vector<1x32x1xf32>
    %cst_93 = arith.constant dense<0.000000e+00> : vector<1xf32>
    %199 = vector.multi_reduction <add>, %198, %cst_93 [1, 2] : vector<1x32x1xf32> to vector<1xf32>
    %200 = vector.shape_cast %199 : vector<1xf32> to vector<1x1x1xf32>
    %201 = vector.extract %200[0, 0, 0] : f32 from vector<1x1x1xf32>
    %cst_94 = arith.constant 0.000000e+00 : f32
    %202 = arith.cmpf ogt, %201, %cst_94 : f32
    %cst_95 = arith.constant 0xFF800000 : f32
    %203 = vector.shape_cast %197 : vector<32x1xi1> to vector<32x1xi1>
    %204 = vector.broadcast %203 : vector<32x1xi1> to vector<32x128xi1>
    %205 = vector.broadcast %cst_95 : f32 to vector<32x128xf32>
    %206 = arith.select %204, %0, %205 : vector<32x128xi1>, vector<32x128xf32>
    %cst_96 = arith.constant dense<0xFF800000> : vector<128xf32>
    %207 = vector.multi_reduction <maximumf>, %206, %cst_96 [0] : vector<32x128xf32> to vector<128xf32>
    %208 = vector.shape_cast %207 : vector<128xf32> to vector<1x128xf32>
    %cst_97 = arith.constant 0x7F800000 : f32
    %209 = vector.shape_cast %197 : vector<32x1xi1> to vector<32x1xi1>
    %210 = vector.broadcast %209 : vector<32x1xi1> to vector<32x128xi1>
    %211 = vector.broadcast %cst_97 : f32 to vector<32x128xf32>
    %212 = arith.select %210, %0, %211 : vector<32x128xi1>, vector<32x128xf32>
    %cst_98 = arith.constant dense<0x7F800000> : vector<128xf32>
    %213 = vector.multi_reduction <minimumf>, %212, %cst_98 [0] : vector<32x128xf32> to vector<128xf32>
    %214 = vector.shape_cast %213 : vector<128xf32> to vector<1x128xf32>
    %cst_99 = arith.constant 0.000000e+00 : f32
    %215 = vector.broadcast %cst_99 : f32 to vector<1x128xf32>
    %216 = arith.select %202, %208, %215 : vector<1x128xf32>
    %c7 = arith.constant 7 : index
    %c0_100 = arith.constant 0 : index
    %217 = vector.load %arg6[%c7, %c0_100] : memref<8x128xf32, #tpu.memory_space<vmem>>, vector<1x128xf32>
    tpu.vector_store %arg6[%c7, %c0_100], %216 {strides = array<i32>} : memref<8x128xf32, #tpu.memory_space<vmem>>, vector<1x128xf32>,
    %cst_101 = arith.constant 0.000000e+00 : f32
    %218 = vector.broadcast %cst_101 : f32 to vector<1x128xf32>
    %219 = arith.select %202, %214, %218 : vector<1x128xf32>
    %c7_102 = arith.constant 7 : index
    %c0_103 = arith.constant 0 : index
    %220 = vector.load %arg7[%c7_102, %c0_103] : memref<8x128xf32, #tpu.memory_space<vmem>>, vector<1x128xf32>
    tpu.vector_store %arg7[%c7_102, %c0_103], %219 {strides = array<i32>} : memref<8x128xf32, #tpu.memory_space<vmem>>, vector<1x128xf32>,
    %c0_104 = arith.constant 0 : index
    %c0_105 = arith.constant 0 : index
    %221 = vector.load %arg6[%c0_104, %c0_105] : memref<8x128xf32, #tpu.memory_space<vmem>>, vector<8x128xf32>
    %c0_106 = arith.constant 0 : index
    %c0_107 = arith.constant 0 : index
    %222 = vector.load %arg7[%c0_106, %c0_107] : memref<8x128xf32, #tpu.memory_space<vmem>>, vector<8x128xf32>
    %223 = tpu.concatenate %221, %222, %11 in 1 : vector<8x128xf32>, vector<8x128xf32>, vector<8x128xf32> -> vector<8x384xf32>
    %224 = arith.truncf %223 : vector<8x384xf32> to vector<8x384xbf16>
    %c0_108 = arith.constant 0 : index
    %c0_109 = arith.constant 0 : index
    %225 = vector.load %arg3[%c0_108, %c0_109] : memref<384x128xbf16, #tpu.memory_space<vmem>>, vector<384x128xbf16>
    %cst_110 = arith.constant dense<0.000000e+00> : vector<8x128xf32>
    %226 = tpu.matmul %224, %225, %cst_110 {dimension_numbers = #tpu.dot_dimension_numbers<[1], [0], [0], [1], [0, 0, 1, 1], [], []>} : vector<8x384xbf16>, vector<384x128xbf16>, vector<8x128xf32> -> vector<8x128xf32>
    %c0_111 = arith.constant 0 : index
    %c0_112 = arith.constant 0 : index
    %227 = vector.load %arg4[%c0_111, %c0_112] : memref<1x128xf32, #tpu.memory_space<vmem>>, vector<1x128xf32>
    %228 = vector.broadcast %227 : vector<1x128xf32> to vector<8x128xf32>
    %229 = arith.addf %226, %228 : vector<8x128xf32>
    %c0_113 = arith.constant 0 : index
    %c0_114 = arith.constant 0 : index
    %230 = vector.load %arg5[%c0_113, %c0_114] : memref<8x128xf32, #tpu.memory_space<vmem>>, vector<8x128xf32>
    tpu.vector_store %arg5[%c0_113, %c0_114], %229 {strides = array<i32>} : memref<8x128xf32, #tpu.memory_space<vmem>>, vector<8x128xf32>,
    return
  }
}

module attributes {stable_mosaic.version = 11 : i64} {
  func.func @_gen_elu_stack_kernel(%arg0: i32, %arg1: memref<8x256xf32, #tpu.memory_space<vmem>>, %arg2: memref<8x8xbf16, #tpu.memory_space<vmem>>, %arg3: memref<8x1xf32, #tpu.memory_space<vmem>>, %arg4: memref<256x128xbf16, #tpu.memory_space<vmem>>, %arg5: memref<128x128xbf16, #tpu.memory_space<vmem>>, %arg6: memref<8x128xf32, #tpu.memory_space<vmem>>, %arg7: memref<1x128x128xbf16, #tpu.memory_space<vmem>>, %arg8: memref<1x128x128xbf16, #tpu.memory_space<vmem>>, %arg9: memref<1x8x128xf32, #tpu.memory_space<vmem>>, %arg10: memref<8x128xf32, #tpu.memory_space<vmem>>) attributes {dimension_semantics = [#tpu.dimension_semantics<arbitrary>], iteration_bounds = array<i64: 10>, scalar_prefetch = 0 : i64, scratch_operands = 0 : i64, tpu.core_type = #tpu.core_type<tc>, window_params = [{pipeline_mode = #tpu.pipeline_mode<synchronous>, transform_indices = @transform_0, window_bounds = array<i64: 8, 256>}, {pipeline_mode = #tpu.pipeline_mode<synchronous>, transform_indices = @transform_1, window_bounds = array<i64: 8, 8>}, {pipeline_mode = #tpu.pipeline_mode<synchronous>, transform_indices = @transform_2, window_bounds = array<i64: 8, 1>}, {pipeline_mode = #tpu.pipeline_mode<synchronous>, transform_indices = @transform_3, window_bounds = array<i64: 256, 128>}, {pipeline_mode = #tpu.pipeline_mode<synchronous>, transform_indices = @transform_4, window_bounds = array<i64: 128, 128>}, {pipeline_mode = #tpu.pipeline_mode<synchronous>, transform_indices = @transform_5, window_bounds = array<i64: 8, 128>}, {transform_indices = @transform_6, window_bounds = array<i64: 1, 128, 128>}, {transform_indices = @transform_7, window_bounds = array<i64: 1, 128, 128>}, {transform_indices = @transform_8, window_bounds = array<i64: 1, 8, 128>}, {pipeline_mode = #tpu.pipeline_mode<synchronous>, transform_indices = @transform_9, window_bounds = array<i64: 8, 128>}]} {
    %c0 = arith.constant 0 : index
    %c0_0 = arith.constant 0 : index
    %0 = vector.load %arg2[%c0, %c0_0] : memref<8x8xbf16, #tpu.memory_space<vmem>>, vector<8x8xbf16>
    %c0_1 = arith.constant 0 : index
    %c0_2 = arith.constant 0 : index
    %1 = vector.load %arg3[%c0_1, %c0_2] : memref<8x1xf32, #tpu.memory_space<vmem>>, vector<8x1xf32>
    %c0_i32 = arith.constant 0 : i32
    %2 = arith.cmpi eq, %arg0, %c0_i32 : i32
    %3 = arith.extui %2 : i1 to i32
    %c0_i32_3 = arith.constant 0 : i32
    %4 = arith.cmpi ne, %3, %c0_i32_3 : i32
    scf.if %4 {
      %c0_22 = arith.constant 0 : index
      %c0_23 = arith.constant 0 : index
      %42 = vector.load %arg6[%c0_22, %c0_23] : memref<8x128xf32, #tpu.memory_space<vmem>>, vector<8x128xf32>
      %c0_24 = arith.constant 0 : index
      %c0_25 = arith.constant 0 : index
      %43 = vector.load %arg1[%c0_24, %c0_25] : memref<8x256xf32, #tpu.memory_space<vmem>>, vector<8x256xf32>
      %44 = arith.truncf %43 : vector<8x256xf32> to vector<8x256xbf16>
      %c0_26 = arith.constant 0 : index
      %c0_27 = arith.constant 0 : index
      %45 = vector.load %arg4[%c0_26, %c0_27] : memref<256x128xbf16, #tpu.memory_space<vmem>>, vector<256x128xbf16>
      %cst_28 = arith.constant dense<0.000000e+00> : vector<8x128xf32>
      %46 = tpu.matmul %44, %45, %cst_28 {dimension_numbers = #tpu.dot_dimension_numbers<[1], [0], [0], [1], [0, 0, 1, 1], [], []>} : vector<8x256xbf16>, vector<256x128xbf16>, vector<8x128xf32> -> vector<8x128xf32>
      %47 = vector.extract_strided_slice %42 {offsets = [0, 0], sizes = [1, 128], strides = [1, 1]} : vector<8x128xf32> to vector<1x128xf32>
      %48 = vector.broadcast %47 : vector<1x128xf32> to vector<8x128xf32>
      %49 = arith.addf %46, %48 : vector<8x128xf32>
      %50 = vector.extract_strided_slice %42 {offsets = [1, 0], sizes = [1, 128], strides = [1, 1]} : vector<8x128xf32> to vector<1x128xf32>
      %cst_29 = arith.constant 0.000000e+00 : f32
      %51 = vector.broadcast %cst_29 : f32 to vector<8x128xf32>
      %52 = arith.cmpf oge, %49, %51 : vector<8x128xf32>
      %53 = vector.broadcast %50 : vector<1x128xf32> to vector<8x128xf32>
      %54 = arith.mulf %53, %49 : vector<8x128xf32>
      %55 = arith.select %52, %49, %54 : vector<8x128xi1>, vector<8x128xf32>
      %56 = arith.truncf %55 : vector<8x128xf32> to vector<8x128xbf16>
      %c0_30 = arith.constant 0 : index
      %c0_31 = arith.constant 0 : index
      %57 = vector.load %arg5[%c0_30, %c0_31] : memref<128x128xbf16, #tpu.memory_space<vmem>>, vector<128x128xbf16>
      %cst_32 = arith.constant dense<0.000000e+00> : vector<8x128xf32>
      %58 = tpu.matmul %56, %57, %cst_32 {dimension_numbers = #tpu.dot_dimension_numbers<[1], [0], [0], [1], [0, 0, 1, 1], [], []>} : vector<8x128xbf16>, vector<128x128xbf16>, vector<8x128xf32> -> vector<8x128xf32>
      %59 = vector.extract_strided_slice %42 {offsets = [2, 0], sizes = [1, 128], strides = [1, 1]} : vector<8x128xf32> to vector<1x128xf32>
      %60 = vector.broadcast %59 : vector<1x128xf32> to vector<8x128xf32>
      %61 = arith.addf %58, %60 : vector<8x128xf32>
      %62 = vector.extract_strided_slice %42 {offsets = [3, 0], sizes = [1, 128], strides = [1, 1]} : vector<8x128xf32> to vector<1x128xf32>
      %63 = vector.broadcast %62 : vector<1x128xf32> to vector<8x128xf32>
      %64 = arith.mulf %61, %63 : vector<8x128xf32>
      %65 = vector.extract_strided_slice %42 {offsets = [4, 0], sizes = [1, 128], strides = [1, 1]} : vector<8x128xf32> to vector<1x128xf32>
      %66 = vector.broadcast %65 : vector<1x128xf32> to vector<8x128xf32>
      %67 = arith.addf %64, %66 : vector<8x128xf32>
      %c0_33 = arith.constant 0 : index
      %c0_34 = arith.constant 0 : index
      %68 = vector.load %arg10[%c0_33, %c0_34] : memref<8x128xf32, #tpu.memory_space<vmem>>, vector<8x128xf32>
      tpu.vector_store %arg10[%c0_33, %c0_34], %67 {strides = array<i32>} : memref<8x128xf32, #tpu.memory_space<vmem>>, vector<8x128xf32>,
    } else {
    }
    %c0_4 = arith.constant 0 : index
    %c0_5 = arith.constant 0 : index
    %c0_6 = arith.constant 0 : index
    %5 = vector.load %arg9[%c0_4, %c0_5, %c0_6] : memref<1x8x128xf32, #tpu.memory_space<vmem>>, vector<1x8x128xf32>
    %6 = vector.shape_cast %5 : vector<1x8x128xf32> to vector<8x128xf32>
    %c0_7 = arith.constant 0 : index
    %c0_8 = arith.constant 0 : index
    %7 = vector.load %arg10[%c0_7, %c0_8] : memref<8x128xf32, #tpu.memory_space<vmem>>, vector<8x128xf32>
    %8 = arith.truncf %7 : vector<8x128xf32> to vector<8x128xbf16>
    %cst = arith.constant dense<0.000000e+00> : vector<8x128xf32>
    %9 = tpu.matmul %0, %8, %cst {dimension_numbers = #tpu.dot_dimension_numbers<[1], [0], [0], [1], [0, 0, 1, 1], [], []>} : vector<8x8xbf16>, vector<8x128xbf16>, vector<8x128xf32> -> vector<8x128xf32>
    %10 = vector.broadcast %1 : vector<8x1xf32> to vector<8x128xf32>
    %11 = arith.mulf %9, %10 : vector<8x128xf32>
    %12 = arith.addf %7, %11 : vector<8x128xf32>
    %c0_9 = arith.constant 0 : index
    %c0_10 = arith.constant 0 : index
    %c0_11 = arith.constant 0 : index
    %13 = vector.load %arg7[%c0_9, %c0_10, %c0_11] : memref<1x128x128xbf16, #tpu.memory_space<vmem>>, vector<1x128x128xbf16>
    %14 = vector.shape_cast %13 : vector<1x128x128xbf16> to vector<128x128xbf16>
    %15 = vector.extract_strided_slice %6 {offsets = [0, 0], sizes = [1, 128], strides = [1, 1]} : vector<8x128xf32> to vector<1x128xf32>
    %16 = vector.extract_strided_slice %6 {offsets = [1, 0], sizes = [1, 128], strides = [1, 1]} : vector<8x128xf32> to vector<1x128xf32>
    %17 = vector.extract_strided_slice %6 {offsets = [2, 0], sizes = [1, 128], strides = [1, 1]} : vector<8x128xf32> to vector<1x128xf32>
    %c0_12 = arith.constant 0 : index
    %c0_13 = arith.constant 0 : index
    %c0_14 = arith.constant 0 : index
    %18 = vector.load %arg8[%c0_12, %c0_13, %c0_14] : memref<1x128x128xbf16, #tpu.memory_space<vmem>>, vector<1x128x128xbf16>
    %19 = vector.shape_cast %18 : vector<1x128x128xbf16> to vector<128x128xbf16>
    %20 = vector.extract_strided_slice %6 {offsets = [3, 0], sizes = [1, 128], strides = [1, 1]} : vector<8x128xf32> to vector<1x128xf32>
    %21 = arith.truncf %12 : vector<8x128xf32> to vector<8x128xbf16>
    %cst_15 = arith.constant dense<0.000000e+00> : vector<8x128xf32>
    %22 = tpu.matmul %21, %14, %cst_15 {dimension_numbers = #tpu.dot_dimension_numbers<[1], [0], [0], [1], [0, 0, 1, 1], [], []>} : vector<8x128xbf16>, vector<128x128xbf16>, vector<8x128xf32> -> vector<8x128xf32>
    %23 = vector.broadcast %15 : vector<1x128xf32> to vector<8x128xf32>
    %24 = arith.addf %22, %23 : vector<8x128xf32>
    %25 = vector.broadcast %16 : vector<1x128xf32> to vector<8x128xf32>
    %26 = arith.mulf %24, %25 : vector<8x128xf32>
    %27 = vector.broadcast %17 : vector<1x128xf32> to vector<8x128xf32>
    %28 = arith.addf %26, %27 : vector<8x128xf32>
    %cst_16 = arith.constant 0.000000e+00 : f32
    %29 = vector.broadcast %cst_16 : f32 to vector<8x128xf32>
    %30 = arith.maximumf %28, %29 : vector<8x128xf32>
    %31 = arith.truncf %30 : vector<8x128xf32> to vector<8x128xbf16>
    %cst_17 = arith.constant dense<0.000000e+00> : vector<8x128xf32>
    %32 = tpu.matmul %31, %19, %cst_17 {dimension_numbers = #tpu.dot_dimension_numbers<[1], [0], [0], [1], [0, 0, 1, 1], [], []>} : vector<8x128xbf16>, vector<128x128xbf16>, vector<8x128xf32> -> vector<8x128xf32>
    %33 = vector.broadcast %20 : vector<1x128xf32> to vector<8x128xf32>
    %34 = arith.addf %32, %33 : vector<8x128xf32>
    %cst_18 = arith.constant 0.000000e+00 : f32
    %35 = vector.broadcast %cst_18 : f32 to vector<8x128xf32>
    %36 = arith.cmpf ogt, %34, %35 : vector<8x128xf32>
    %37 = math.exp %34 : vector<8x128xf32>
    %cst_19 = arith.constant 1.000000e+00 : f32
    %38 = vector.broadcast %cst_19 : f32 to vector<8x128xf32>
    %39 = arith.subf %37, %38 : vector<8x128xf32>
    %40 = arith.select %36, %34, %39 : vector<8x128xi1>, vector<8x128xf32>
    %c0_20 = arith.constant 0 : index
    %c0_21 = arith.constant 0 : index
    %41 = vector.load %arg10[%c0_20, %c0_21] : memref<8x128xf32, #tpu.memory_space<vmem>>, vector<8x128xf32>
    tpu.vector_store %arg10[%c0_20, %c0_21], %40 {strides = array<i32>} : memref<8x128xf32, #tpu.memory_space<vmem>>, vector<8x128xf32>,
    return
  }
  func.func @transform_0(%arg0: i32) -> (i32, i32) {
    %c0_i32 = arith.constant 0 : i32
    %c0_i32_0 = arith.constant 0 : i32
    %c0_i32_1 = arith.constant 0 : i32
    return %c0_i32, %c0_i32_0 : i32, i32
  }
  func.func @transform_1(%arg0: i32) -> (i32, i32) {
    %c0_i32 = arith.constant 0 : i32
    %c0_i32_0 = arith.constant 0 : i32
    %c0_i32_1 = arith.constant 0 : i32
    return %c0_i32, %c0_i32_0 : i32, i32
  }
  func.func @transform_2(%arg0: i32) -> (i32, i32) {
    %c0_i32 = arith.constant 0 : i32
    %c0_i32_0 = arith.constant 0 : i32
    %c0_i32_1 = arith.constant 0 : i32
    return %c0_i32, %c0_i32_0 : i32, i32
  }
  func.func @transform_3(%arg0: i32) -> (i32, i32) {
    %c0_i32 = arith.constant 0 : i32
    %c0_i32_0 = arith.constant 0 : i32
    %c0_i32_1 = arith.constant 0 : i32
    return %c0_i32, %c0_i32_0 : i32, i32
  }
  func.func @transform_4(%arg0: i32) -> (i32, i32) {
    %c0_i32 = arith.constant 0 : i32
    %c0_i32_0 = arith.constant 0 : i32
    %c0_i32_1 = arith.constant 0 : i32
    return %c0_i32, %c0_i32_0 : i32, i32
  }
  func.func @transform_5(%arg0: i32) -> (i32, i32) {
    %c0_i32 = arith.constant 0 : i32
    %c0_i32_0 = arith.constant 0 : i32
    %c0_i32_1 = arith.constant 0 : i32
    return %c0_i32, %c0_i32_0 : i32, i32
  }
  func.func @transform_6(%arg0: i32) -> (i32, i32, i32) {
    %c0_i32 = arith.constant 0 : i32
    %c0_i32_0 = arith.constant 0 : i32
    %c0_i32_1 = arith.constant 0 : i32
    return %arg0, %c0_i32, %c0_i32_0 : i32, i32, i32
  }
  func.func @transform_7(%arg0: i32) -> (i32, i32, i32) {
    %c0_i32 = arith.constant 0 : i32
    %c0_i32_0 = arith.constant 0 : i32
    %c0_i32_1 = arith.constant 0 : i32
    return %arg0, %c0_i32, %c0_i32_0 : i32, i32, i32
  }
  func.func @transform_8(%arg0: i32) -> (i32, i32, i32) {
    %c0_i32 = arith.constant 0 : i32
    %c0_i32_0 = arith.constant 0 : i32
    %c0_i32_1 = arith.constant 0 : i32
    return %arg0, %c0_i32, %c0_i32_0 : i32, i32, i32
  }
  func.func @transform_9(%arg0: i32) -> (i32, i32) {
    %c0_i32 = arith.constant 0 : i32
    %c0_i32_0 = arith.constant 0 : i32
    %c0_i32_1 = arith.constant 0 : i32
    return %c0_i32, %c0_i32_0 : i32, i32
  }
}

</mosaic_0001>

<llo_original>
// kernel: drug_encoder_forward.4
$region0: #{drug_encoder_forward.4}
  #allocation0 [shape = 'u32[]', space=smem, size = 0x4, offset = 0x4, fixed_abs, tag = 'smem constant byte address 0x4 - core index']
  #allocation1 [shape = 'u32[72,128]{1,0:T(1,128)}', space=vmem, size = 0x9000, scoped, tag = 'internal scratch']
  #allocation2 [shape = 'f32[8,128]{1,0:T(8,128)}', space=vmem, size = 0x1000, scoped, tag = 'scratch operand']
  #allocation3 [shape = 'f32[8,128]{1,0:T(8,128)}', space=vmem, size = 0x1000, scoped, tag = 'scratch operand']
  %s0 = inlined_call_operand.vmem [shape: f32[32,128], index: 0, kind: input, shape index: {}]
  %s1 = inlined_call_operand.vmem [shape: f32[8,32], index: 1, kind: input, shape index: {}]
  %s2 = inlined_call_operand.vmem [shape: f32[32,8], index: 2, kind: input, shape index: {}]
  %s3 = inlined_call_operand.vmem [shape: bf16[384,128], index: 3, kind: input, shape index: {}]
  %s4 = inlined_call_operand.vmem [shape: f32[1,128], index: 4, kind: input, shape index: {}]
  %s5 = inlined_call_operand.vmem [shape: f32[8,128], index: 5, kind: output, shape index: {}]
  %s6 = sld [smem:[#allocation0]]
  $region30: #{drug_encoder_forward.4} parent=0
    _
  %s8 = ssub.s32 1, %s6
  %s9 = scalar_select 0, %s8, %s6
  // Predicated region
  $region2: #{drug_encoder_forward.4} parent=0 // pred_check
    _
  $region3: #{drug_encoder_forward.4} parent=0 // pred_check_branch
    %11 = sbr.rel (0) target = $region5
  $region4: #{drug_encoder_forward.4} parent=0 // pred_region
    _
  $region5: #{drug_encoder_forward.4} parent=0 // pred_fallthru
    _
  // Predicated region
  $region6: #{drug_encoder_forward.4} parent=0 // pred_check
    _
  $region7: #{drug_encoder_forward.4} parent=0 // pred_check_branch
    %13 = sbr.rel (0) target = $region9
  $region8: #{drug_encoder_forward.4} parent=0 // pred_region
    _
  $region9: #{drug_encoder_forward.4} parent=0 // pred_fallthru
    _
  // Predicated region
  $region10: #{drug_encoder_forward.4} parent=0 // pred_check
    _
  $region11: #{drug_encoder_forward.4} parent=0 // pred_check_branch
    %15 = sbr.rel (0) target = $region13
  $region12: #{drug_encoder_forward.4} parent=0 // pred_region
    _
  $region13: #{drug_encoder_forward.4} parent=0 // pred_fallthru
    _
  // Predicated region
  $region14: #{drug_encoder_forward.4} parent=0 // pred_check
    _
  $region15: #{drug_encoder_forward.4} parent=0 // pred_check_branch
    %17 = sbr.rel (0) target = $region17
  $region16: #{drug_encoder_forward.4} parent=0 // pred_region
    _
  $region17: #{drug_encoder_forward.4} parent=0 // pred_fallthru
    _
  // Predicated region
  $region18: #{drug_encoder_forward.4} parent=0 // pred_check
    _
  $region19: #{drug_encoder_forward.4} parent=0 // pred_check_branch
    %19 = sbr.rel (0) target = $region21
  $region20: #{drug_encoder_forward.4} parent=0 // pred_region
    _
  $region21: #{drug_encoder_forward.4} parent=0 // pred_fallthru
    _
  %v21 = vld [vmem:[%s0] sm:$0xff]
  %v22 = vld [vmem:[%s0 + $0x8] sm:$0xff]
  %v23 = vld [vmem:[%s0 + $0x10] sm:$0xff]
  %v24 = vld [vmem:[%s0 + $0x18] sm:$0xff]
  %v25 = vld [vmem:[%s1] sm:$0xff]
  %vm26 = vcmask 261120
  %v27 = vsel %vm26, %v25, 0.0
  %28 = vadd.xlane.f32.xlu0 %v27
  %v29 = vpop.xlane.xlu0 %28
  %v30 = vpack.c.bf16 %v25, %v25
  %v31 = vpack.c.bf16 %v22, %v21
  %v32 = vpack.c.bf16 %v24, %v23
  %v34 = vsel %vm26, %v30, 0
  %36 = vmatpush.bf16.msra.mxu0 0
  %37 = vmatpush.bf16.msra.mxu0 0
  %38 = vmatpush.bf16.msra.mxu0 0
  %39 = vmatpush.bf16.msra.mxu0 0
  %40 = vmatpush.bf16.msra.mxu0 0
  %41 = vmatpush.bf16.msra.mxu0 0
  %42 = vmatpush.bf16.msra.mxu0 %v32
  %43 = vmatpush.bf16.msra.mxu0 %v31
  %44 = vmatmul.bf16.gmra.mxu0 %v34
  %v45 = vpop.f32.mrf.mxu0
  %v46 = vadd.f32 0.0, %v45
  %v47 = vpop.f32.mrf.mxu0
  %48 = vdwg.mxu0
  %v49 = vmax.f32 %v29, 1.0
  %v50 = vrcp.pop %v49
  %v51 = vmul.f32 %v46, %v50
  %v52 = vld [vmem:[%s2] sm:$0xff]
  %v53 = vld [vmem:[%s2 + $0x8] sm:$0xff]
  %v54 = vld [vmem:[%s2 + $0x10] sm:$0xff]
  %v55 = vld [vmem:[%s2 + $0x18] sm:$0xff]
  %vm56 = vcmp.gt.f32.partialorder %v52, 0.0
  %vm57 = vcmp.gt.f32.partialorder %v53, 0.0
  %vm58 = vcmp.gt.f32.partialorder %v54, 0.0
  %vm59 = vcmp.gt.f32.partialorder %v55, 0.0
  %vm60 = vcmask 7168
  %v61 = vsel %vm60, %v52, 0.0
  %v62 = vsel %vm60, %v53, 0.0
  %v63 = vadd.f32 %v61, %v62
  %v64 = vsel %vm60, %v54, 0.0
  %v65 = vadd.f32 %v63, %v64
  %v66 = vsel %vm60, %v55, 0.0
  %v67 = vadd.f32 %v65, %v66
  %68 = vadd.xlane.f32.xlu0 %v67
  %v69 = vpop.xlane.xlu0 %68
  %v70 = vrot.slane %v69, 4
  %v71 = vadd.f32 %v69, %v70
  %v72 = vrot.slane %v71, 2
  %v73 = vadd.f32 %v71, %v72
  %v74 = vrot.slane %v73, 1
  %v75 = vadd.f32 %v73, %v74
  %s76 = vtos %v75
  %p77 = scmp.gt.f32.partialorder %s76, 0.0
  %v78 = vsel %vm56, 1, 0
  %v79 = vsel %vm57, 1, 0
  %v80 = vsel %vm58, 1, 0
  %v81 = vsel %vm59, 1, 0
  %82 = vset.pattern.permute.xlu0 0
  %83 = vperm.xlu0 %82, %v78
  %v84 = vpop.permute.xlu0 %83
  %85 = vset.pattern.permute.xlu0 0
  %86 = vperm.xlu0 %85, %v79
  %v87 = vpop.permute.xlu0 %86
  %88 = vset.pattern.permute.xlu0 0
  %89 = vperm.xlu0 %88, %v80
  %v90 = vpop.permute.xlu0 %89
  %91 = vset.pattern.permute.xlu0 0
  %92 = vperm.xlu0 %91, %v81
  %v93 = vpop.permute.xlu0 %92
  %vm94 = vcmp.eq.s32.totalorder %v84, 1
  %vm95 = vcmp.eq.s32.totalorder %v87, 1
  %vm96 = vcmp.eq.s32.totalorder %v90, 1
  %vm97 = vcmp.eq.s32.totalorder %v93, 1
  %v98 = vsel %vm94, %v21, -inf
  %v99 = vsel %vm95, %v22, -inf
  %v100 = vsel %vm96, %v23, -inf
  %v101 = vsel %vm97, %v24, -inf
  %v102 = vmax.f32 %v98, %v99
  %v103 = vmax.f32 %v100, %v101
  %v104 = vmax.f32 %v102, %v103
  %v105 = vrot.slane %v104, 4
  %v106 = vmax.f32 %v104, %v105
  %v107 = vrot.slane %v106, 2
  %v108 = vmax.f32 %v106, %v107
  %v109 = vrot.slane %v108, 1
  %v110 = vmax.f32 %v108, %v109
  %v111 = vsel %vm94, %v21, inf
  %v112 = vsel %vm95, %v22, inf
  %v113 = vsel %vm96, %v23, inf
  %v114 = vsel %vm97, %v24, inf
  %v115 = vmin.f32 %v111, %v112
  %v116 = vmin.f32 %v113, %v114
  %v117 = vmin.f32 %v115, %v116
  %v118 = vrot.slane %v117, 4
  %v119 = vmin.f32 %v117, %v118
  %v120 = vrot.slane %v119, 2
  %v121 = vmin.f32 %v119, %v120
  %v122 = vrot.slane %v121, 1
  %v123 = vmin.f32 %v121, %v122
  %s124 = scalar_select %p77, 1, 0
  %v125 = vstv %s124
  %vm126 = vcmp.eq.s32.totalorder %v125, 1
  %v127 = vsel %vm126, %v110, 0.0
  %128 = vst [vmem:[#allocation2] sm:$0x1] %v127
  %v129 = vsel %vm126, %v123, 0.0
  %130 = vst [vmem:[#allocation3] sm:$0x1] %v129
  %135 = vrot.lane.b32.xlu0 %v52, 127
  %v136 = vpop.permute.xlu0 %135
  %137 = vrot.lane.b32.xlu0 %v53, 127
  %v138 = vpop.permute.xlu0 %137
  %139 = vrot.lane.b32.xlu0 %v54, 127
  %v140 = vpop.permute.xlu0 %139
  %141 = vrot.lane.b32.xlu0 %v55, 127
  %v142 = vpop.permute.xlu0 %141
  %v147 = vsel %vm60, %v136, 0.0
  %v148 = vsel %vm60, %v138, 0.0
  %v149 = vadd.f32 %v147, %v148
  %v150 = vsel %vm60, %v140, 0.0
  %v151 = vadd.f32 %v149, %v150
  %v152 = vsel %vm60, %v142, 0.0
  %v153 = vadd.f32 %v151, %v152
  %154 = vadd.xlane.f32.xlu0 %v153
  %v155 = vpop.xlane.xlu0 %154
  %v156 = vrot.slane %v155, 4
  %v157 = vadd.f32 %v155, %v156
  %v158 = vrot.slane %v157, 2
  %v159 = vadd.f32 %v157, %v158
  %v160 = vrot.slane %v159, 1
  %v161 = vadd.f32 %v159, %v160
  %s162 = vtos %v161
  %p163 = scmp.gt.f32.partialorder %s162, 0.0
  %164 = vset.pattern.permute.xlu0 1
  %165 = vperm.xlu0 %164, %v78
  %v166 = vpop.permute.xlu0 %165
  %167 = vset.pattern.permute.xlu0 1
  %168 = vperm.xlu0 %167, %v79
  %v169 = vpop.permute.xlu0 %168
  %170 = vset.pattern.permute.xlu0 1
  %171 = vperm.xlu0 %170, %v80
  %v172 = vpop.permute.xlu0 %171
  %173 = vset.pattern.permute.xlu0 1
  %174 = vperm.xlu0 %173, %v81
  %v175 = vpop.permute.xlu0 %174
  %vm176 = vcmp.eq.s32.totalorder %v166, 1
  %vm177 = vcmp.eq.s32.totalorder %v169, 1
  %vm178 = vcmp.eq.s32.totalorder %v172, 1
  %vm179 = vcmp.eq.s32.totalorder %v175, 1
  %v180 = vsel %vm176, %v21, -inf
  %v181 = vsel %vm177, %v22, -inf
  %v182 = vsel %vm178, %v23, -inf
  %v183 = vsel %vm179, %v24, -inf
  %v184 = vmax.f32 %v180, %v181
  %v185 = vmax.f32 %v182, %v183
  %v186 = vmax.f32 %v184, %v185
  %v187 = vrot.slane %v186, 4
  %v188 = vmax.f32 %v186, %v187
  %v189 = vrot.slane %v188, 2
  %v190 = vmax.f32 %v188, %v189
  %v191 = vrot.slane %v190, 1
  %v192 = vmax.f32 %v190, %v191
  %v193 = vsel %vm176, %v21, inf
  %v194 = vsel %vm177, %v22, inf
  %v195 = vsel %vm178, %v23, inf
  %v196 = vsel %vm179, %v24, inf
  %v197 = vmin.f32 %v193, %v194
  %v198 = vmin.f32 %v195, %v196
  %v199 = vmin.f32 %v197, %v198
  %v200 = vrot.slane %v199, 4
  %v201 = vmin.f32 %v199, %v200
  %v202 = vrot.slane %v201, 2
  %v203 = vmin.f32 %v201, %v202
  %v204 = vrot.slane %v203, 1
  %v205 = vmin.f32 %v203, %v204
  %s206 = scalar_select %p163, 1, 0
  %v207 = vstv %s206
  %vm208 = vcmp.eq.s32.totalorder %v207, 1
  %v209 = vsel %vm208, %v192, 0.0
  %210 = vst [vmem:[#allocation2 + $0x1] sm:$0x1] %v209
  %v211 = vsel %vm208, %v205, 0.0
  %212 = vst [vmem:[#allocation3 + $0x1] sm:$0x1] %v211
  %213 = vrot.lane.b32.xlu0 %v52, 126
  %v214 = vpop.permute.xlu0 %213
  %215 = vrot.lane.b32.xlu0 %v53, 126
  %v216 = vpop.permute.xlu0 %215
  %217 = vrot.lane.b32.xlu0 %v54, 126
  %v218 = vpop.permute.xlu0 %217
  %219 = vrot.lane.b32.xlu0 %v55, 126
  %v220 = vpop.permute.xlu0 %219
  %v225 = vsel %vm60, %v214, 0.0
  %v226 = vsel %vm60, %v216, 0.0
  %v227 = vadd.f32 %v225, %v226
  %v228 = vsel %vm60, %v218, 0.0
  %v229 = vadd.f32 %v227, %v228
  %v230 = vsel %vm60, %v220, 0.0
  %v231 = vadd.f32 %v229, %v230
  %232 = vadd.xlane.f32.xlu0 %v231
  %v233 = vpop.xlane.xlu0 %232
  %v234 = vrot.slane %v233, 4
  %v235 = vadd.f32 %v233, %v234
  %v236 = vrot.slane %v235, 2
  %v237 = vadd.f32 %v235, %v236
  %v238 = vrot.slane %v237, 1
  %v239 = vadd.f32 %v237, %v238
  %s240 = vtos %v239
  %p241 = scmp.gt.f32.partialorder %s240, 0.0
  %242 = vset.pattern.permute.xlu0 2
  %243 = vperm.xlu0 %242, %v78
  %v244 = vpop.permute.xlu0 %243
  %245 = vset.pattern.permute.xlu0 2
  %246 = vperm.xlu0 %245, %v79
  %v247 = vpop.permute.xlu0 %246
  %248 = vset.pattern.permute.xlu0 2
  %249 = vperm.xlu0 %248, %v80
  %v250 = vpop.permute.xlu0 %249
  %251 = vset.pattern.permute.xlu0 2
  %252 = vperm.xlu0 %251, %v81
  %v253 = vpop.permute.xlu0 %252
  %vm254 = vcmp.eq.s32.totalorder %v244, 1
  %vm255 = vcmp.eq.s32.totalorder %v247, 1
  %vm256 = vcmp.eq.s32.totalorder %v250, 1
  %vm257 = vcmp.eq.s32.totalorder %v253, 1
  %v258 = vsel %vm254, %v21, -inf
  %v259 = vsel %vm255, %v22, -inf
  %v260 = vsel %vm256, %v23, -inf
  %v261 = vsel %vm257, %v24, -inf
  %v262 = vmax.f32 %v258, %v259
  %v263 = vmax.f32 %v260, %v261
  %v264 = vmax.f32 %v262, %v263
  %v265 = vrot.slane %v264, 4
  %v266 = vmax.f32 %v264, %v265
  %v267 = vrot.slane %v266, 2
  %v268 = vmax.f32 %v266, %v267
  %v269 = vrot.slane %v268, 1
  %v270 = vmax.f32 %v268, %v269
  %v271 = vsel %vm254, %v21, inf
  %v272 = vsel %vm255, %v22, inf
  %v273 = vsel %vm256, %v23, inf
  %v274 = vsel %vm257, %v24, inf
  %v275 = vmin.f32 %v271, %v272
  %v276 = vmin.f32 %v273, %v274
  %v277 = vmin.f32 %v275, %v276
  %v278 = vrot.slane %v277, 4
  %v279 = vmin.f32 %v277, %v278
  %v280 = vrot.slane %v279, 2
  %v281 = vmin.f32 %v279, %v280
  %v282 = vrot.slane %v281, 1
  %v283 = vmin.f32 %v281, %v282
  %s284 = scalar_select %p241, 1, 0
  %v285 = vstv %s284
  %vm286 = vcmp.eq.s32.totalorder %v285, 1
  %v287 = vsel %vm286, %v270, 0.0
  %288 = vst [vmem:[#allocation2 + $0x2] sm:$0x1] %v287
  %v289 = vsel %vm286, %v283, 0.0
  %290 = vst [vmem:[#allocation3 + $0x2] sm:$0x1] %v289
  %291 = vrot.lane.b32.xlu0 %v52, 125
  %v292 = vpop.permute.xlu0 %291
  %293 = vrot.lane.b32.xlu0 %v53, 125
  %v294 = vpop.permute.xlu0 %293
  %295 = vrot.lane.b32.xlu0 %v54, 125
  %v296 = vpop.permute.xlu0 %295
  %297 = vrot.lane.b32.xlu0 %v55, 125
  %v298 = vpop.permute.xlu0 %297
  %v303 = vsel %vm60, %v292, 0.0
  %v304 = vsel %vm60, %v294, 0.0
  %v305 = vadd.f32 %v303, %v304
  %v306 = vsel %vm60, %v296, 0.0
  %v307 = vadd.f32 %v305, %v306
  %v308 = vsel %vm60, %v298, 0.0
  %v309 = vadd.f32 %v307, %v308
  %310 = vadd.xlane.f32.xlu0 %v309
  %v311 = vpop.xlane.xlu0 %310
  %v312 = vrot.slane %v311, 4
  %v313 = vadd.f32 %v311, %v312
  %v314 = vrot.slane %v313, 2
  %v315 = vadd.f32 %v313, %v314
  %v316 = vrot.slane %v315, 1
  %v317 = vadd.f32 %v315, %v316
  %s318 = vtos %v317
  %p319 = scmp.gt.f32.partialorder %s318, 0.0
  %320 = vset.pattern.permute.xlu0 3
  %321 = vperm.xlu0 %320, %v78
  %v322 = vpop.permute.xlu0 %321
  %323 = vset.pattern.permute.xlu0 3
  %324 = vperm.xlu0 %323, %v79
  %v325 = vpop.permute.xlu0 %324
  %326 = vset.pattern.permute.xlu0 3
  %327 = vperm.xlu0 %326, %v80
  %v328 = vpop.permute.xlu0 %327
  %329 = vset.pattern.permute.xlu0 3
  %330 = vperm.xlu0 %329, %v81
  %v331 = vpop.permute.xlu0 %330
  %vm332 = vcmp.eq.s32.totalorder %v322, 1
  %vm333 = vcmp.eq.s32.totalorder %v325, 1
  %vm334 = vcmp.eq.s32.totalorder %v328, 1
  %vm335 = vcmp.eq.s32.totalorder %v331, 1
  %v336 = vsel %vm332, %v21, -inf
  %v337 = vsel %vm333, %v22, -inf
  %v338 = vsel %vm334, %v23, -inf
  %v339 = vsel %vm335, %v24, -inf
  %v340 = vmax.f32 %v336, %v337
  %v341 = vmax.f32 %v338, %v339
  %v342 = vmax.f32 %v340, %v341
  %v343 = vrot.slane %v342, 4
  %v344 = vmax.f32 %v342, %v343
  %v345 = vrot.slane %v344, 2
  %v346 = vmax.f32 %v344, %v345
  %v347 = vrot.slane %v346, 1
  %v348 = vmax.f32 %v346, %v347
  %v349 = vsel %vm332, %v21, inf
  %v350 = vsel %vm333, %v22, inf
  %v351 = vsel %vm334, %v23, inf
  %v352 = vsel %vm335, %v24, inf
  %v353 = vmin.f32 %v349, %v350
  %v354 = vmin.f32 %v351, %v352
  %v355 = vmin.f32 %v353, %v354
  %v356 = vrot.slane %v355, 4
  %v357 = vmin.f32 %v355, %v356
  %v358 = vrot.slane %v357, 2
  %v359 = vmin.f32 %v357, %v358
  %v360 = vrot.slane %v359, 1
  %v361 = vmin.f32 %v359, %v360
  %s362 = scalar_select %p319, 1, 0
  %v363 = vstv %s362
  %vm364 = vcmp.eq.s32.totalorder %v363, 1
  %v365 = vsel %vm364, %v348, 0.0
  %366 = vst [vmem:[#allocation2 + $0x3] sm:$0x1] %v365
  %v367 = vsel %vm364, %v361, 0.0
  %368 = vst [vmem:[#allocation3 + $0x3] sm:$0x1] %v367
  %369 = vrot.lane.b32.xlu0 %v52, 124
  %v370 = vpop.permute.xlu0 %369
  %371 = vrot.lane.b32.xlu0 %v53, 124
  %v372 = vpop.permute.xlu0 %371
  %373 = vrot.lane.b32.xlu0 %v54, 124
  %v374 = vpop.permute.xlu0 %373
  %375 = vrot.lane.b32.xlu0 %v55, 124
  %v376 = vpop.permute.xlu0 %375
  %v381 = vsel %vm60, %v370, 0.0
  %v382 = vsel %vm60, %v372, 0.0
  %v383 = vadd.f32 %v381, %v382
  %v384 = vsel %vm60, %v374, 0.0
  %v385 = vadd.f32 %v383, %v384
  %v386 = vsel %vm60, %v376, 0.0
  %v387 = vadd.f32 %v385, %v386
  %388 = vadd.xlane.f32.xlu0 %v387
  %v389 = vpop.xlane.xlu0 %388
  %v390 = vrot.slane %v389, 4
  %v391 = vadd.f32 %v389, %v390
  %v392 = vrot.slane %v391, 2
  %v393 = vadd.f32 %v391, %v392
  %v394 = vrot.slane %v393, 1
  %v395 = vadd.f32 %v393, %v394
  %s396 = vtos %v395
  %p397 = scmp.gt.f32.partialorder %s396, 0.0
  %398 = vset.pattern.permute.xlu0 4
  %399 = vperm.xlu0 %398, %v78
  %v400 = vpop.permute.xlu0 %399
  %401 = vset.pattern.permute.xlu0 4
  %402 = vperm.xlu0 %401, %v79
  %v403 = vpop.permute.xlu0 %402
  %404 = vset.pattern.permute.xlu0 4
  %405 = vperm.xlu0 %404, %v80
  %v406 = vpop.permute.xlu0 %405
  %407 = vset.pattern.permute.xlu0 4
  %408 = vperm.xlu0 %407, %v81
  %v409 = vpop.permute.xlu0 %408
  %vm410 = vcmp.eq.s32.totalorder %v400, 1
  %vm411 = vcmp.eq.s32.totalorder %v403, 1
  %vm412 = vcmp.eq.s32.totalorder %v406, 1
  %vm413 = vcmp.eq.s32.totalorder %v409, 1
  %v414 = vsel %vm410, %v21, -inf
  %v415 = vsel %vm411, %v22, -inf
  %v416 = vsel %vm412, %v23, -inf
  %v417 = vsel %vm413, %v24, -inf
  %v418 = vmax.f32 %v414, %v415
  %v419 = vmax.f32 %v416, %v417
  %v420 = vmax.f32 %v418, %v419
  %v421 = vrot.slane %v420, 4
  %v422 = vmax.f32 %v420, %v421
  %v423 = vrot.slane %v422, 2
  %v424 = vmax.f32 %v422, %v423
  %v425 = vrot.slane %v424, 1
  %v426 = vmax.f32 %v424, %v425
  %v427 = vsel %vm410, %v21, inf
  %v428 = vsel %vm411, %v22, inf
  %v429 = vsel %vm412, %v23, inf
  %v430 = vsel %vm413, %v24, inf
  %v431 = vmin.f32 %v427, %v428
  %v432 = vmin.f32 %v429, %v430
  %v433 = vmin.f32 %v431, %v432
  %v434 = vrot.slane %v433, 4
  %v435 = vmin.f32 %v433, %v434
  %v436 = vrot.slane %v435, 2
  %v437 = vmin.f32 %v435, %v436
  %v438 = vrot.slane %v437, 1
  %v439 = vmin.f32 %v437, %v438
  %s440 = scalar_select %p397, 1, 0
  %v441 = vstv %s440
  %vm442 = vcmp.eq.s32.totalorder %v441, 1
  %v443 = vsel %vm442, %v426, 0.0
  %444 = vst [vmem:[#allocation2 + $0x4] sm:$0x1] %v443
  %v445 = vsel %vm442, %v439, 0.0
  %446 = vst [vmem:[#allocation3 + $0x4] sm:$0x1] %v445
  %447 = vrot.lane.b32.xlu0 %v52, 123
  %v448 = vpop.permute.xlu0 %447
  %449 = vrot.lane.b32.xlu0 %v53, 123
  %v450 = vpop.permute.xlu0 %449
  %451 = vrot.lane.b32.xlu0 %v54, 123
  %v452 = vpop.permute.xlu0 %451
  %453 = vrot.lane.b32.xlu0 %v55, 123
  %v454 = vpop.permute.xlu0 %453
  %v459 = vsel %vm60, %v448, 0.0
  %v460 = vsel %vm60, %v450, 0.0
  %v461 = vadd.f32 %v459, %v460
  %v462 = vsel %vm60, %v452, 0.0
  %v463 = vadd.f32 %v461, %v462
  %v464 = vsel %vm60, %v454, 0.0
  %v465 = vadd.f32 %v463, %v464
  %466 = vadd.xlane.f32.xlu0 %v465
  %v467 = vpop.xlane.xlu0 %466
  %v468 = vrot.slane %v467, 4
  %v469 = vadd.f32 %v467, %v468
  %v470 = vrot.slane %v469, 2
  %v471 = vadd.f32 %v469, %v470
  %v472 = vrot.slane %v471, 1
  %v473 = vadd.f32 %v471, %v472
  %s474 = vtos %v473
  %p475 = scmp.gt.f32.partialorder %s474, 0.0
  %476 = vset.pattern.permute.xlu0 5
  %477 = vperm.xlu0 %476, %v78
  %v478 = vpop.permute.xlu0 %477
  %479 = vset.pattern.permute.xlu0 5
  %480 = vperm.xlu0 %479, %v79
  %v481 = vpop.permute.xlu0 %480
  %482 = vset.pattern.permute.xlu0 5
  %483 = vperm.xlu0 %482, %v80
  %v484 = vpop.permute.xlu0 %483
  %485 = vset.pattern.permute.xlu0 5
  %486 = vperm.xlu0 %485, %v81
  %v487 = vpop.permute.xlu0 %486
  %vm488 = vcmp.eq.s32.totalorder %v478, 1
  %vm489 = vcmp.eq.s32.totalorder %v481, 1
  %vm490 = vcmp.eq.s32.totalorder %v484, 1
  %vm491 = vcmp.eq.s32.totalorder %v487, 1
  %v492 = vsel %vm488, %v21, -inf
  %v493 = vsel %vm489, %v22, -inf
  %v494 = vsel %vm490, %v23, -inf
  %v495 = vsel %vm491, %v24, -inf
  %v496 = vmax.f32 %v492, %v493
  %v497 = vmax.f32 %v494, %v495
  %v498 = vmax.f32 %v496, %v497
  %v499 = vrot.slane %v498, 4
  %v500 = vmax.f32 %v498, %v499
  %v501 = vrot.slane %v500, 2
  %v502 = vmax.f32 %v500, %v501
  %v503 = vrot.slane %v502, 1
  %v504 = vmax.f32 %v502, %v503
  %v505 = vsel %vm488, %v21, inf
  %v506 = vsel %vm489, %v22, inf
  %v507 = vsel %vm490, %v23, inf
  %v508 = vsel %vm491, %v24, inf
  %v509 = vmin.f32 %v505, %v506
  %v510 = vmin.f32 %v507, %v508
  %v511 = vmin.f32 %v509, %v510
  %v512 = vrot.slane %v511, 4
  %v513 = vmin.f32 %v511, %v512
  %v514 = vrot.slane %v513, 2
  %v515 = vmin.f32 %v513, %v514
  %v516 = vrot.slane %v515, 1
  %v517 = vmin.f32 %v515, %v516
  %s518 = scalar_select %p475, 1, 0
  %v519 = vstv %s518
  %vm520 = vcmp.eq.s32.totalorder %v519, 1
  %v521 = vsel %vm520, %v504, 0.0
  %522 = vst [vmem:[#allocation2 + $0x5] sm:$0x1] %v521
  %v523 = vsel %vm520, %v517, 0.0
  %524 = vst [vmem:[#allocation3 + $0x5] sm:$0x1] %v523
  %525 = vrot.lane.b32.xlu0 %v52, 122
  %v526 = vpop.permute.xlu0 %525
  %527 = vrot.lane.b32.xlu0 %v53, 122
  %v528 = vpop.permute.xlu0 %527
  %529 = vrot.lane.b32.xlu0 %v54, 122
  %v530 = vpop.permute.xlu0 %529
  %531 = vrot.lane.b32.xlu0 %v55, 122
  %v532 = vpop.permute.xlu0 %531
  %v537 = vsel %vm60, %v526, 0.0
  %v538 = vsel %vm60, %v528, 0.0
  %v539 = vadd.f32 %v537, %v538
  %v540 = vsel %vm60, %v530, 0.0
  %v541 = vadd.f32 %v539, %v540
  %v542 = vsel %vm60, %v532, 0.0
  %v543 = vadd.f32 %v541, %v542
  %544 = vadd.xlane.f32.xlu0 %v543
  %v545 = vpop.xlane.xlu0 %544
  %v546 = vrot.slane %v545, 4
  %v547 = vadd.f32 %v545, %v546
  %v548 = vrot.slane %v547, 2
  %v549 = vadd.f32 %v547, %v548
  %v550 = vrot.slane %v549, 1
  %v551 = vadd.f32 %v549, %v550
  %s552 = vtos %v551
  %p553 = scmp.gt.f32.partialorder %s552, 0.0
  %554 = vset.pattern.permute.xlu0 6
  %555 = vperm.xlu0 %554, %v78
  %v556 = vpop.permute.xlu0 %555
  %557 = vset.pattern.permute.xlu0 6
  %558 = vperm.xlu0 %557, %v79
  %v559 = vpop.permute.xlu0 %558
  %560 = vset.pattern.permute.xlu0 6
  %561 = vperm.xlu0 %560, %v80
  %v562 = vpop.permute.xlu0 %561
  %563 = vset.pattern.permute.xlu0 6
  %564 = vperm.xlu0 %563, %v81
  %v565 = vpop.permute.xlu0 %564
  %vm566 = vcmp.eq.s32.totalorder %v556, 1
  %vm567 = vcmp.eq.s32.totalorder %v559, 1
  %vm568 = vcmp.eq.s32.totalorder %v562, 1
  %vm569 = vcmp.eq.s32.totalorder %v565, 1
  %v570 = vsel %vm566, %v21, -inf
  %v571 = vsel %vm567, %v22, -inf
  %v572 = vsel %vm568, %v23, -inf
  %v573 = vsel %vm569, %v24, -inf
  %v574 = vmax.f32 %v570, %v571
  %v575 = vmax.f32 %v572, %v573
  %v576 = vmax.f32 %v574, %v575
  %v577 = vrot.slane %v576, 4
  %v578 = vmax.f32 %v576, %v577
  %v579 = vrot.slane %v578, 2
  %v580 = vmax.f32 %v578, %v579
  %v581 = vrot.slane %v580, 1
  %v582 = vmax.f32 %v580, %v581
  %v583 = vsel %vm566, %v21, inf
  %v584 = vsel %vm567, %v22, inf
  %v585 = vsel %vm568, %v23, inf
  %v586 = vsel %vm569, %v24, inf
  %v587 = vmin.f32 %v583, %v584
  %v588 = vmin.f32 %v585, %v586
  %v589 = vmin.f32 %v587, %v588
  %v590 = vrot.slane %v589, 4
  %v591 = vmin.f32 %v589, %v590
  %v592 = vrot.slane %v591, 2
  %v593 = vmin.f32 %v591, %v592
  %v594 = vrot.slane %v593, 1
  %v595 = vmin.f32 %v593, %v594
  %s596 = scalar_select %p553, 1, 0
  %v597 = vstv %s596
  %vm598 = vcmp.eq.s32.totalorder %v597, 1
  %v599 = vsel %vm598, %v582, 0.0
  %600 = vst [vmem:[#allocation2 + $0x6] sm:$0x1] %v599
  %v601 = vsel %vm598, %v595, 0.0
  %602 = vst [vmem:[#allocation3 + $0x6] sm:$0x1] %v601
  %603 = vrot.lane.b32.xlu0 %v52, 121
  %v604 = vpop.permute.xlu0 %603
  %605 = vrot.lane.b32.xlu0 %v53, 121
  %v606 = vpop.permute.xlu0 %605
  %607 = vrot.lane.b32.xlu0 %v54, 121
  %v608 = vpop.permute.xlu0 %607
  %609 = vrot.lane.b32.xlu0 %v55, 121
  %v610 = vpop.permute.xlu0 %609
  %v615 = vsel %vm60, %v604, 0.0
  %v616 = vsel %vm60, %v606, 0.0
  %v617 = vadd.f32 %v615, %v616
  %v618 = vsel %vm60, %v608, 0.0
  %v619 = vadd.f32 %v617, %v618
  %v620 = vsel %vm60, %v610, 0.0
  %v621 = vadd.f32 %v619, %v620
  %622 = vadd.xlane.f32.xlu0 %v621
  %v623 = vpop.xlane.xlu0 %622
  %v624 = vrot.slane %v623, 4
  %v625 = vadd.f32 %v623, %v624
  %v626 = vrot.slane %v625, 2
  %v627 = vadd.f32 %v625, %v626
  %v628 = vrot.slane %v627, 1
  %v629 = vadd.f32 %v627, %v628
  %s630 = vtos %v629
  %p631 = scmp.gt.f32.partialorder %s630, 0.0
  %632 = vset.pattern.permute.xlu0 7
  %633 = vperm.xlu0 %632, %v78
  %v634 = vpop.permute.xlu0 %633
  %635 = vset.pattern.permute.xlu0 7
  %636 = vperm.xlu0 %635, %v79
  %v637 = vpop.permute.xlu0 %636
  %638 = vset.pattern.permute.xlu0 7
  %639 = vperm.xlu0 %638, %v80
  %v640 = vpop.permute.xlu0 %639
  %641 = vset.pattern.permute.xlu0 7
  %642 = vperm.xlu0 %641, %v81
  %v643 = vpop.permute.xlu0 %642
  %vm644 = vcmp.eq.s32.totalorder %v634, 1
  %vm645 = vcmp.eq.s32.totalorder %v637, 1
  %vm646 = vcmp.eq.s32.totalorder %v640, 1
  %vm647 = vcmp.eq.s32.totalorder %v643, 1
  %v648 = vsel %vm644, %v21, -inf
  %v649 = vsel %vm645, %v22, -inf
  %v650 = vsel %vm646, %v23, -inf
  %v651 = vsel %vm647, %v24, -inf
  %v652 = vmax.f32 %v648, %v649
  %v653 = vmax.f32 %v650, %v651
  %v654 = vmax.f32 %v652, %v653
  %v655 = vrot.slane %v654, 4
  %v656 = vmax.f32 %v654, %v655
  %v657 = vrot.slane %v656, 2
  %v658 = vmax.f32 %v656, %v657
  %v659 = vrot.slane %v658, 1
  %v660 = vmax.f32 %v658, %v659
  %v661 = vsel %vm644, %v21, inf
  %v662 = vsel %vm645, %v22, inf
  %v663 = vsel %vm646, %v23, inf
  %v664 = vsel %vm647, %v24, inf
  %v665 = vmin.f32 %v661, %v662
  %v666 = vmin.f32 %v663, %v664
  %v667 = vmin.f32 %v665, %v666
  %v668 = vrot.slane %v667, 4
  %v669 = vmin.f32 %v667, %v668
  %v670 = vrot.slane %v669, 2
  %v671 = vmin.f32 %v669, %v670
  %v672 = vrot.slane %v671, 1
  %v673 = vmin.f32 %v671, %v672
  %s674 = scalar_select %p631, 1, 0
  %v675 = vstv %s674
  %vm676 = vcmp.eq.s32.totalorder %v675, 1
  %v677 = vsel %vm676, %v660, 0.0
  %678 = vst [vmem:[#allocation2 + $0x7] sm:$0x1] %v677
  %v679 = vsel %vm676, %v673, 0.0
  %680 = vst [vmem:[#allocation3 + $0x7] sm:$0x1] %v679
  %v681 = vld [vmem:[#allocation2] sm:$0xff]
  %v682 = vld [vmem:[#allocation3] sm:$0xff]
  %v683 = vpack.c.bf16 %v681, %v681
  %v684 = vpack.c.bf16 %v682, %v682
  %v685 = vpack.c.bf16 %v51, %v51
  %v686 = vld [vmem:[%s3] sm:$0xf]
  %v687 = vld [vmem:[%s3 + $0x4] sm:$0xf]
  %v688 = vld [vmem:[%s3 + $0x8] sm:$0xf]
  %v689 = vld [vmem:[%s3 + $0xc] sm:$0xf]
  %v690 = vld [vmem:[%s3 + $0x10] sm:$0xf]
  %v691 = vld [vmem:[%s3 + $0x14] sm:$0xf]
  %v692 = vld [vmem:[%s3 + $0x18] sm:$0xf]
  %v693 = vld [vmem:[%s3 + $0x1c] sm:$0xf]
  %v694 = vld [vmem:[%s3 + $0x20] sm:$0xf]
  %v695 = vld [vmem:[%s3 + $0x24] sm:$0xf]
  %v696 = vld [vmem:[%s3 + $0x28] sm:$0xf]
  %v697 = vld [vmem:[%s3 + $0x2c] sm:$0xf]
  %v698 = vld [vmem:[%s3 + $0x30] sm:$0xf]
  %v699 = vld [vmem:[%s3 + $0x34] sm:$0xf]
  %v700 = vld [vmem:[%s3 + $0x38] sm:$0xf]
  %v701 = vld [vmem:[%s3 + $0x3c] sm:$0xf]
  %v702 = vld [vmem:[%s3 + $0x40] sm:$0xf]
  %v703 = vld [vmem:[%s3 + $0x44] sm:$0xf]
  %v704 = vld [vmem:[%s3 + $0x48] sm:$0xf]
  %v705 = vld [vmem:[%s3 + $0x4c] sm:$0xf]
  %v706 = vld [vmem:[%s3 + $0x50] sm:$0xf]
  %v707 = vld [vmem:[%s3 + $0x54] sm:$0xf]
  %v708 = vld [vmem:[%s3 + $0x58] sm:$0xf]
  %v709 = vld [vmem:[%s3 + $0x5c] sm:$0xf]
  %v710 = vld [vmem:[%s3 + $0x60] sm:$0xf]
  %v711 = vld [vmem:[%s3 + $0x64] sm:$0xf]
  %v712 = vld [vmem:[%s3 + $0x68] sm:$0xf]
  %v713 = vld [vmem:[%s3 + $0x6c] sm:$0xf]
  %v714 = vld [vmem:[%s3 + $0x70] sm:$0xf]
  %v715 = vld [vmem:[%s3 + $0x74] sm:$0xf]
  %v716 = vld [vmem:[%s3 + $0x78] sm:$0xf]
  %v717 = vld [vmem:[%s3 + $0x7c] sm:$0xf]
  %v718 = vld [vmem:[%s3 + $0x80] sm:$0xf]
  %v719 = vld [vmem:[%s3 + $0x84] sm:$0xf]
  %v720 = vld [vmem:[%s3 + $0x88] sm:$0xf]
  %v721 = vld [vmem:[%s3 + $0x8c] sm:$0xf]
  %v722 = vld [vmem:[%s3 + $0x90] sm:$0xf]
  %v723 = vld [vmem:[%s3 + $0x94] sm:$0xf]
  %v724 = vld [vmem:[%s3 + $0x98] sm:$0xf]
  %v725 = vld [vmem:[%s3 + $0x9c] sm:$0xf]
  %v726 = vld [vmem:[%s3 + $0xa0] sm:$0xf]
  %v727 = vld [vmem:[%s3 + $0xa4] sm:$0xf]
  %v728 = vld [vmem:[%s3 + $0xa8] sm:$0xf]
  %v729 = vld [vmem:[%s3 + $0xac] sm:$0xf]
  %v730 = vld [vmem:[%s3 + $0xb0] sm:$0xf]
  %v731 = vld [vmem:[%s3 + $0xb4] sm:$0xf]
  %v732 = vld [vmem:[%s3 + $0xb8] sm:$0xf]
  %v733 = vld [vmem:[%s3 + $0xbc] sm:$0xf]
  %v734 = vld [vmem:[%s4] sm:$0x1]
  %v736 = vperm.slane %v734, 0
  %v786 = vunpack.c.l.b16 %v686
  %v787 = vunpack.c.l.b16 %v687
  %v788 = vunpack.c.l.b16 %v688
  %v789 = vunpack.c.l.b16 %v689
  %v790 = vunpack.c.l.b16 %v690
  %v791 = vunpack.c.l.b16 %v691
  %v792 = vunpack.c.l.b16 %v692
  %v793 = vunpack.c.l.b16 %v693
  %v794 = vunpack.c.l.b16 %v694
  %v795 = vunpack.c.l.b16 %v695
  %v796 = vunpack.c.l.b16 %v696
  %v797 = vunpack.c.l.b16 %v697
  %v798 = vunpack.c.l.b16 %v698
  %v799 = vunpack.c.l.b16 %v699
  %v800 = vunpack.c.l.b16 %v700
  %v801 = vunpack.c.l.b16 %v701
  %v802 = vunpack.c.l.b16 %v702
  %v803 = vunpack.c.l.b16 %v703
  %v804 = vunpack.c.l.b16 %v704
  %v805 = vunpack.c.l.b16 %v705
  %v806 = vunpack.c.l.b16 %v706
  %v807 = vunpack.c.l.b16 %v707
  %v808 = vunpack.c.l.b16 %v708
  %v809 = vunpack.c.l.b16 %v709
  %v810 = vunpack.c.l.b16 %v710
  %v811 = vunpack.c.l.b16 %v711
  %v812 = vunpack.c.l.b16 %v712
  %v813 = vunpack.c.l.b16 %v713
  %v814 = vunpack.c.l.b16 %v714
  %v815 = vunpack.c.l.b16 %v715
  %v816 = vunpack.c.l.b16 %v716
  %v817 = vunpack.c.l.b16 %v717
  %v818 = vunpack.c.l.b16 %v718
  %v819 = vunpack.c.l.b16 %v719
  %v820 = vunpack.c.l.b16 %v720
  %v821 = vunpack.c.l.b16 %v721
  %v822 = vunpack.c.l.b16 %v722
  %v823 = vunpack.c.l.b16 %v723
  %v824 = vunpack.c.l.b16 %v724
  %v825 = vunpack.c.l.b16 %v725
  %v826 = vunpack.c.l.b16 %v726
  %v827 = vunpack.c.l.b16 %v727
  %v828 = vunpack.c.l.b16 %v728
  %v829 = vunpack.c.l.b16 %v729
  %v830 = vunpack.c.l.b16 %v730
  %v831 = vunpack.c.l.b16 %v731
  %v832 = vunpack.c.l.b16 %v732
  %v833 = vunpack.c.l.b16 %v733
  %v834 = vpack.c.b16 %v787, %v786
  %v835 = vpack.c.b16 %v789, %v788
  %v836 = vpack.c.b16 %v791, %v790
  %v837 = vpack.c.b16 %v793, %v792
  %v838 = vpack.c.b16 %v795, %v794
  %v839 = vpack.c.b16 %v797, %v796
  %v840 = vpack.c.b16 %v799, %v798
  %v841 = vpack.c.b16 %v801, %v800
  %v842 = vpack.c.b16 %v803, %v802
  %v843 = vpack.c.b16 %v805, %v804
  %v844 = vpack.c.b16 %v807, %v806
  %v845 = vpack.c.b16 %v809, %v808
  %v846 = vpack.c.b16 %v811, %v810
  %v847 = vpack.c.b16 %v813, %v812
  %v848 = vpack.c.b16 %v815, %v814
  %v849 = vpack.c.b16 %v817, %v816
  %v850 = vpack.c.b16 %v819, %v818
  %v851 = vpack.c.b16 %v821, %v820
  %v852 = vpack.c.b16 %v823, %v822
  %v853 = vpack.c.b16 %v825, %v824
  %v854 = vpack.c.b16 %v827, %v826
  %v855 = vpack.c.b16 %v829, %v828
  %v856 = vpack.c.b16 %v831, %v830
  %v857 = vpack.c.b16 %v833, %v832
  %882 = vmatpush.bf16.msra.mxu0 %v841
  %883 = vmatpush.bf16.msra.mxu0 %v840
  %884 = vmatpush.bf16.msra.mxu0 %v839
  %885 = vmatpush.bf16.msra.mxu0 %v838
  %886 = vmatpush.bf16.msra.mxu0 %v837
  %887 = vmatpush.bf16.msra.mxu0 %v836
  %888 = vmatpush.bf16.msra.mxu0 %v835
  %889 = vmatpush.bf16.msra.mxu0 %v834
  %890 = vmatmul.bf16.gmra.mxu0 %v683
  %v891 = vpop.f32.mrf.mxu0
  %v892 = vadd.f32 %v736, %v891
  %v893 = vpop.f32.mrf.mxu0
  %894 = vdwg.mxu0
  %895 = vmatpush.bf16.msra.mxu0 %v849
  %896 = vmatpush.bf16.msra.mxu0 %v848
  %897 = vmatpush.bf16.msra.mxu0 %v847
  %898 = vmatpush.bf16.msra.mxu0 %v846
  %899 = vmatpush.bf16.msra.mxu0 %v845
  %900 = vmatpush.bf16.msra.mxu0 %v844
  %901 = vmatpush.bf16.msra.mxu0 %v843
  %902 = vmatpush.bf16.msra.mxu0 %v842
  %903 = vmatmul.bf16.gmra.mxu0 %v684
  %v904 = vpop.f32.mrf.mxu0
  %v905 = vadd.f32 %v892, %v904
  %v906 = vpop.f32.mrf.mxu0
  %907 = vdwg.mxu0
  %908 = vmatpush.bf16.msra.mxu0 %v857
  %909 = vmatpush.bf16.msra.mxu0 %v856
  %910 = vmatpush.bf16.msra.mxu0 %v855
  %911 = vmatpush.bf16.msra.mxu0 %v854
  %912 = vmatpush.bf16.msra.mxu0 %v853
  %913 = vmatpush.bf16.msra.mxu0 %v852
  %914 = vmatpush.bf16.msra.mxu0 %v851
  %915 = vmatpush.bf16.msra.mxu0 %v850
  %916 = vmatmul.bf16.gmra.mxu0 %v685
  %v917 = vpop.f32.mrf.mxu0
  %v918 = vadd.f32 %v905, %v917
  %v919 = vpop.f32.mrf.mxu0
  %920 = vdwg.mxu0
  %921 = vst [vmem:[%s5] sm:$0xff] %v918
  // Predicated region
  $region22: #{drug_encoder_forward.4} parent=0 // pred_check
    _
  $region23: #{drug_encoder_forward.4} parent=0 // pred_check_branch
    %923 = sbr.rel (0) target = $region25
  $region24: #{drug_encoder_forward.4} parent=0 // pred_region
    _
  $region25: #{drug_encoder_forward.4} parent=0 // pred_fallthru
    _
  // Predicated region
  $region26: #{drug_encoder_forward.4} parent=0 // pred_check
    _
  $region27: #{drug_encoder_forward.4} parent=0 // pred_check_branch
    %925 = sbr.rel (0) target = $region29
  $region28: #{drug_encoder_forward.4} parent=0 // pred_region
    _
  $region29: #{drug_encoder_forward.4} parent=0 // pred_fallthru
    _

// kernel: drug_encoder_forward.3
$region0: #{drug_encoder_forward.3}
  #allocation0 [shape = 'u32[]', space=smem, size = 0x4, offset = 0x4, fixed_abs, tag = 'smem constant byte address 0x4 - core index']
  #allocation1 [shape = 'u32[72,128]{1,0:T(1,128)}', space=vmem, size = 0x9000, scoped, tag = 'internal scratch']
  %s0 = inlined_call_operand.vmem [shape: f32[32,16], index: 0, kind: input, shape index: {}]
  %s1 = inlined_call_operand.vmem [shape: bf16[32,32], index: 1, kind: input, shape index: {}]
  %s2 = inlined_call_operand.vmem [shape: f32[32,1], index: 2, kind: input, shape index: {}]
  %s3 = inlined_call_operand.vmem [shape: f32[2,16], index: 3, kind: input, shape index: {}]
  %s4 = inlined_call_operand.vmem [shape: bf16[16,128], index: 4, kind: input, shape index: {}]
  %s5 = inlined_call_operand.vmem [shape: bf16[128,128], index: 5, kind: input, shape index: {}]
  %s6 = inlined_call_operand.vmem [shape: bf16[128,128], index: 6, kind: input, shape index: {}]
  %s7 = inlined_call_operand.vmem [shape: bf16[128,128], index: 7, kind: input, shape index: {}]
  %s8 = inlined_call_operand.vmem [shape: f32[16,128], index: 8, kind: input, shape index: {}]
  %s9 = inlined_call_operand.vmem [shape: f32[8,128], index: 9, kind: input, shape index: {}]
  %s10 = inlined_call_operand.vmem [shape: bf16[11,128,128], index: 10, kind: input, shape index: {}]
  %s11 = inlined_call_operand.vmem [shape: bf16[11,128,128], index: 11, kind: input, shape index: {}]
  %s12 = inlined_call_operand.vmem [shape: f32[11,8,128], index: 12, kind: input, shape index: {}]
  %s13 = inlined_call_operand.vmem [shape: f32[32,128], index: 13, kind: output, shape index: {}]
  %s14 = sld [smem:[#allocation0]]
  $region89: #{drug_encoder_forward.3} parent=0
    _
  %s16 = ssub.s32 1, %s14
  %s17 = scalar_select 0, %s16, %s14
  loop: start=0, step=1, limit=13
  $region2: #{drug_encoder_forward.3} parent=0 // loop_pre_header
    _
  $region3: #{drug_encoder_forward.3} parent=0 // loop_header
    %s19 = sphi 0, %s23
    %p20 = scmp.ge.s32.totalorder %s19, 13
    %s27 = sphi 0, %s27
    %s29 = sphi 0, %s27
    %s30 = sphi 0, %s29
    %s44 = sphi 0, %s30
    %s48 = sphi 0, %s48
    %s50 = sphi 0, %s48
    %s51 = sphi 0, %s50
    %s65 = sphi 0, %s51
    %s69 = sphi 0, %s69
    %s71 = sphi 0, %s69
    %s72 = sphi 0, %s71
    %s86 = sphi 0, %s72
    %s90 = sphi 0, %s90
    %s92 = sphi 0, %s90
    %s93 = sphi 0, %s92
    %s107 = sphi 0, %s93
    %s111 = sphi 0, %s111
    %s113 = sphi 0, %s111
    %s114 = sphi 0, %s113
    %s128 = sphi 0, %s114
    %s132 = sphi 0, %s132
    %s134 = sphi 0, %s132
    %s135 = sphi 0, %s134
    %s149 = sphi 0, %s135
    %s153 = sphi 0, %s153
    %s155 = sphi 0, %s153
    %s156 = sphi 0, %s155
    %s170 = sphi 0, %s156
    %s174 = sphi 0, %s174
    %s176 = sphi 0, %s174
    %s177 = sphi 0, %s176
    %s191 = sphi 0, %s177
    %s195 = sphi 0, %s195
    %s197 = sphi 0, %s195
    %s198 = sphi 0, %s197
    %s212 = sphi 0, %s198
    %s216 = sphi 0, %s216
    %s218 = sphi 0, %s216
    %s219 = sphi 0, %s218
    %s233 = sphi 0, %s219
    %s239 = sphi 0, %s241
    %s242 = sphi 0, %s239
    %s243 = sphi 0, %s242
    %s259 = sphi 0, %s243
    %s265 = sphi 0, %s267
    %s268 = sphi 0, %s265
    %s269 = sphi 0, %s268
    %s285 = sphi 0, %s269
    %s291 = sphi 0, %s293
    %s294 = sphi 0, %s291
    %s295 = sphi 0, %s294
    %s311 = sphi 0, %s295
    %s315 = sphi 0, %s315
    %s317 = sphi 0, %s315
    %s318 = sphi 0, %s317
    %s332 = sphi 0, %s318
  $region4: #{drug_encoder_forward.3} parent=0 // loop_header_branch
    %22 = sbr.rel (%p20) target = $region8
  $region5: #{drug_encoder_forward.3} parent=0 // loop_body
    %s24 = ssub.s32 %s19, 1
    %s25 = ssub.s32 %s19, 2
    %s26 = sadd.s32 %s19, 1
    %s28 = sadd.s32 %s27, 1
    %p31 = scmp.eq.s32.totalorder %s19, 10
    %p32 = scmp.ne.s32.totalorder %s27, %s29
    %p33 = scmp.eq.s32.totalorder %s19, 0
    %p34 = por %p32, %p33
    %p35 = scmp.ne.s32.totalorder %s27, %s29
    %p36 = scmp.eq.s32.totalorder %s24, 10
    %p37 = por %p35, %p36
    %p38 = scmp.ne.s32.totalorder %s29, %s30
    %p39 = scmp.eq.s32.totalorder %s24, 0
    %p40 = por %p38, %p39
    %p41 = scmp.ne.s32.totalorder %s29, %s30
    %p42 = scmp.eq.s32.totalorder %s25, 10
    %p43 = por %p41, %p42
    %p45 = scmp.ne.s32.totalorder %s30, %s44
    %p46 = scmp.eq.s32.totalorder %s25, 0
    %p47 = por %p45, %p46
    %s49 = sadd.s32 %s48, 1
    %p52 = scmp.eq.s32.totalorder %s19, 10
    %p53 = scmp.ne.s32.totalorder %s48, %s50
    %p54 = scmp.eq.s32.totalorder %s19, 0
    %p55 = por %p53, %p54
    %p56 = scmp.ne.s32.totalorder %s48, %s50
    %p57 = scmp.eq.s32.totalorder %s24, 10
    %p58 = por %p56, %p57
    %p59 = scmp.ne.s32.totalorder %s50, %s51
    %p60 = scmp.eq.s32.totalorder %s24, 0
    %p61 = por %p59, %p60
    %p62 = scmp.ne.s32.totalorder %s50, %s51
    %p63 = scmp.eq.s32.totalorder %s25, 10
    %p64 = por %p62, %p63
    %p66 = scmp.ne.s32.totalorder %s51, %s65
    %p67 = scmp.eq.s32.totalorder %s25, 0
    %p68 = por %p66, %p67
    %s70 = sadd.s32 %s69, 1
    %p73 = scmp.eq.s32.totalorder %s19, 10
    %p74 = scmp.ne.s32.totalorder %s69, %s71
    %p75 = scmp.eq.s32.totalorder %s19, 0
    %p76 = por %p74, %p75
    %p77 = scmp.ne.s32.totalorder %s69, %s71
    %p78 = scmp.eq.s32.totalorder %s24, 10
    %p79 = por %p77, %p78
    %p80 = scmp.ne.s32.totalorder %s71, %s72
    %p81 = scmp.eq.s32.totalorder %s24, 0
    %p82 = por %p80, %p81
    %p83 = scmp.ne.s32.totalorder %s71, %s72
    %p84 = scmp.eq.s32.totalorder %s25, 10
    %p85 = por %p83, %p84
    %p87 = scmp.ne.s32.totalorder %s72, %s86
    %p88 = scmp.eq.s32.totalorder %s25, 0
    %p89 = por %p87, %p88
    %s91 = sadd.s32 %s90, 1
    %p94 = scmp.eq.s32.totalorder %s19, 10
    %p95 = scmp.ne.s32.totalorder %s90, %s92
    %p96 = scmp.eq.s32.totalorder %s19, 0
    %p97 = por %p95, %p96
    %p98 = scmp.ne.s32.totalorder %s90, %s92
    %p99 = scmp.eq.s32.totalorder %s24, 10
    %p100 = por %p98, %p99
    %p101 = scmp.ne.s32.totalorder %s92, %s93
    %p102 = scmp.eq.s32.totalorder %s24, 0
    %p103 = por %p101, %p102
    %p104 = scmp.ne.s32.totalorder %s92, %s93
    %p105 = scmp.eq.s32.totalorder %s25, 10
    %p106 = por %p104, %p105
    %p108 = scmp.ne.s32.totalorder %s93, %s107
    %p109 = scmp.eq.s32.totalorder %s25, 0
    %p110 = por %p108, %p109
    %s112 = sadd.s32 %s111, 1
    %p115 = scmp.eq.s32.totalorder %s19, 10
    %p116 = scmp.ne.s32.totalorder %s111, %s113
    %p117 = scmp.eq.s32.totalorder %s19, 0
    %p118 = por %p116, %p117
    %p119 = scmp.ne.s32.totalorder %s111, %s113
    %p120 = scmp.eq.s32.totalorder %s24, 10
    %p121 = por %p119, %p120
    %p122 = scmp.ne.s32.totalorder %s113, %s114
    %p123 = scmp.eq.s32.totalorder %s24, 0
    %p124 = por %p122, %p123
    %p125 = scmp.ne.s32.totalorder %s113, %s114
    %p126 = scmp.eq.s32.totalorder %s25, 10
    %p127 = por %p125, %p126
    %p129 = scmp.ne.s32.totalorder %s114, %s128
    %p130 = scmp.eq.s32.totalorder %s25, 0
    %p131 = por %p129, %p130
    %s133 = sadd.s32 %s132, 1
    %p136 = scmp.eq.s32.totalorder %s19, 10
    %p137 = scmp.ne.s32.totalorder %s132, %s134
    %p138 = scmp.eq.s32.totalorder %s19, 0
    %p139 = por %p137, %p138
    %p140 = scmp.ne.s32.totalorder %s132, %s134
    %p141 = scmp.eq.s32.totalorder %s24, 10
    %p142 = por %p140, %p141
    %p143 = scmp.ne.s32.totalorder %s134, %s135
    %p144 = scmp.eq.s32.totalorder %s24, 0
    %p145 = por %p143, %p144
    %p146 = scmp.ne.s32.totalorder %s134, %s135
    %p147 = scmp.eq.s32.totalorder %s25, 10
    %p148 = por %p146, %p147
    %p150 = scmp.ne.s32.totalorder %s135, %s149
    %p151 = scmp.eq.s32.totalorder %s25, 0
    %p152 = por %p150, %p151
    %s154 = sadd.s32 %s153, 1
    %p157 = scmp.eq.s32.totalorder %s19, 10
    %p158 = scmp.ne.s32.totalorder %s153, %s155
    %p159 = scmp.eq.s32.totalorder %s19, 0
    %p160 = por %p158, %p159
    %p161 = scmp.ne.s32.totalorder %s153, %s155
    %p162 = scmp.eq.s32.totalorder %s24, 10
    %p163 = por %p161, %p162
    %p164 = scmp.ne.s32.totalorder %s155, %s156
    %p165 = scmp.eq.s32.totalorder %s24, 0
    %p166 = por %p164, %p165
    %p167 = scmp.ne.s32.totalorder %s155, %s156
    %p168 = scmp.eq.s32.totalorder %s25, 10
    %p169 = por %p167, %p168
    %p171 = scmp.ne.s32.totalorder %s156, %s170
    %p172 = scmp.eq.s32.totalorder %s25, 0
    %p173 = por %p171, %p172
    %s175 = sadd.s32 %s174, 1
    %p178 = scmp.eq.s32.totalorder %s19, 10
    %p179 = scmp.ne.s32.totalorder %s174, %s176
    %p180 = scmp.eq.s32.totalorder %s19, 0
    %p181 = por %p179, %p180
    %p182 = scmp.ne.s32.totalorder %s174, %s176
    %p183 = scmp.eq.s32.totalorder %s24, 10
    %p184 = por %p182, %p183
    %p185 = scmp.ne.s32.totalorder %s176, %s177
    %p186 = scmp.eq.s32.totalorder %s24, 0
    %p187 = por %p185, %p186
    %p188 = scmp.ne.s32.totalorder %s176, %s177
    %p189 = scmp.eq.s32.totalorder %s25, 10
    %p190 = por %p188, %p189
    %p192 = scmp.ne.s32.totalorder %s177, %s191
    %p193 = scmp.eq.s32.totalorder %s25, 0
    %p194 = por %p192, %p193
    %s196 = sadd.s32 %s195, 1
    %p199 = scmp.eq.s32.totalorder %s19, 10
    %p200 = scmp.ne.s32.totalorder %s195, %s197
    %p201 = scmp.eq.s32.totalorder %s19, 0
    %p202 = por %p200, %p201
    %p203 = scmp.ne.s32.totalorder %s195, %s197
    %p204 = scmp.eq.s32.totalorder %s24, 10
    %p205 = por %p203, %p204
    %p206 = scmp.ne.s32.totalorder %s197, %s198
    %p207 = scmp.eq.s32.totalorder %s24, 0
    %p208 = por %p206, %p207
    %p209 = scmp.ne.s32.totalorder %s197, %s198
    %p210 = scmp.eq.s32.totalorder %s25, 10
    %p211 = por %p209, %p210
    %p213 = scmp.ne.s32.totalorder %s198, %s212
    %p214 = scmp.eq.s32.totalorder %s25, 0
    %p215 = por %p213, %p214
    %s217 = sadd.s32 %s216, 1
    %p220 = scmp.eq.s32.totalorder %s19, 10
    %p221 = scmp.ne.s32.totalorder %s216, %s218
    %p222 = scmp.eq.s32.totalorder %s19, 0
    %p223 = por %p221, %p222
    %p224 = scmp.ne.s32.totalorder %s216, %s218
    %p225 = scmp.eq.s32.totalorder %s24, 10
    %p226 = por %p224, %p225
    %p227 = scmp.ne.s32.totalorder %s218, %s219
    %p228 = scmp.eq.s32.totalorder %s24, 0
    %p229 = por %p227, %p228
    %p230 = scmp.ne.s32.totalorder %s218, %s219
    %p231 = scmp.eq.s32.totalorder %s25, 10
    %p232 = por %p230, %p231
    %p234 = scmp.ne.s32.totalorder %s219, %s233
    %p235 = scmp.eq.s32.totalorder %s25, 0
    %p236 = por %p234, %p235
    %s237 = ssub.s32 %s19, %s26
    %p238 = scmp.eq.s32.totalorder %s237, 0
    %s240 = sadd.s32 %s239, 1
    %s241 = scalar_select %p238, %s239, %s240
    %p244 = pneg %p238
    %p245 = scmp.eq.s32.totalorder %s19, 10
    %p246 = por %p244, %p245
    %p247 = scmp.ne.s32.totalorder %s239, %s242
    %p248 = scmp.eq.s32.totalorder %s19, 0
    %p249 = por %p247, %p248
    %p250 = scmp.ne.s32.totalorder %s239, %s242
    %p251 = scmp.eq.s32.totalorder %s24, 10
    %p252 = por %p250, %p251
    %p253 = scmp.ne.s32.totalorder %s242, %s243
    %p254 = scmp.eq.s32.totalorder %s24, 0
    %p255 = por %p253, %p254
    %p256 = scmp.ne.s32.totalorder %s242, %s243
    %p257 = scmp.eq.s32.totalorder %s25, 10
    %p258 = por %p256, %p257
    %p260 = scmp.ne.s32.totalorder %s243, %s259
    %p261 = scmp.eq.s32.totalorder %s25, 0
    %p262 = por %p260, %p261
    %s263 = ssub.s32 %s19, %s26
    %p264 = scmp.eq.s32.totalorder %s263, 0
    %s266 = sadd.s32 %s265, 1
    %s267 = scalar_select %p264, %s265, %s266
    %p270 = pneg %p264
    %p271 = scmp.eq.s32.totalorder %s19, 10
    %p272 = por %p270, %p271
    %p273 = scmp.ne.s32.totalorder %s265, %s268
    %p274 = scmp.eq.s32.totalorder %s19, 0
    %p275 = por %p273, %p274
    %p276 = scmp.ne.s32.totalorder %s265, %s268
    %p277 = scmp.eq.s32.totalorder %s24, 10
    %p278 = por %p276, %p277
    %p279 = scmp.ne.s32.totalorder %s268, %s269
    %p280 = scmp.eq.s32.totalorder %s24, 0
    %p281 = por %p279, %p280
    %p282 = scmp.ne.s32.totalorder %s268, %s269
    %p283 = scmp.eq.s32.totalorder %s25, 10
    %p284 = por %p282, %p283
    %p286 = scmp.ne.s32.totalorder %s269, %s285
    %p287 = scmp.eq.s32.totalorder %s25, 0
    %p288 = por %p286, %p287
    %s289 = ssub.s32 %s19, %s26
    %p290 = scmp.eq.s32.totalorder %s289, 0
    %s292 = sadd.s32 %s291, 1
    %s293 = scalar_select %p290, %s291, %s292
    %p296 = pneg %p290
    %p297 = scmp.eq.s32.totalorder %s19, 10
    %p298 = por %p296, %p297
    %p299 = scmp.ne.s32.totalorder %s291, %s294
    %p300 = scmp.eq.s32.totalorder %s19, 0
    %p301 = por %p299, %p300
    %p302 = scmp.ne.s32.totalorder %s291, %s294
    %p303 = scmp.eq.s32.totalorder %s24, 10
    %p304 = por %p302, %p303
    %p305 = scmp.ne.s32.totalorder %s294, %s295
    %p306 = scmp.eq.s32.totalorder %s24, 0
    %p307 = por %p305, %p306
    %p308 = scmp.ne.s32.totalorder %s294, %s295
    %p309 = scmp.eq.s32.totalorder %s25, 10
    %p310 = por %p308, %p309
    %p312 = scmp.ne.s32.totalorder %s295, %s311
    %p313 = scmp.eq.s32.totalorder %s25, 0
    %p314 = por %p312, %p313
    %s316 = sadd.s32 %s315, 1
    %p319 = scmp.eq.s32.totalorder %s19, 10
    %p320 = scmp.ne.s32.totalorder %s315, %s317
    %p321 = scmp.eq.s32.totalorder %s19, 0
    %p322 = por %p320, %p321
    %p323 = scmp.ne.s32.totalorder %s315, %s317
    %p324 = scmp.eq.s32.totalorder %s24, 10
    %p325 = por %p323, %p324
    %p326 = scmp.ne.s32.totalorder %s317, %s318
    %p327 = scmp.eq.s32.totalorder %s24, 0
    %p328 = por %p326, %p327
    %p329 = scmp.ne.s32.totalorder %s317, %s318
    %p330 = scmp.eq.s32.totalorder %s25, 10
    %p331 = por %p329, %p330
    %p333 = scmp.ne.s32.totalorder %s318, %s332
    %p334 = scmp.eq.s32.totalorder %s25, 0
    %p335 = por %p333, %p334
    %p336 = scmp.le.s32.totalorder 1, %s19
    %p337 = scmp.lt.s32.totalorder %s19, 12
    %p338 = pnand %p336, %p337
    %p339 = pneg %p338
    // Predicated region
    $region9: #{drug_encoder_forward.3} parent=5 // pred_check
      _
    $region10: #{drug_encoder_forward.3} parent=5 // pred_check_branch
      %341 = sbr.rel (%p338) target = $region12
    $region11: #{drug_encoder_forward.3} parent=5 // pred_region
      %s342 = ssub.s32 %s19, 1
      // Predicated region
      $region13: #{drug_encoder_forward.3} parent=11 // pred_check
        %p343 = pneg %p40
      $region14: #{drug_encoder_forward.3} parent=11 // pred_check_branch
        %345 = sbr.rel (%p343) target = $region16
      $region15: #{drug_encoder_forward.3} parent=11 // pred_region
        _
      $region16: #{drug_encoder_forward.3} parent=11 // pred_fallthru
        _
      // Predicated region
      $region17: #{drug_encoder_forward.3} parent=11 // pred_check
        %p346 = pneg %p61
      $region18: #{drug_encoder_forward.3} parent=11 // pred_check_branch
        %348 = sbr.rel (%p346) target = $region20
      $region19: #{drug_encoder_forward.3} parent=11 // pred_region
        _
      $region20: #{drug_encoder_forward.3} parent=11 // pred_fallthru
        _
      // Predicated region
      $region21: #{drug_encoder_forward.3} parent=11 // pred_check
        %p349 = pneg %p82
      $region22: #{drug_encoder_forward.3} parent=11 // pred_check_branch
        %351 = sbr.rel (%p349) target = $region24
      $region23: #{drug_encoder_forward.3} parent=11 // pred_region
        _
      $region24: #{drug_encoder_forward.3} parent=11 // pred_fallthru
        _
      // Predicated region
      $region25: #{drug_encoder_forward.3} parent=11 // pred_check
        %p352 = pneg %p103
      $region26: #{drug_encoder_forward.3} parent=11 // pred_check_branch
        %354 = sbr.rel (%p352) target = $region28
      $region27: #{drug_encoder_forward.3} parent=11 // pred_region
        _
      $region28: #{drug_encoder_forward.3} parent=11 // pred_fallthru
        _
      // Predicated region
      $region29: #{drug_encoder_forward.3} parent=11 // pred_check
        %p355 = pneg %p124
      $region30: #{drug_encoder_forward.3} parent=11 // pred_check_branch
        %357 = sbr.rel (%p355) target = $region32
      $region31: #{drug_encoder_forward.3} parent=11 // pred_region
        _
      $region32: #{drug_encoder_forward.3} parent=11 // pred_fallthru
        _
      // Predicated region
      $region33: #{drug_encoder_forward.3} parent=11 // pred_check
        %p358 = pneg %p145
      $region34: #{drug_encoder_forward.3} parent=11 // pred_check_branch
        %360 = sbr.rel (%p358) target = $region36
      $region35: #{drug_encoder_forward.3} parent=11 // pred_region
        _
      $region36: #{drug_encoder_forward.3} parent=11 // pred_fallthru
        _
      // Predicated region
      $region37: #{drug_encoder_forward.3} parent=11 // pred_check
        %p361 = pneg %p166
      $region38: #{drug_encoder_forward.3} parent=11 // pred_check_branch
        %363 = sbr.rel (%p361) target = $region40
      $region39: #{drug_encoder_forward.3} parent=11 // pred_region
        _
      $region40: #{drug_encoder_forward.3} parent=11 // pred_fallthru
        _
      // Predicated region
      $region41: #{drug_encoder_forward.3} parent=11 // pred_check
        %p364 = pneg %p187
      $region42: #{drug_encoder_forward.3} parent=11 // pred_check_branch
        %366 = sbr.rel (%p364) target = $region44
      $region43: #{drug_encoder_forward.3} parent=11 // pred_region
        _
      $region44: #{drug_encoder_forward.3} parent=11 // pred_fallthru
        _
      // Predicated region
      $region45: #{drug_encoder_forward.3} parent=11 // pred_check
        %p367 = pneg %p208
      $region46: #{drug_encoder_forward.3} parent=11 // pred_check_branch
        %369 = sbr.rel (%p367) target = $region48
      $region47: #{drug_encoder_forward.3} parent=11 // pred_region
        _
      $region48: #{drug_encoder_forward.3} parent=11 // pred_fallthru
        _
      // Predicated region
      $region49: #{drug_encoder_forward.3} parent=11 // pred_check
        %p370 = pneg %p229
      $region50: #{drug_encoder_forward.3} parent=11 // pred_check_branch
        %372 = sbr.rel (%p370) target = $region52
      $region51: #{drug_encoder_forward.3} parent=11 // pred_region
        _
      $region52: #{drug_encoder_forward.3} parent=11 // pred_fallthru
        _
    $region12: #{drug_encoder_forward.3} parent=5 // pred_fallthru
      _
    %p373 = scmp.lt.s32.totalorder %s19, 11
    // Predicated region
    $region53: #{drug_encoder_forward.3} parent=5 // pred_check
      %p374 = pneg %p373
    $region54: #{drug_encoder_forward.3} parent=5 // pred_check_branch
      %376 = sbr.rel (%p374) target = $region56
    $region55: #{drug_encoder_forward.3} parent=5 // pred_region
      // Predicated region
      $region57: #{drug_encoder_forward.3} parent=55 // pred_check
        %p377 = pneg %p249
      $region58: #{drug_encoder_forward.3} parent=55 // pred_check_branch
        %379 = sbr.rel (%p377) target = $region60
      $region59: #{drug_encoder_forward.3} parent=55 // pred_region
        %p380 = scmp.lt.s32.totalorder %s19, 10
        %s381 = scalar_select %p380, %s19, 10
        %s382 = smul.addr %s381, 16
        %s383 = smul.addr %s382, 4
        %s384 = scalar_lea.vmem %s10, %s383
      $region60: #{drug_encoder_forward.3} parent=55 // pred_fallthru
        _
      // Predicated region
      $region61: #{drug_encoder_forward.3} parent=55 // pred_check
        %p385 = pneg %p275
      $region62: #{drug_encoder_forward.3} parent=55 // pred_check_branch
        %387 = sbr.rel (%p385) target = $region64
      $region63: #{drug_encoder_forward.3} parent=55 // pred_region
        %p388 = scmp.lt.s32.totalorder %s19, 10
        %s389 = scalar_select %p388, %s19, 10
        %s390 = smul.addr %s389, 16
        %s391 = smul.addr %s390, 4
        %s392 = scalar_lea.vmem %s11, %s391
      $region64: #{drug_encoder_forward.3} parent=55 // pred_fallthru
        _
      // Predicated region
      $region65: #{drug_encoder_forward.3} parent=55 // pred_check
        %p393 = pneg %p301
      $region66: #{drug_encoder_forward.3} parent=55 // pred_check_branch
        %395 = sbr.rel (%p393) target = $region68
      $region67: #{drug_encoder_forward.3} parent=55 // pred_region
        %p396 = scmp.lt.s32.totalorder %s19, 10
        %s397 = scalar_select %p396, %s19, 10
        %s398 = smul.addr %s397, 8
        %s399 = scalar_lea.vmem %s12, %s398
      $region68: #{drug_encoder_forward.3} parent=55 // pred_fallthru
        _
    $region56: #{drug_encoder_forward.3} parent=5 // pred_fallthru
      _
    %p400 = scmp.le.s32.totalorder 1, %s19
    %p401 = scmp.lt.s32.totalorder %s19, 12
    %p402 = pnand %p400, %p401
    %p403 = pneg %p402
    // Predicated region
    $region69: #{drug_encoder_forward.3} parent=5 // pred_check
      _
    $region70: #{drug_encoder_forward.3} parent=5 // pred_check_branch
      %405 = sbr.rel (%p402) target = $region72
    $region71: #{drug_encoder_forward.3} parent=5 // pred_region
      %s406 = ssub.s32 %s19, 1
      %p407 = pneg %p40
      %p408 = pneg %p37
      %p409 = pneg %p61
      %p410 = pneg %p58
      %p411 = pneg %p82
      %p412 = pneg %p79
      %p413 = pneg %p103
      %p414 = pneg %p100
      %p415 = pneg %p124
      %p416 = pneg %p121
      %p417 = pneg %p145
      %p418 = pneg %p142
      %p419 = pneg %p166
      %p420 = pneg %p163
      %p421 = pneg %p187
      %p422 = pneg %p184
      %p423 = pneg %p208
      %p424 = pneg %p205
      %p425 = pneg %p229
      %p426 = pneg %p226
      %p427 = scmp.lt.s32.totalorder %s24, 10
      %s428 = scalar_select %p427, %s24, 10
      %s429 = smul.addr %s428, 16
      %s430 = smul.addr %s429, 4
      %s431 = scalar_lea.vmem %s10, %s430
      %p432 = pneg %p255
      %p433 = pneg %p252
      %p434 = scmp.lt.s32.totalorder %s24, 10
      %s435 = scalar_select %p434, %s24, 10
      %s436 = smul.addr %s435, 16
      %s437 = smul.addr %s436, 4
      %s438 = scalar_lea.vmem %s11, %s437
      %p439 = pneg %p281
      %p440 = pneg %p278
      %p441 = scmp.lt.s32.totalorder %s24, 10
      %s442 = scalar_select %p441, %s24, 10
      %s443 = smul.addr %s442, 8
      %s444 = scalar_lea.vmem %s12, %s443
      %p445 = pneg %p307
      %p446 = pneg %p304
      %p447 = pneg %p328
      %p448 = pneg %p325
      %p449 = scmp.lt.s32.totalorder %s24, 10
      %s450 = scalar_select %p449, %s24, 10
      %s451 = smul.addr %s450, 16
      %s452 = smul.addr %s451, 4
      %s453 = scalar_lea.vmem %s10, %s452
      %p454 = scmp.lt.s32.totalorder %s24, 10
      %s455 = scalar_select %p454, %s24, 10
      %s456 = smul.addr %s455, 16
      %s457 = smul.addr %s456, 4
      %s458 = scalar_lea.vmem %s11, %s457
      %p459 = scmp.lt.s32.totalorder %s24, 10
      %s460 = scalar_select %p459, %s24, 10
      %s461 = smul.addr %s460, 8
      %s462 = scalar_lea.vmem %s12, %s461
      %v464 = vld [vmem:[%s1] sm:$0xf]
      %v465 = vld [vmem:[%s1 + $0x4] sm:$0xf]
      %v466 = vld [vmem:[%s1 + $0x8] sm:$0xf]
      %v467 = vld [vmem:[%s1 + $0xc] sm:$0xf]
      %v468 = vld [vmem:[%s2] sm:$0xff]
      %v469 = vld [vmem:[%s2 + $0x8] sm:$0xff]
      %v470 = vld [vmem:[%s2 + $0x10] sm:$0xff]
      %v471 = vld [vmem:[%s2 + $0x18] sm:$0xff]
      %p472 = scmp.eq.s32.totalorder %s24, 0
      // Predicated region
      $region73: #{drug_encoder_forward.3} parent=71 // pred_check
        %p473 = pneg %p472
      $region74: #{drug_encoder_forward.3} parent=71 // pred_check_branch
        %475 = sbr.rel (%p473) target = $region76
      $region75: #{drug_encoder_forward.3} parent=71 // pred_region
        %v476 = vld [vmem:[%s8] sm:$0xff]
        %v477 = vld [vmem:[%s8 + $0x8] sm:$0xff]
        %v478 = vld [vmem:[%s3] sm:$0x3]
        %v479 = vld [vmem:[%s0] sm:$0xff]
        %v480 = vld [vmem:[%s0 + $0x8] sm:$0xff]
        %v481 = vld [vmem:[%s0 + $0x10] sm:$0xff]
        %v482 = vld [vmem:[%s0 + $0x18] sm:$0xff]
        %v483 = vperm.slane %v478, 0
        %v484 = vmul.f32 %v479, %v483
        %v485 = vmul.f32 %v480, %v483
        %v486 = vmul.f32 %v481, %v483
        %v487 = vmul.f32 %v482, %v483
        %v488 = vperm.slane %v478, 1
        %v489 = vadd.f32 %v484, %v488
        %v490 = vadd.f32 %v485, %v488
        %v491 = vadd.f32 %v486, %v488
        %v492 = vadd.f32 %v487, %v488
        %v493 = vpack.c.bf16 %v490, %v489
        %v494 = vpack.c.bf16 %v492, %v491
        %v495 = vld [vmem:[%s4] sm:$0xf]
        %v496 = vld [vmem:[%s4 + $0x4] sm:$0xf]
        %v497 = vperm.slane %v476, 0
        %v500 = vunpack.c.l.b16 %v495
        %v501 = vunpack.c.l.b16 %v496
        %v502 = vpack.c.b16 %v501, %v500
        %vm504 = vcmask 130048
        %v506 = vsel %vm504, %v493, 0
        %v509 = vsel %vm504, %v494, 0
        %511 = vmatpush.bf16.msra.mxu0 0
        %512 = vmatpush.bf16.msra.mxu0 0
        %513 = vmatpush.bf16.msra.mxu0 0
        %514 = vmatpush.bf16.msra.mxu0 0
        %515 = vmatpush.bf16.msra.mxu0 0
        %516 = vmatpush.bf16.msra.mxu0 0
        %517 = vmatpush.bf16.msra.mxu0 0
        %518 = vmatpush.bf16.msra.mxu0 %v502
        %519 = vmatmul.bf16.gmra.mxu0 %v506
        %v520 = vpop.f32.mrf.mxu0
        %v521 = vadd.f32 %v497, %v520
        %v522 = vpop.f32.mrf.mxu0
        %v523 = vadd.f32 %v497, %v522
        %524 = vmatmul.bf16.gmra.mxu0 %v509
        %v525 = vpop.f32.mrf.mxu0
        %v526 = vadd.f32 %v497, %v525
        %v527 = vpop.f32.mrf.mxu0
        %v528 = vadd.f32 %v497, %v527
        %529 = vdwg.mxu0
        %vm530 = vcmp.ge.f32.partialorder %v521, 0.0
        %vm531 = vcmp.ge.f32.partialorder %v523, 0.0
        %vm532 = vcmp.ge.f32.partialorder %v526, 0.0
        %vm533 = vcmp.ge.f32.partialorder %v528, 0.0
        %v534 = vperm.slane %v476, 1
        %v535 = vmul.f32 %v534, %v521
        %v536 = vmul.f32 %v534, %v523
        %v537 = vmul.f32 %v534, %v526
        %v538 = vmul.f32 %v534, %v528
        %v539 = vsel %vm530, %v521, %v535
        %v540 = vsel %vm531, %v523, %v536
        %v541 = vsel %vm532, %v526, %v537
        %v542 = vsel %vm533, %v528, %v538
        %v543 = vpack.c.bf16 %v540, %v539
        %v544 = vpack.c.bf16 %v542, %v541
        %v545 = vld [vmem:[%s5] sm:$0xf]
        %v546 = vld [vmem:[%s5 + $0x4] sm:$0xf]
        %v547 = vld [vmem:[%s5 + $0x8] sm:$0xf]
        %v548 = vld [vmem:[%s5 + $0xc] sm:$0xf]
        %v549 = vld [vmem:[%s5 + $0x10] sm:$0xf]
        %v550 = vld [vmem:[%s5 + $0x14] sm:$0xf]
        %v551 = vld [vmem:[%s5 + $0x18] sm:$0xf]
        %v552 = vld [vmem:[%s5 + $0x1c] sm:$0xf]
        %v553 = vld [vmem:[%s5 + $0x20] sm:$0xf]
        %v554 = vld [vmem:[%s5 + $0x24] sm:$0xf]
        %v555 = vld [vmem:[%s5 + $0x28] sm:$0xf]
        %v556 = vld [vmem:[%s5 + $0x2c] sm:$0xf]
        %v557 = vld [vmem:[%s5 + $0x30] sm:$0xf]
        %v558 = vld [vmem:[%s5 + $0x34] sm:$0xf]
        %v559 = vld [vmem:[%s5 + $0x38] sm:$0xf]
        %v560 = vld [vmem:[%s5 + $0x3c] sm:$0xf]
        %v561 = vperm.slane %v476, 2
        %v578 = vunpack.c.l.b16 %v545
        %v579 = vunpack.c.l.b16 %v546
        %v580 = vunpack.c.l.b16 %v547
        %v581 = vunpack.c.l.b16 %v548
        %v582 = vunpack.c.l.b16 %v549
        %v583 = vunpack.c.l.b16 %v550
        %v584 = vunpack.c.l.b16 %v551
        %v585 = vunpack.c.l.b16 %v552
        %v586 = vunpack.c.l.b16 %v553
        %v587 = vunpack.c.l.b16 %v554
        %v588 = vunpack.c.l.b16 %v555
        %v589 = vunpack.c.l.b16 %v556
        %v590 = vunpack.c.l.b16 %v557
        %v591 = vunpack.c.l.b16 %v558
        %v592 = vunpack.c.l.b16 %v559
        %v593 = vunpack.c.l.b16 %v560
        %v594 = vpack.c.b16 %v579, %v578
        %v595 = vpack.c.b16 %v581, %v580
        %v596 = vpack.c.b16 %v583, %v582
        %v597 = vpack.c.b16 %v585, %v584
        %v598 = vpack.c.b16 %v587, %v586
        %v599 = vpack.c.b16 %v589, %v588
        %v600 = vpack.c.b16 %v591, %v590
        %v601 = vpack.c.b16 %v593, %v592
        %610 = vmatpush.bf16.msra.mxu0 %v601
        %611 = vmatpush.bf16.msra.mxu0 %v600
        %612 = vmatpush.bf16.msra.mxu0 %v599
        %613 = vmatpush.bf16.msra.mxu0 %v598
        %614 = vmatpush.bf16.msra.mxu0 %v597
        %615 = vmatpush.bf16.msra.mxu0 %v596
        %616 = vmatpush.bf16.msra.mxu0 %v595
        %617 = vmatpush.bf16.msra.mxu0 %v594
        %618 = vmatmul.bf16.gmra.mxu0 %v543
        %v619 = vpop.f32.mrf.mxu0
        %v620 = vadd.f32 %v561, %v619
        %v621 = vpop.f32.mrf.mxu0
        %v622 = vadd.f32 %v561, %v621
        %623 = vmatmul.bf16.gmra.mxu0 %v544
        %v624 = vpop.f32.mrf.mxu0
        %v625 = vadd.f32 %v561, %v624
        %v626 = vpop.f32.mrf.mxu0
        %v627 = vadd.f32 %v561, %v626
        %628 = vdwg.mxu0
        %v629 = vperm.slane %v476, 3
        %v630 = vmul.f32 %v620, %v629
        %v631 = vmul.f32 %v622, %v629
        %v632 = vmul.f32 %v625, %v629
        %v633 = vmul.f32 %v627, %v629
        %v634 = vperm.slane %v476, 4
        %v635 = vadd.f32 %v630, %v634
        %v636 = vadd.f32 %v631, %v634
        %v637 = vadd.f32 %v632, %v634
        %v638 = vadd.f32 %v633, %v634
        %v639 = vpack.c.bf16 %v636, %v635
        %v640 = vpack.c.bf16 %v638, %v637
        %v645 = vunpack.c.l.b16 %v464
        %v646 = vunpack.c.l.b16 %v465
        %v647 = vunpack.c.l.b16 %v466
        %v648 = vunpack.c.l.b16 %v467
        %v649 = vpack.c.b16 %v646, %v645
        %v650 = vpack.c.b16 %v648, %v647
        %vm651 = vcmask 261120
        %v653 = vsel %vm651, %v649, 0
        %v656 = vsel %vm651, %v650, 0
        %658 = vmatpush.bf16.msra.mxu0 0
        %659 = vmatpush.bf16.msra.mxu0 0
        %660 = vmatpush.bf16.msra.mxu0 0
        %661 = vmatpush.bf16.msra.mxu0 0
        %662 = vmatpush.bf16.msra.mxu0 0
        %663 = vmatpush.bf16.msra.mxu0 0
        %664 = vmatpush.bf16.msra.mxu0 %v640
        %665 = vmatpush.bf16.msra.mxu0 %v639
        %666 = vmatmul.bf16.gmra.mxu0 %v653
        %v667 = vpop.f32.mrf.mxu0
        %v668 = vadd.f32 0.0, %v667
        %v669 = vpop.f32.mrf.mxu0
        %v670 = vadd.f32 0.0, %v669
        %671 = vmatmul.bf16.gmra.mxu0 %v656
        %v672 = vpop.f32.mrf.mxu0
        %v673 = vadd.f32 0.0, %v672
        %v674 = vpop.f32.mrf.mxu0
        %v675 = vadd.f32 0.0, %v674
        %676 = vdwg.mxu0
        %678 = vset.pattern.permute.xlu0 0
        %679 = vperm.xlu0 %678, %v468
        %v680 = vpop.permute.xlu0 %679
        %683 = vset.pattern.permute.xlu0 0
        %684 = vperm.xlu0 %683, %v469
        %v685 = vpop.permute.xlu0 %684
        %688 = vset.pattern.permute.xlu0 0
        %689 = vperm.xlu0 %688, %v470
        %v690 = vpop.permute.xlu0 %689
        %693 = vset.pattern.permute.xlu0 0
        %694 = vperm.xlu0 %693, %v471
        %v695 = vpop.permute.xlu0 %694
        %v697 = vmul.f32 %v668, %v680
        %v698 = vmul.f32 %v670, %v685
        %v699 = vmul.f32 %v673, %v690
        %v700 = vmul.f32 %v675, %v695
        %v701 = vadd.f32 %v635, %v697
        %v702 = vadd.f32 %v636, %v698
        %v703 = vadd.f32 %v637, %v699
        %v704 = vadd.f32 %v638, %v700
        %v705 = vld [vmem:[%s6] sm:$0xf]
        %v706 = vld [vmem:[%s6 + $0x4] sm:$0xf]
        %v707 = vld [vmem:[%s6 + $0x8] sm:$0xf]
        %v708 = vld [vmem:[%s6 + $0xc] sm:$0xf]
        %v709 = vld [vmem:[%s6 + $0x10] sm:$0xf]
        %v710 = vld [vmem:[%s6 + $0x14] sm:$0xf]
        %v711 = vld [vmem:[%s6 + $0x18] sm:$0xf]
        %v712 = vld [vmem:[%s6 + $0x1c] sm:$0xf]
        %v713 = vld [vmem:[%s6 + $0x20] sm:$0xf]
        %v714 = vld [vmem:[%s6 + $0x24] sm:$0xf]
        %v715 = vld [vmem:[%s6 + $0x28] sm:$0xf]
        %v716 = vld [vmem:[%s6 + $0x2c] sm:$0xf]
        %v717 = vld [vmem:[%s6 + $0x30] sm:$0xf]
        %v718 = vld [vmem:[%s6 + $0x34] sm:$0xf]
        %v719 = vld [vmem:[%s6 + $0x38] sm:$0xf]
        %v720 = vld [vmem:[%s6 + $0x3c] sm:$0xf]
        %v721 = vld [vmem:[%s7] sm:$0xf]
        %v722 = vld [vmem:[%s7 + $0x4] sm:$0xf]
        %v723 = vld [vmem:[%s7 + $0x8] sm:$0xf]
        %v724 = vld [vmem:[%s7 + $0xc] sm:$0xf]
        %v725 = vld [vmem:[%s7 + $0x10] sm:$0xf]
        %v726 = vld [vmem:[%s7 + $0x14] sm:$0xf]
        %v727 = vld [vmem:[%s7 + $0x18] sm:$0xf]
        %v728 = vld [vmem:[%s7 + $0x1c] sm:$0xf]
        %v729 = vld [vmem:[%s7 + $0x20] sm:$0xf]
        %v730 = vld [vmem:[%s7 + $0x24] sm:$0xf]
        %v731 = vld [vmem:[%s7 + $0x28] sm:$0xf]
        %v732 = vld [vmem:[%s7 + $0x2c] sm:$0xf]
        %v733 = vld [vmem:[%s7 + $0x30] sm:$0xf]
        %v734 = vld [vmem:[%s7 + $0x34] sm:$0xf]
        %v735 = vld [vmem:[%s7 + $0x38] sm:$0xf]
        %v736 = vld [vmem:[%s7 + $0x3c] sm:$0xf]
        %v737 = vpack.c.bf16 %v702, %v701
        %v738 = vpack.c.bf16 %v704, %v703
        %v739 = vperm.slane %v476, 5
        %v756 = vunpack.c.l.b16 %v705
        %v757 = vunpack.c.l.b16 %v706
        %v758 = vunpack.c.l.b16 %v707
        %v759 = vunpack.c.l.b16 %v708
        %v760 = vunpack.c.l.b16 %v709
        %v761 = vunpack.c.l.b16 %v710
        %v762 = vunpack.c.l.b16 %v711
        %v763 = vunpack.c.l.b16 %v712
        %v764 = vunpack.c.l.b16 %v713
        %v765 = vunpack.c.l.b16 %v714
        %v766 = vunpack.c.l.b16 %v715
        %v767 = vunpack.c.l.b16 %v716
        %v768 = vunpack.c.l.b16 %v717
        %v769 = vunpack.c.l.b16 %v718
        %v770 = vunpack.c.l.b16 %v719
        %v771 = vunpack.c.l.b16 %v720
        %v772 = vpack.c.b16 %v757, %v756
        %v773 = vpack.c.b16 %v759, %v758
        %v774 = vpack.c.b16 %v761, %v760
        %v775 = vpack.c.b16 %v763, %v762
        %v776 = vpack.c.b16 %v765, %v764
        %v777 = vpack.c.b16 %v767, %v766
        %v778 = vpack.c.b16 %v769, %v768
        %v779 = vpack.c.b16 %v771, %v770
        %788 = vmatpush.bf16.msra.mxu0 %v779
        %789 = vmatpush.bf16.msra.mxu0 %v778
        %790 = vmatpush.bf16.msra.mxu0 %v777
        %791 = vmatpush.bf16.msra.mxu0 %v776
        %792 = vmatpush.bf16.msra.mxu0 %v775
        %793 = vmatpush.bf16.msra.mxu0 %v774
        %794 = vmatpush.bf16.msra.mxu0 %v773
        %795 = vmatpush.bf16.msra.mxu0 %v772
        %796 = vmatmul.bf16.gmra.mxu0 %v737
        %v797 = vpop.f32.mrf.mxu0
        %v798 = vadd.f32 %v739, %v797
        %v799 = vpop.f32.mrf.mxu0
        %v800 = vadd.f32 %v739, %v799
        %801 = vmatmul.bf16.gmra.mxu0 %v738
        %v802 = vpop.f32.mrf.mxu0
        %v803 = vadd.f32 %v739, %v802
        %v804 = vpop.f32.mrf.mxu0
        %v805 = vadd.f32 %v739, %v804
        %806 = vdwg.mxu0
        %v807 = vperm.slane %v476, 6
        %v808 = vmul.f32 %v798, %v807
        %v809 = vmul.f32 %v800, %v807
        %v810 = vmul.f32 %v803, %v807
        %v811 = vmul.f32 %v805, %v807
        %v812 = vperm.slane %v476, 7
        %v813 = vadd.f32 %v808, %v812
        %v814 = vadd.f32 %v809, %v812
        %v815 = vadd.f32 %v810, %v812
        %v816 = vadd.f32 %v811, %v812
        %v817 = vmax.f32 %v813, 0.0
        %v818 = vmax.f32 %v814, 0.0
        %v819 = vmax.f32 %v815, 0.0
        %v820 = vmax.f32 %v816, 0.0
        %v821 = vpack.c.bf16 %v818, %v817
        %v822 = vpack.c.bf16 %v820, %v819
        %v823 = vperm.slane %v477, 0
        %v840 = vunpack.c.l.b16 %v721
        %v841 = vunpack.c.l.b16 %v722
        %v842 = vunpack.c.l.b16 %v723
        %v843 = vunpack.c.l.b16 %v724
        %v844 = vunpack.c.l.b16 %v725
        %v845 = vunpack.c.l.b16 %v726
        %v846 = vunpack.c.l.b16 %v727
        %v847 = vunpack.c.l.b16 %v728
        %v848 = vunpack.c.l.b16 %v729
        %v849 = vunpack.c.l.b16 %v730
        %v850 = vunpack.c.l.b16 %v731
        %v851 = vunpack.c.l.b16 %v732
        %v852 = vunpack.c.l.b16 %v733
        %v853 = vunpack.c.l.b16 %v734
        %v854 = vunpack.c.l.b16 %v735
        %v855 = vunpack.c.l.b16 %v736
        %v856 = vpack.c.b16 %v841, %v840
        %v857 = vpack.c.b16 %v843, %v842
        %v858 = vpack.c.b16 %v845, %v844
        %v859 = vpack.c.b16 %v847, %v846
        %v860 = vpack.c.b16 %v849, %v848
        %v861 = vpack.c.b16 %v851, %v850
        %v862 = vpack.c.b16 %v853, %v852
        %v863 = vpack.c.b16 %v855, %v854
        %872 = vmatpush.bf16.msra.mxu0 %v863
        %873 = vmatpush.bf16.msra.mxu0 %v862
        %874 = vmatpush.bf16.msra.mxu0 %v861
        %875 = vmatpush.bf16.msra.mxu0 %v860
        %876 = vmatpush.bf16.msra.mxu0 %v859
        %877 = vmatpush.bf16.msra.mxu0 %v858
        %878 = vmatpush.bf16.msra.mxu0 %v857
        %879 = vmatpush.bf16.msra.mxu0 %v856
        %880 = vmatmul.bf16.gmra.mxu0 %v821
        %v881 = vpop.f32.mrf.mxu0
        %v882 = vadd.f32 %v823, %v881
        %v883 = vpop.f32.mrf.mxu0
        %v884 = vadd.f32 %v823, %v883
        %885 = vmatmul.bf16.gmra.mxu0 %v822
        %v886 = vpop.f32.mrf.mxu0
        %v887 = vadd.f32 %v823, %v886
        %v888 = vpop.f32.mrf.mxu0
        %v889 = vadd.f32 %v823, %v888
        %890 = vdwg.mxu0
        %891 = vst [vmem:[%s13] sm:$0xff] %v882
        %892 = vst [vmem:[%s13 + $0x8] sm:$0xff] %v884
        %893 = vst [vmem:[%s13 + $0x10] sm:$0xff] %v887
        %894 = vst [vmem:[%s13 + $0x18] sm:$0xff] %v889
      $region76: #{drug_encoder_forward.3} parent=71 // pred_fallthru
        _
      %v895 = vld [vmem:[%s462] sm:$0xff]
      %v896 = vld [vmem:[%s9] sm:$0xff]
      %v897 = vld [vmem:[%s13] sm:$0xff]
      %v898 = vld [vmem:[%s13 + $0x8] sm:$0xff]
      %v899 = vld [vmem:[%s13 + $0x10] sm:$0xff]
      %v900 = vld [vmem:[%s13 + $0x18] sm:$0xff]
      %901 = vadd.xlane.f32.xlu0 %v897
      %v902 = vpop.xlane.xlu0 %901
      %903 = vadd.xlane.f32.xlu0 %v898
      %v904 = vpop.xlane.xlu0 %903
      %905 = vadd.xlane.f32.xlu0 %v899
      %v906 = vpop.xlane.xlu0 %905
      %907 = vadd.xlane.f32.xlu0 %v900
      %v908 = vpop.xlane.xlu0 %907
      %v909 = vrcp.pop 128.0
      %v910 = vmul.f32 128.0, %v909
      %v911 = vsub.f32 1.0, %v910
      %v912 = vmul.f32 %v909, %v911
      %v913 = vadd.f32 %v909, %v912
      %vm914 = vweird.f32 %v909
      %v915 = vsel %vm914, %v909, %v913
      %v916 = vmul.f32 %v902, %v915
      %v917 = vmul.f32 %v904, %v915
      %v918 = vmul.f32 %v906, %v915
      %v919 = vmul.f32 %v908, %v915
      %v920 = vsub.f32 %v897, %v916
      %v921 = vsub.f32 %v898, %v917
      %v922 = vsub.f32 %v899, %v918
      %v923 = vsub.f32 %v900, %v919
      %v924 = vmul.f32 %v920, %v920
      %v925 = vmul.f32 %v921, %v921
      %v926 = vmul.f32 %v922, %v922
      %v927 = vmul.f32 %v923, %v923
      %928 = vadd.xlane.f32.xlu0 %v924
      %v929 = vpop.xlane.xlu0 %928
      %930 = vadd.xlane.f32.xlu0 %v925
      %v931 = vpop.xlane.xlu0 %930
      %932 = vadd.xlane.f32.xlu0 %v926
      %v933 = vpop.xlane.xlu0 %932
      %934 = vadd.xlane.f32.xlu0 %v927
      %v935 = vpop.xlane.xlu0 %934
      %v936 = vmul.f32 %v929, %v915
      %v937 = vmul.f32 %v931, %v915
      %v938 = vmul.f32 %v933, %v915
      %v939 = vmul.f32 %v935, %v915
      %v940 = vadd.f32 %v936, 1e-05
      %v941 = vadd.f32 %v937, 1e-05
      %v942 = vadd.f32 %v938, 1e-05
      %v943 = vadd.f32 %v939, 1e-05
      %v944 = vrsqrt.pop %v940
      %v945 = vmul.f32 %v944, %v940
      %v946 = vmul.f32 %v945, %v944
      %v947 = vmul.f32 0.5, %v946
      %v948 = vsub.f32 1.5, %v947
      %v949 = vmul.f32 %v944, %v948
      %vm950 = vweird.f32 %v940
      %vm951 = vweird.f32 %v944
      %vm952 = vmor %vm950, %vm951
      %v953 = vsel %vm952, %v944, %v949
      %v954 = vrsqrt.pop %v941
      %v955 = vmul.f32 %v954, %v941
      %v956 = vmul.f32 %v955, %v954
      %v957 = vmul.f32 0.5, %v956
      %v958 = vsub.f32 1.5, %v957
      %v959 = vmul.f32 %v954, %v958
      %vm960 = vweird.f32 %v941
      %vm961 = vweird.f32 %v954
      %vm962 = vmor %vm960, %vm961
      %v963 = vsel %vm962, %v954, %v959
      %v964 = vrsqrt.pop %v942
      %v965 = vmul.f32 %v964, %v942
      %v966 = vmul.f32 %v965, %v964
      %v967 = vmul.f32 0.5, %v966
      %v968 = vsub.f32 1.5, %v967
      %v969 = vmul.f32 %v964, %v968
      %vm970 = vweird.f32 %v942
      %vm971 = vweird.f32 %v964
      %vm972 = vmor %vm970, %vm971
      %v973 = vsel %vm972, %v964, %v969
      %v974 = vrsqrt.pop %v943
      %v975 = vmul.f32 %v974, %v943
      %v976 = vmul.f32 %v975, %v974
      %v977 = vmul.f32 0.5, %v976
      %v978 = vsub.f32 1.5, %v977
      %v979 = vmul.f32 %v974, %v978
      %vm980 = vweird.f32 %v943
      %vm981 = vweird.f32 %v974
      %vm982 = vmor %vm980, %vm981
      %v983 = vsel %vm982, %v974, %v979
      %v984 = vmul.f32 %v920, %v953
      %v985 = vmul.f32 %v921, %v963
      %v986 = vmul.f32 %v922, %v973
      %v987 = vmul.f32 %v923, %v983
      %v988 = vperm.slane %v895, 0
      %v989 = vmul.f32 %v984, %v988
      %v990 = vmul.f32 %v985, %v988
      %v991 = vmul.f32 %v986, %v988
      %v992 = vmul.f32 %v987, %v988
      %v993 = vperm.slane %v895, 1
      %v994 = vadd.f32 %v989, %v993
      %v995 = vadd.f32 %v990, %v993
      %v996 = vadd.f32 %v991, %v993
      %v997 = vadd.f32 %v992, %v993
      %vm998 = vcmp.ge.f32.partialorder %v994, 0.0
      %vm999 = vcmp.ge.f32.partialorder %v995, 0.0
      %vm1000 = vcmp.ge.f32.partialorder %v996, 0.0
      %vm1001 = vcmp.ge.f32.partialorder %v997, 0.0
      %v1002 = vperm.slane %v895, 2
      %v1003 = vmul.f32 %v1002, %v994
      %v1004 = vmul.f32 %v1002, %v995
      %v1005 = vmul.f32 %v1002, %v996
      %v1006 = vmul.f32 %v1002, %v997
      %v1007 = vsel %vm998, %v994, %v1003
      %v1008 = vsel %vm999, %v995, %v1004
      %v1009 = vsel %vm1000, %v996, %v1005
      %v1010 = vsel %vm1001, %v997, %v1006
      %v1011 = vpack.c.bf16 %v1008, %v1007
      %v1012 = vpack.c.bf16 %v1010, %v1009
      %v1017 = vunpack.c.l.b16 %v464
      %v1018 = vunpack.c.l.b16 %v465
      %v1019 = vunpack.c.l.b16 %v466
      %v1020 = vunpack.c.l.b16 %v467
      %v1021 = vpack.c.b16 %v1018, %v1017
      %v1022 = vpack.c.b16 %v1020, %v1019
      %vm1023 = vcmask 261120
      %v1025 = vsel %vm1023, %v1021, 0
      %v1028 = vsel %vm1023, %v1022, 0
      %1030 = vmatpush.bf16.msra.mxu0 0
      %1031 = vmatpush.bf16.msra.mxu0 0
      %1032 = vmatpush.bf16.msra.mxu0 0
      %1033 = vmatpush.bf16.msra.mxu0 0
      %1034 = vmatpush.bf16.msra.mxu0 0
      %1035 = vmatpush.bf16.msra.mxu0 0
      %1036 = vmatpush.bf16.msra.mxu0 %v1012
      %1037 = vmatpush.bf16.msra.mxu0 %v1011
      %1038 = vmatmul.bf16.gmra.mxu0 %v1025
      %v1039 = vpop.f32.mrf.mxu0
      %v1040 = vadd.f32 0.0, %v1039
      %v1041 = vpop.f32.mrf.mxu0
      %v1042 = vadd.f32 0.0, %v1041
      %1043 = vmatmul.bf16.gmra.mxu0 %v1028
      %v1044 = vpop.f32.mrf.mxu0
      %v1045 = vadd.f32 0.0, %v1044
      %v1046 = vpop.f32.mrf.mxu0
      %v1047 = vadd.f32 0.0, %v1046
      %1048 = vdwg.mxu0
      %1050 = vset.pattern.permute.xlu0 0
      %1051 = vperm.xlu0 %1050, %v468
      %v1052 = vpop.permute.xlu0 %1051
      %1055 = vset.pattern.permute.xlu0 0
      %1056 = vperm.xlu0 %1055, %v469
      %v1057 = vpop.permute.xlu0 %1056
      %1060 = vset.pattern.permute.xlu0 0
      %1061 = vperm.xlu0 %1060, %v470
      %v1062 = vpop.permute.xlu0 %1061
      %1065 = vset.pattern.permute.xlu0 0
      %1066 = vperm.xlu0 %1065, %v471
      %v1067 = vpop.permute.xlu0 %1066
      %v1069 = vmul.f32 %v1040, %v1052
      %v1070 = vmul.f32 %v1042, %v1057
      %v1071 = vmul.f32 %v1045, %v1062
      %v1072 = vmul.f32 %v1047, %v1067
      %v1073 = vadd.f32 %v1007, %v1069
      %v1074 = vadd.f32 %v1008, %v1070
      %v1075 = vadd.f32 %v1009, %v1071
      %v1076 = vadd.f32 %v1010, %v1072
      %v1077 = vld [vmem:[%s453] sm:$0xf]
      %v1078 = vld [vmem:[%s453 + $0x4] sm:$0xf]
      %v1079 = vld [vmem:[%s453 + $0x8] sm:$0xf]
      %v1080 = vld [vmem:[%s453 + $0xc] sm:$0xf]
      %v1081 = vld [vmem:[%s453 + $0x10] sm:$0xf]
      %v1082 = vld [vmem:[%s453 + $0x14] sm:$0xf]
      %v1083 = vld [vmem:[%s453 + $0x18] sm:$0xf]
      %v1084 = vld [vmem:[%s453 + $0x1c] sm:$0xf]
      %v1085 = vld [vmem:[%s453 + $0x20] sm:$0xf]
      %v1086 = vld [vmem:[%s453 + $0x24] sm:$0xf]
      %v1087 = vld [vmem:[%s453 + $0x28] sm:$0xf]
      %v1088 = vld [vmem:[%s453 + $0x2c] sm:$0xf]
      %v1089 = vld [vmem:[%s453 + $0x30] sm:$0xf]
      %v1090 = vld [vmem:[%s453 + $0x34] sm:$0xf]
      %v1091 = vld [vmem:[%s453 + $0x38] sm:$0xf]
      %v1092 = vld [vmem:[%s453 + $0x3c] sm:$0xf]
      %v1093 = vld [vmem:[%s458] sm:$0xf]
      %v1094 = vld [vmem:[%s458 + $0x4] sm:$0xf]
      %v1095 = vld [vmem:[%s458 + $0x8] sm:$0xf]
      %v1096 = vld [vmem:[%s458 + $0xc] sm:$0xf]
      %v1097 = vld [vmem:[%s458 + $0x10] sm:$0xf]
      %v1098 = vld [vmem:[%s458 + $0x14] sm:$0xf]
      %v1099 = vld [vmem:[%s458 + $0x18] sm:$0xf]
      %v1100 = vld [vmem:[%s458 + $0x1c] sm:$0xf]
      %v1101 = vld [vmem:[%s458 + $0x20] sm:$0xf]
      %v1102 = vld [vmem:[%s458 + $0x24] sm:$0xf]
      %v1103 = vld [vmem:[%s458 + $0x28] sm:$0xf]
      %v1104 = vld [vmem:[%s458 + $0x2c] sm:$0xf]
      %v1105 = vld [vmem:[%s458 + $0x30] sm:$0xf]
      %v1106 = vld [vmem:[%s458 + $0x34] sm:$0xf]
      %v1107 = vld [vmem:[%s458 + $0x38] sm:$0xf]
      %v1108 = vld [vmem:[%s458 + $0x3c] sm:$0xf]
      %v1109 = vpack.c.bf16 %v1074, %v1073
      %v1110 = vpack.c.bf16 %v1076, %v1075
      %v1111 = vperm.slane %v895, 3
      %v1128 = vunpack.c.l.b16 %v1077
      %v1129 = vunpack.c.l.b16 %v1078
      %v1130 = vunpack.c.l.b16 %v1079
      %v1131 = vunpack.c.l.b16 %v1080
      %v1132 = vunpack.c.l.b16 %v1081
      %v1133 = vunpack.c.l.b16 %v1082
      %v1134 = vunpack.c.l.b16 %v1083
      %v1135 = vunpack.c.l.b16 %v1084
      %v1136 = vunpack.c.l.b16 %v1085
      %v1137 = vunpack.c.l.b16 %v1086
      %v1138 = vunpack.c.l.b16 %v1087
      %v1139 = vunpack.c.l.b16 %v1088
      %v1140 = vunpack.c.l.b16 %v1089
      %v1141 = vunpack.c.l.b16 %v1090
      %v1142 = vunpack.c.l.b16 %v1091
      %v1143 = vunpack.c.l.b16 %v1092
      %v1144 = vpack.c.b16 %v1129, %v1128
      %v1145 = vpack.c.b16 %v1131, %v1130
      %v1146 = vpack.c.b16 %v1133, %v1132
      %v1147 = vpack.c.b16 %v1135, %v1134
      %v1148 = vpack.c.b16 %v1137, %v1136
      %v1149 = vpack.c.b16 %v1139, %v1138
      %v1150 = vpack.c.b16 %v1141, %v1140
      %v1151 = vpack.c.b16 %v1143, %v1142
      %1160 = vmatpush.bf16.msra.mxu0 %v1151
      %1161 = vmatpush.bf16.msra.mxu0 %v1150
      %1162 = vmatpush.bf16.msra.mxu0 %v1149
      %1163 = vmatpush.bf16.msra.mxu0 %v1148
      %1164 = vmatpush.bf16.msra.mxu0 %v1147
      %1165 = vmatpush.bf16.msra.mxu0 %v1146
      %1166 = vmatpush.bf16.msra.mxu0 %v1145
      %1167 = vmatpush.bf16.msra.mxu0 %v1144
      %1168 = vmatmul.bf16.gmra.mxu0 %v1109
      %v1169 = vpop.f32.mrf.mxu0
      %v1170 = vadd.f32 %v1111, %v1169
      %v1171 = vpop.f32.mrf.mxu0
      %v1172 = vadd.f32 %v1111, %v1171
      %1173 = vmatmul.bf16.gmra.mxu0 %v1110
      %v1174 = vpop.f32.mrf.mxu0
      %v1175 = vadd.f32 %v1111, %v1174
      %v1176 = vpop.f32.mrf.mxu0
      %v1177 = vadd.f32 %v1111, %v1176
      %1178 = vdwg.mxu0
      %v1179 = vperm.slane %v895, 4
      %v1180 = vmul.f32 %v1170, %v1179
      %v1181 = vmul.f32 %v1172, %v1179
      %v1182 = vmul.f32 %v1175, %v1179
      %v1183 = vmul.f32 %v1177, %v1179
      %v1184 = vperm.slane %v895, 5
      %v1185 = vadd.f32 %v1180, %v1184
      %v1186 = vadd.f32 %v1181, %v1184
      %v1187 = vadd.f32 %v1182, %v1184
      %v1188 = vadd.f32 %v1183, %v1184
      %v1189 = vmax.f32 %v1185, 0.0
      %v1190 = vmax.f32 %v1186, 0.0
      %v1191 = vmax.f32 %v1187, 0.0
      %v1192 = vmax.f32 %v1188, 0.0
      %v1193 = vpack.c.bf16 %v1190, %v1189
      %v1194 = vpack.c.bf16 %v1192, %v1191
      %v1195 = vperm.slane %v895, 6
      %v1212 = vunpack.c.l.b16 %v1093
      %v1213 = vunpack.c.l.b16 %v1094
      %v1214 = vunpack.c.l.b16 %v1095
      %v1215 = vunpack.c.l.b16 %v1096
      %v1216 = vunpack.c.l.b16 %v1097
      %v1217 = vunpack.c.l.b16 %v1098
      %v1218 = vunpack.c.l.b16 %v1099
      %v1219 = vunpack.c.l.b16 %v1100
      %v1220 = vunpack.c.l.b16 %v1101
      %v1221 = vunpack.c.l.b16 %v1102
      %v1222 = vunpack.c.l.b16 %v1103
      %v1223 = vunpack.c.l.b16 %v1104
      %v1224 = vunpack.c.l.b16 %v1105
      %v1225 = vunpack.c.l.b16 %v1106
      %v1226 = vunpack.c.l.b16 %v1107
      %v1227 = vunpack.c.l.b16 %v1108
      %v1228 = vpack.c.b16 %v1213, %v1212
      %v1229 = vpack.c.b16 %v1215, %v1214
      %v1230 = vpack.c.b16 %v1217, %v1216
      %v1231 = vpack.c.b16 %v1219, %v1218
      %v1232 = vpack.c.b16 %v1221, %v1220
      %v1233 = vpack.c.b16 %v1223, %v1222
      %v1234 = vpack.c.b16 %v1225, %v1224
      %v1235 = vpack.c.b16 %v1227, %v1226
      %1244 = vmatpush.bf16.msra.mxu0 %v1235
      %1245 = vmatpush.bf16.msra.mxu0 %v1234
      %1246 = vmatpush.bf16.msra.mxu0 %v1233
      %1247 = vmatpush.bf16.msra.mxu0 %v1232
      %1248 = vmatpush.bf16.msra.mxu0 %v1231
      %1249 = vmatpush.bf16.msra.mxu0 %v1230
      %1250 = vmatpush.bf16.msra.mxu0 %v1229
      %1251 = vmatpush.bf16.msra.mxu0 %v1228
      %1252 = vmatmul.bf16.gmra.mxu0 %v1193
      %v1253 = vpop.f32.mrf.mxu0
      %v1254 = vadd.f32 %v1195, %v1253
      %v1255 = vpop.f32.mrf.mxu0
      %v1256 = vadd.f32 %v1195, %v1255
      %1257 = vmatmul.bf16.gmra.mxu0 %v1194
      %v1258 = vpop.f32.mrf.mxu0
      %v1259 = vadd.f32 %v1195, %v1258
      %v1260 = vpop.f32.mrf.mxu0
      %v1261 = vadd.f32 %v1195, %v1260
      %1262 = vdwg.mxu0
      %v1263 = vadd.f32 %v897, %v1254
      %v1264 = vadd.f32 %v898, %v1256
      %v1265 = vadd.f32 %v899, %v1259
      %v1266 = vadd.f32 %v900, %v1261
      %1267 = vadd.xlane.f32.xlu0 %v1263
      %v1268 = vpop.xlane.xlu0 %1267
      %1269 = vadd.xlane.f32.xlu0 %v1264
      %v1270 = vpop.xlane.xlu0 %1269
      %1271 = vadd.xlane.f32.xlu0 %v1265
      %v1272 = vpop.xlane.xlu0 %1271
      %1273 = vadd.xlane.f32.xlu0 %v1266
      %v1274 = vpop.xlane.xlu0 %1273
      %v1275 = vmul.f32 %v1268, %v915
      %v1276 = vmul.f32 %v1270, %v915
      %v1277 = vmul.f32 %v1272, %v915
      %v1278 = vmul.f32 %v1274, %v915
      %v1279 = vsub.f32 %v1263, %v1275
      %v1280 = vsub.f32 %v1264, %v1276
      %v1281 = vsub.f32 %v1265, %v1277
      %v1282 = vsub.f32 %v1266, %v1278
      %v1283 = vmul.f32 %v1279, %v1279
      %v1284 = vmul.f32 %v1280, %v1280
      %v1285 = vmul.f32 %v1281, %v1281
      %v1286 = vmul.f32 %v1282, %v1282
      %1287 = vadd.xlane.f32.xlu0 %v1283
      %v1288 = vpop.xlane.xlu0 %1287
      %1289 = vadd.xlane.f32.xlu0 %v1284
      %v1290 = vpop.xlane.xlu0 %1289
      %1291 = vadd.xlane.f32.xlu0 %v1285
      %v1292 = vpop.xlane.xlu0 %1291
      %1293 = vadd.xlane.f32.xlu0 %v1286
      %v1294 = vpop.xlane.xlu0 %1293
      %v1295 = vmul.f32 %v1288, %v915
      %v1296 = vmul.f32 %v1290, %v915
      %v1297 = vmul.f32 %v1292, %v915
      %v1298 = vmul.f32 %v1294, %v915
      %v1299 = vadd.f32 %v1295, 1e-05
      %v1300 = vadd.f32 %v1296, 1e-05
      %v1301 = vadd.f32 %v1297, 1e-05
      %v1302 = vadd.f32 %v1298, 1e-05
      %v1303 = vrsqrt.pop %v1299
      %v1304 = vmul.f32 %v1303, %v1299
      %v1305 = vmul.f32 %v1304, %v1303
      %v1306 = vmul.f32 0.5, %v1305
      %v1307 = vsub.f32 1.5, %v1306
      %v1308 = vmul.f32 %v1303, %v1307
      %vm1309 = vweird.f32 %v1299
      %vm1310 = vweird.f32 %v1303
      %vm1311 = vmor %vm1309, %vm1310
      %v1312 = vsel %vm1311, %v1303, %v1308
      %v1313 = vrsqrt.pop %v1300
      %v1314 = vmul.f32 %v1313, %v1300
      %v1315 = vmul.f32 %v1314, %v1313
      %v1316 = vmul.f32 0.5, %v1315
      %v1317 = vsub.f32 1.5, %v1316
      %v1318 = vmul.f32 %v1313, %v1317
      %vm1319 = vweird.f32 %v1300
      %vm1320 = vweird.f32 %v1313
      %vm1321 = vmor %vm1319, %vm1320
      %v1322 = vsel %vm1321, %v1313, %v1318
      %v1323 = vrsqrt.pop %v1301
      %v1324 = vmul.f32 %v1323, %v1301
      %v1325 = vmul.f32 %v1324, %v1323
      %v1326 = vmul.f32 0.5, %v1325
      %v1327 = vsub.f32 1.5, %v1326
      %v1328 = vmul.f32 %v1323, %v1327
      %vm1329 = vweird.f32 %v1301
      %vm1330 = vweird.f32 %v1323
      %vm1331 = vmor %vm1329, %vm1330
      %v1332 = vsel %vm1331, %v1323, %v1328
      %v1333 = vrsqrt.pop %v1302
      %v1334 = vmul.f32 %v1333, %v1302
      %v1335 = vmul.f32 %v1334, %v1333
      %v1336 = vmul.f32 0.5, %v1335
      %v1337 = vsub.f32 1.5, %v1336
      %v1338 = vmul.f32 %v1333, %v1337
      %vm1339 = vweird.f32 %v1302
      %vm1340 = vweird.f32 %v1333
      %vm1341 = vmor %vm1339, %vm1340
      %v1342 = vsel %vm1341, %v1333, %v1338
      %v1343 = vmul.f32 %v1279, %v1312
      %v1344 = vmul.f32 %v1280, %v1322
      %v1345 = vmul.f32 %v1281, %v1332
      %v1346 = vmul.f32 %v1282, %v1342
      %v1347 = vperm.slane %v896, 0
      %v1348 = vmul.f32 %v1343, %v1347
      %v1349 = vmul.f32 %v1344, %v1347
      %v1350 = vmul.f32 %v1345, %v1347
      %v1351 = vmul.f32 %v1346, %v1347
      %v1352 = vperm.slane %v896, 1
      %v1353 = vadd.f32 %v1348, %v1352
      %v1354 = vadd.f32 %v1349, %v1352
      %v1355 = vadd.f32 %v1350, %v1352
      %v1356 = vadd.f32 %v1351, %v1352
      %vm1357 = vcmp.ge.f32.partialorder %v1353, 0.0
      %vm1358 = vcmp.ge.f32.partialorder %v1354, 0.0
      %vm1359 = vcmp.ge.f32.partialorder %v1355, 0.0
      %vm1360 = vcmp.ge.f32.partialorder %v1356, 0.0
      %v1361 = vperm.slane %v896, 2
      %v1362 = vmul.f32 %v1361, %v1353
      %v1363 = vmul.f32 %v1361, %v1354
      %v1364 = vmul.f32 %v1361, %v1355
      %v1365 = vmul.f32 %v1361, %v1356
      %v1366 = vsel %vm1357, %v1353, %v1362
      %v1367 = vsel %vm1358, %v1354, %v1363
      %v1368 = vsel %vm1359, %v1355, %v1364
      %v1369 = vsel %vm1360, %v1356, %v1365
      %1370 = vst [vmem:[%s13] sm:$0xff] %v1366
      %1371 = vst [vmem:[%s13 + $0x8] sm:$0xff] %v1367
      %1372 = vst [vmem:[%s13 + $0x10] sm:$0xff] %v1368
      %1373 = vst [vmem:[%s13 + $0x18] sm:$0xff] %v1369
      // Predicated region
      $region77: #{drug_encoder_forward.3} parent=71 // pred_check
        %p1374 = pneg %p325
      $region78: #{drug_encoder_forward.3} parent=71 // pred_check_branch
        %1376 = sbr.rel (%p1374) target = $region80
      $region79: #{drug_encoder_forward.3} parent=71 // pred_region
        _
      $region80: #{drug_encoder_forward.3} parent=71 // pred_fallthru
        _
      // Predicated region
      $region81: #{drug_encoder_forward.3} parent=71 // pred_check
        %p1377 = pneg %p325
      $region82: #{drug_encoder_forward.3} parent=71 // pred_check_branch
        %1379 = sbr.rel (%p1377) target = $region84
      $region83: #{drug_encoder_forward.3} parent=71 // pred_region
        _
      $region84: #{drug_encoder_forward.3} parent=71 // pred_fallthru
        _
    $region72: #{drug_encoder_forward.3} parent=5 // pred_fallthru
      _
    %p1380 = scmp.le.s32.totalorder 2, %s19
    // Predicated region
    $region85: #{drug_encoder_forward.3} parent=5 // pred_check
      %p1381 = pneg %p1380
    $region86: #{drug_encoder_forward.3} parent=5 // pred_check_branch
      %1383 = sbr.rel (%p1381) target = $region88
    $region87: #{drug_encoder_forward.3} parent=5 // pred_region
      %s1384 = ssub.s32 %s19, 2
    $region88: #{drug_encoder_forward.3} parent=5 // pred_fallthru
      _
  $region6: #{drug_encoder_forward.3} parent=0 // loop_footer
    %s23 = sadd.s32 1, %s19
  $region7: #{drug_encoder_forward.3} parent=0 // loop_footer_branch
    %18 = sbr.rel target = $region3
  $region8: #{drug_encoder_forward.3} parent=0 // loop_exit
    _

// kernel: drug_encoder_forward.5
$region0: #{drug_encoder_forward.5}
  #allocation0 [shape = 'u32[]', space=smem, size = 0x4, offset = 0x4, fixed_abs, tag = 'smem constant byte address 0x4 - core index']
  #allocation1 [shape = 'u32[72,128]{1,0:T(1,128)}', space=vmem, size = 0x9000, scoped, tag = 'internal scratch']
  %s0 = inlined_call_operand.vmem [shape: f32[8,256], index: 0, kind: input, shape index: {}]
  %s1 = inlined_call_operand.vmem [shape: bf16[8,8], index: 1, kind: input, shape index: {}]
  %s2 = inlined_call_operand.vmem [shape: f32[8,1], index: 2, kind: input, shape index: {}]
  %s3 = inlined_call_operand.vmem [shape: bf16[256,128], index: 3, kind: input, shape index: {}]
  %s4 = inlined_call_operand.vmem [shape: bf16[128,128], index: 4, kind: input, shape index: {}]
  %s5 = inlined_call_operand.vmem [shape: f32[8,128], index: 5, kind: input, shape index: {}]
  %s6 = inlined_call_operand.vmem [shape: bf16[10,128,128], index: 6, kind: input, shape index: {}]
  %s7 = inlined_call_operand.vmem [shape: bf16[10,128,128], index: 7, kind: input, shape index: {}]
  %s8 = inlined_call_operand.vmem [shape: f32[10,8,128], index: 8, kind: input, shape index: {}]
  %s9 = inlined_call_operand.hbm [shape: f32[8,128], index: 9, kind: output, shape index: {}]
  %s10 = sld [smem:[#allocation0]]
  $region73: #{drug_encoder_forward.5} parent=0
    _
  %s12 = ssub.s32 1, %s10
  %s13 = scalar_select 0, %s12, %s10
  $region1: #{drug_encoder_forward.5} parent=0
    #allocation2 [shape = 'u8[4096]{0}', space=vmem, size = 0x1000, scoped, tag = 'output window, operand 0, single buffered']
    #allocation3 [shape = 's32[2]{0}', space=sflag, size = 0x8, scoped, tag = 'scoped memory for drug_encoder_forward.5']
    %14 = vsyncpa [#allocation3], 0
    loop: start=0, step=1, limit=12
    $region2: #{drug_encoder_forward.5} parent=1 // loop_pre_header
      _
    $region3: #{drug_encoder_forward.5} parent=1 // loop_header
      %s16 = sphi 0, %s20
      %p17 = scmp.ge.s32.totalorder %s16, 12
      %s24 = sphi 0, %s24
      %s26 = sphi 0, %s24
      %s27 = sphi 0, %s26
      %s41 = sphi 0, %s27
      %s45 = sphi 0, %s45
      %s47 = sphi 0, %s45
      %s48 = sphi 0, %s47
      %s62 = sphi 0, %s48
      %s66 = sphi 0, %s66
      %s68 = sphi 0, %s66
      %s69 = sphi 0, %s68
      %s83 = sphi 0, %s69
      %s87 = sphi 0, %s87
      %s89 = sphi 0, %s87
      %s90 = sphi 0, %s89
      %s104 = sphi 0, %s90
      %s108 = sphi 0, %s108
      %s110 = sphi 0, %s108
      %s111 = sphi 0, %s110
      %s125 = sphi 0, %s111
      %s129 = sphi 0, %s129
      %s131 = sphi 0, %s129
      %s132 = sphi 0, %s131
      %s146 = sphi 0, %s132
      %s152 = sphi 0, %s154
      %s155 = sphi 0, %s152
      %s156 = sphi 0, %s155
      %s172 = sphi 0, %s156
      %s178 = sphi 0, %s180
      %s181 = sphi 0, %s178
      %s182 = sphi 0, %s181
      %s198 = sphi 0, %s182
      %s204 = sphi 0, %s206
      %s207 = sphi 0, %s204
      %s208 = sphi 0, %s207
      %s224 = sphi 0, %s208
      %s228 = sphi 0, %s228
      %s230 = sphi 0, %s228
      %s231 = sphi 0, %s230
      %s245 = sphi 0, %s231
    $region4: #{drug_encoder_forward.5} parent=1 // loop_header_branch
      %19 = sbr.rel (%p17) target = $region8
    $region5: #{drug_encoder_forward.5} parent=1 // loop_body
      %s21 = ssub.s32 %s16, 1
      %s22 = ssub.s32 %s16, 2
      %s23 = sadd.s32 %s16, 1
      %s25 = sadd.s32 %s24, 1
      %p28 = scmp.eq.s32.totalorder %s16, 9
      %p29 = scmp.ne.s32.totalorder %s24, %s26
      %p30 = scmp.eq.s32.totalorder %s16, 0
      %p31 = por %p29, %p30
      %p32 = scmp.ne.s32.totalorder %s24, %s26
      %p33 = scmp.eq.s32.totalorder %s21, 9
      %p34 = por %p32, %p33
      %p35 = scmp.ne.s32.totalorder %s26, %s27
      %p36 = scmp.eq.s32.totalorder %s21, 0
      %p37 = por %p35, %p36
      %p38 = scmp.ne.s32.totalorder %s26, %s27
      %p39 = scmp.eq.s32.totalorder %s22, 9
      %p40 = por %p38, %p39
      %p42 = scmp.ne.s32.totalorder %s27, %s41
      %p43 = scmp.eq.s32.totalorder %s22, 0
      %p44 = por %p42, %p43
      %s46 = sadd.s32 %s45, 1
      %p49 = scmp.eq.s32.totalorder %s16, 9
      %p50 = scmp.ne.s32.totalorder %s45, %s47
      %p51 = scmp.eq.s32.totalorder %s16, 0
      %p52 = por %p50, %p51
      %p53 = scmp.ne.s32.totalorder %s45, %s47
      %p54 = scmp.eq.s32.totalorder %s21, 9
      %p55 = por %p53, %p54
      %p56 = scmp.ne.s32.totalorder %s47, %s48
      %p57 = scmp.eq.s32.totalorder %s21, 0
      %p58 = por %p56, %p57
      %p59 = scmp.ne.s32.totalorder %s47, %s48
      %p60 = scmp.eq.s32.totalorder %s22, 9
      %p61 = por %p59, %p60
      %p63 = scmp.ne.s32.totalorder %s48, %s62
      %p64 = scmp.eq.s32.totalorder %s22, 0
      %p65 = por %p63, %p64
      %s67 = sadd.s32 %s66, 1
      %p70 = scmp.eq.s32.totalorder %s16, 9
      %p71 = scmp.ne.s32.totalorder %s66, %s68
      %p72 = scmp.eq.s32.totalorder %s16, 0
      %p73 = por %p71, %p72
      %p74 = scmp.ne.s32.totalorder %s66, %s68
      %p75 = scmp.eq.s32.totalorder %s21, 9
      %p76 = por %p74, %p75
      %p77 = scmp.ne.s32.totalorder %s68, %s69
      %p78 = scmp.eq.s32.totalorder %s21, 0
      %p79 = por %p77, %p78
      %p80 = scmp.ne.s32.totalorder %s68, %s69
      %p81 = scmp.eq.s32.totalorder %s22, 9
      %p82 = por %p80, %p81
      %p84 = scmp.ne.s32.totalorder %s69, %s83
      %p85 = scmp.eq.s32.totalorder %s22, 0
      %p86 = por %p84, %p85
      %s88 = sadd.s32 %s87, 1
      %p91 = scmp.eq.s32.totalorder %s16, 9
      %p92 = scmp.ne.s32.totalorder %s87, %s89
      %p93 = scmp.eq.s32.totalorder %s16, 0
      %p94 = por %p92, %p93
      %p95 = scmp.ne.s32.totalorder %s87, %s89
      %p96 = scmp.eq.s32.totalorder %s21, 9
      %p97 = por %p95, %p96
      %p98 = scmp.ne.s32.totalorder %s89, %s90
      %p99 = scmp.eq.s32.totalorder %s21, 0
      %p100 = por %p98, %p99
      %p101 = scmp.ne.s32.totalorder %s89, %s90
      %p102 = scmp.eq.s32.totalorder %s22, 9
      %p103 = por %p101, %p102
      %p105 = scmp.ne.s32.totalorder %s90, %s104
      %p106 = scmp.eq.s32.totalorder %s22, 0
      %p107 = por %p105, %p106
      %s109 = sadd.s32 %s108, 1
      %p112 = scmp.eq.s32.totalorder %s16, 9
      %p113 = scmp.ne.s32.totalorder %s108, %s110
      %p114 = scmp.eq.s32.totalorder %s16, 0
      %p115 = por %p113, %p114
      %p116 = scmp.ne.s32.totalorder %s108, %s110
      %p117 = scmp.eq.s32.totalorder %s21, 9
      %p118 = por %p116, %p117
      %p119 = scmp.ne.s32.totalorder %s110, %s111
      %p120 = scmp.eq.s32.totalorder %s21, 0
      %p121 = por %p119, %p120
      %p122 = scmp.ne.s32.totalorder %s110, %s111
      %p123 = scmp.eq.s32.totalorder %s22, 9
      %p124 = por %p122, %p123
      %p126 = scmp.ne.s32.totalorder %s111, %s125
      %p127 = scmp.eq.s32.totalorder %s22, 0
      %p128 = por %p126, %p127
      %s130 = sadd.s32 %s129, 1
      %p133 = scmp.eq.s32.totalorder %s16, 9
      %p134 = scmp.ne.s32.totalorder %s129, %s131
      %p135 = scmp.eq.s32.totalorder %s16, 0
      %p136 = por %p134, %p135
      %p137 = scmp.ne.s32.totalorder %s129, %s131
      %p138 = scmp.eq.s32.totalorder %s21, 9
      %p139 = por %p137, %p138
      %p140 = scmp.ne.s32.totalorder %s131, %s132
      %p141 = scmp.eq.s32.totalorder %s21, 0
      %p142 = por %p140, %p141
      %p143 = scmp.ne.s32.totalorder %s131, %s132
      %p144 = scmp.eq.s32.totalorder %s22, 9
      %p145 = por %p143, %p144
      %p147 = scmp.ne.s32.totalorder %s132, %s146
      %p148 = scmp.eq.s32.totalorder %s22, 0
      %p149 = por %p147, %p148
      %s150 = ssub.s32 %s16, %s23
      %p151 = scmp.eq.s32.totalorder %s150, 0
      %s153 = sadd.s32 %s152, 1
      %s154 = scalar_select %p151, %s152, %s153
      %p157 = pneg %p151
      %p158 = scmp.eq.s32.totalorder %s16, 9
      %p159 = por %p157, %p158
      %p160 = scmp.ne.s32.totalorder %s152, %s155
      %p161 = scmp.eq.s32.totalorder %s16, 0
      %p162 = por %p160, %p161
      %p163 = scmp.ne.s32.totalorder %s152, %s155
      %p164 = scmp.eq.s32.totalorder %s21, 9
      %p165 = por %p163, %p164
      %p166 = scmp.ne.s32.totalorder %s155, %s156
      %p167 = scmp.eq.s32.totalorder %s21, 0
      %p168 = por %p166, %p167
      %p169 = scmp.ne.s32.totalorder %s155, %s156
      %p170 = scmp.eq.s32.totalorder %s22, 9
      %p171 = por %p169, %p170
      %p173 = scmp.ne.s32.totalorder %s156, %s172
      %p174 = scmp.eq.s32.totalorder %s22, 0
      %p175 = por %p173, %p174
      %s176 = ssub.s32 %s16, %s23
      %p177 = scmp.eq.s32.totalorder %s176, 0
      %s179 = sadd.s32 %s178, 1
      %s180 = scalar_select %p177, %s178, %s179
      %p183 = pneg %p177
      %p184 = scmp.eq.s32.totalorder %s16, 9
      %p185 = por %p183, %p184
      %p186 = scmp.ne.s32.totalorder %s178, %s181
      %p187 = scmp.eq.s32.totalorder %s16, 0
      %p188 = por %p186, %p187
      %p189 = scmp.ne.s32.totalorder %s178, %s181
      %p190 = scmp.eq.s32.totalorder %s21, 9
      %p191 = por %p189, %p190
      %p192 = scmp.ne.s32.totalorder %s181, %s182
      %p193 = scmp.eq.s32.totalorder %s21, 0
      %p194 = por %p192, %p193
      %p195 = scmp.ne.s32.totalorder %s181, %s182
      %p196 = scmp.eq.s32.totalorder %s22, 9
      %p197 = por %p195, %p196
      %p199 = scmp.ne.s32.totalorder %s182, %s198
      %p200 = scmp.eq.s32.totalorder %s22, 0
      %p201 = por %p199, %p200
      %s202 = ssub.s32 %s16, %s23
      %p203 = scmp.eq.s32.totalorder %s202, 0
      %s205 = sadd.s32 %s204, 1
      %s206 = scalar_select %p203, %s204, %s205
      %p209 = pneg %p203
      %p210 = scmp.eq.s32.totalorder %s16, 9
      %p211 = por %p209, %p210
      %p212 = scmp.ne.s32.totalorder %s204, %s207
      %p213 = scmp.eq.s32.totalorder %s16, 0
      %p214 = por %p212, %p213
      %p215 = scmp.ne.s32.totalorder %s204, %s207
      %p216 = scmp.eq.s32.totalorder %s21, 9
      %p217 = por %p215, %p216
      %p218 = scmp.ne.s32.totalorder %s207, %s208
      %p219 = scmp.eq.s32.totalorder %s21, 0
      %p220 = por %p218, %p219
      %p221 = scmp.ne.s32.totalorder %s207, %s208
      %p222 = scmp.eq.s32.totalorder %s22, 9
      %p223 = por %p221, %p222
      %p225 = scmp.ne.s32.totalorder %s208, %s224
      %p226 = scmp.eq.s32.totalorder %s22, 0
      %p227 = por %p225, %p226
      %s229 = sadd.s32 %s228, 1
      %p232 = scmp.eq.s32.totalorder %s16, 9
      %p233 = scmp.ne.s32.totalorder %s228, %s230
      %p234 = scmp.eq.s32.totalorder %s16, 0
      %p235 = por %p233, %p234
      %p236 = scmp.ne.s32.totalorder %s228, %s230
      %p237 = scmp.eq.s32.totalorder %s21, 9
      %p238 = por %p236, %p237
      %p239 = scmp.ne.s32.totalorder %s230, %s231
      %p240 = scmp.eq.s32.totalorder %s21, 0
      %p241 = por %p239, %p240
      %p242 = scmp.ne.s32.totalorder %s230, %s231
      %p243 = scmp.eq.s32.totalorder %s22, 9
      %p244 = por %p242, %p243
      %p246 = scmp.ne.s32.totalorder %s231, %s245
      %p247 = scmp.eq.s32.totalorder %s22, 0
      %p248 = por %p246, %p247
      %p249 = scmp.le.s32.totalorder 1, %s16
      %p250 = scmp.lt.s32.totalorder %s16, 11
      %p251 = pnand %p249, %p250
      %p252 = pneg %p251
      // Predicated region
      $region9: #{drug_encoder_forward.5} parent=5 // pred_check
        _
      $region10: #{drug_encoder_forward.5} parent=5 // pred_check_branch
        %254 = sbr.rel (%p251) target = $region12
      $region11: #{drug_encoder_forward.5} parent=5 // pred_region
        %s255 = ssub.s32 %s16, 1
        // Predicated region
        $region13: #{drug_encoder_forward.5} parent=11 // pred_check
          %p256 = pneg %p37
        $region14: #{drug_encoder_forward.5} parent=11 // pred_check_branch
          %258 = sbr.rel (%p256) target = $region16
        $region15: #{drug_encoder_forward.5} parent=11 // pred_region
          _
        $region16: #{drug_encoder_forward.5} parent=11 // pred_fallthru
          _
        // Predicated region
        $region17: #{drug_encoder_forward.5} parent=11 // pred_check
          %p259 = pneg %p58
        $region18: #{drug_encoder_forward.5} parent=11 // pred_check_branch
          %261 = sbr.rel (%p259) target = $region20
        $region19: #{drug_encoder_forward.5} parent=11 // pred_region
          _
        $region20: #{drug_encoder_forward.5} parent=11 // pred_fallthru
          _
        // Predicated region
        $region21: #{drug_encoder_forward.5} parent=11 // pred_check
          %p262 = pneg %p79
        $region22: #{drug_encoder_forward.5} parent=11 // pred_check_branch
          %264 = sbr.rel (%p262) target = $region24
        $region23: #{drug_encoder_forward.5} parent=11 // pred_region
          _
        $region24: #{drug_encoder_forward.5} parent=11 // pred_fallthru
          _
        // Predicated region
        $region25: #{drug_encoder_forward.5} parent=11 // pred_check
          %p265 = pneg %p100
        $region26: #{drug_encoder_forward.5} parent=11 // pred_check_branch
          %267 = sbr.rel (%p265) target = $region28
        $region27: #{drug_encoder_forward.5} parent=11 // pred_region
          _
        $region28: #{drug_encoder_forward.5} parent=11 // pred_fallthru
          _
        // Predicated region
        $region29: #{drug_encoder_forward.5} parent=11 // pred_check
          %p268 = pneg %p121
        $region30: #{drug_encoder_forward.5} parent=11 // pred_check_branch
          %270 = sbr.rel (%p268) target = $region32
        $region31: #{drug_encoder_forward.5} parent=11 // pred_region
          _
        $region32: #{drug_encoder_forward.5} parent=11 // pred_fallthru
          _
        // Predicated region
        $region33: #{drug_encoder_forward.5} parent=11 // pred_check
          %p271 = pneg %p142
        $region34: #{drug_encoder_forward.5} parent=11 // pred_check_branch
          %273 = sbr.rel (%p271) target = $region36
        $region35: #{drug_encoder_forward.5} parent=11 // pred_region
          _
        $region36: #{drug_encoder_forward.5} parent=11 // pred_fallthru
          _
      $region12: #{drug_encoder_forward.5} parent=5 // pred_fallthru
        _
      %p274 = scmp.lt.s32.totalorder %s16, 10
      // Predicated region
      $region37: #{drug_encoder_forward.5} parent=5 // pred_check
        %p275 = pneg %p274
      $region38: #{drug_encoder_forward.5} parent=5 // pred_check_branch
        %277 = sbr.rel (%p275) target = $region40
      $region39: #{drug_encoder_forward.5} parent=5 // pred_region
        // Predicated region
        $region41: #{drug_encoder_forward.5} parent=39 // pred_check
          %p278 = pneg %p162
        $region42: #{drug_encoder_forward.5} parent=39 // pred_check_branch
          %280 = sbr.rel (%p278) target = $region44
        $region43: #{drug_encoder_forward.5} parent=39 // pred_region
          %p281 = scmp.lt.s32.totalorder %s16, 9
          %s282 = scalar_select %p281, %s16, 9
          %s283 = smul.addr %s282, 16
          %s284 = smul.addr %s283, 4
          %s285 = scalar_lea.vmem %s6, %s284
        $region44: #{drug_encoder_forward.5} parent=39 // pred_fallthru
          _
        // Predicated region
        $region45: #{drug_encoder_forward.5} parent=39 // pred_check
          %p286 = pneg %p188
        $region46: #{drug_encoder_forward.5} parent=39 // pred_check_branch
          %288 = sbr.rel (%p286) target = $region48
        $region47: #{drug_encoder_forward.5} parent=39 // pred_region
          %p289 = scmp.lt.s32.totalorder %s16, 9
          %s290 = scalar_select %p289, %s16, 9
          %s291 = smul.addr %s290, 16
          %s292 = smul.addr %s291, 4
          %s293 = scalar_lea.vmem %s7, %s292
        $region48: #{drug_encoder_forward.5} parent=39 // pred_fallthru
          _
        // Predicated region
        $region49: #{drug_encoder_forward.5} parent=39 // pred_check
          %p294 = pneg %p214
        $region50: #{drug_encoder_forward.5} parent=39 // pred_check_branch
          %296 = sbr.rel (%p294) target = $region52
        $region51: #{drug_encoder_forward.5} parent=39 // pred_region
          %p297 = scmp.lt.s32.totalorder %s16, 9
          %s298 = scalar_select %p297, %s16, 9
          %s299 = smul.addr %s298, 8
          %s300 = scalar_lea.vmem %s8, %s299
        $region52: #{drug_encoder_forward.5} parent=39 // pred_fallthru
          _
      $region40: #{drug_encoder_forward.5} parent=5 // pred_fallthru
        _
      %p301 = scmp.le.s32.totalorder 1, %s16
      %p302 = scmp.lt.s32.totalorder %s16, 11
      %p303 = pnand %p301, %p302
      %p304 = pneg %p303
      // Predicated region
      $region53: #{drug_encoder_forward.5} parent=5 // pred_check
        _
      $region54: #{drug_encoder_forward.5} parent=5 // pred_check_branch
        %306 = sbr.rel (%p303) target = $region56
      $region55: #{drug_encoder_forward.5} parent=5 // pred_region
        %s307 = ssub.s32 %s16, 1
        %p308 = pneg %p37
        %p309 = pneg %p34
        %p310 = pneg %p58
        %p311 = pneg %p55
        %p312 = pneg %p79
        %p313 = pneg %p76
        %p314 = pneg %p100
        %p315 = pneg %p97
        %p316 = pneg %p121
        %p317 = pneg %p118
        %p318 = pneg %p142
        %p319 = pneg %p139
        %p320 = scmp.lt.s32.totalorder %s21, 9
        %s321 = scalar_select %p320, %s21, 9
        %s322 = smul.addr %s321, 16
        %s323 = smul.addr %s322, 4
        %s324 = scalar_lea.vmem %s6, %s323
        %p325 = pneg %p168
        %p326 = pneg %p165
        %p327 = scmp.lt.s32.totalorder %s21, 9
        %s328 = scalar_select %p327, %s21, 9
        %s329 = smul.addr %s328, 16
        %s330 = smul.addr %s329, 4
        %s331 = scalar_lea.vmem %s7, %s330
        %p332 = pneg %p194
        %p333 = pneg %p191
        %p334 = scmp.lt.s32.totalorder %s21, 9
        %s335 = scalar_select %p334, %s21, 9
        %s336 = smul.addr %s335, 8
        %s337 = scalar_lea.vmem %s8, %s336
        %p338 = pneg %p220
        %p339 = pneg %p217
        %p340 = pneg %p241
        %p341 = pneg %p238
        %p342 = scmp.lt.s32.totalorder %s21, 9
        %s343 = scalar_select %p342, %s21, 9
        %s344 = smul.addr %s343, 16
        %s345 = smul.addr %s344, 4
        %s346 = scalar_lea.vmem %s6, %s345
        %p347 = scmp.lt.s32.totalorder %s21, 9
        %s348 = scalar_select %p347, %s21, 9
        %s349 = smul.addr %s348, 16
        %s350 = smul.addr %s349, 4
        %s351 = scalar_lea.vmem %s7, %s350
        %p352 = scmp.lt.s32.totalorder %s21, 9
        %s353 = scalar_select %p352, %s21, 9
        %s354 = smul.addr %s353, 8
        %s355 = scalar_lea.vmem %s8, %s354
        %v357 = vld [vmem:[%s1] sm:$0xf]
        %v358 = vld [vmem:[%s2] sm:$0xff]
        %p359 = scmp.eq.s32.totalorder %s21, 0
        // Predicated region
        $region57: #{drug_encoder_forward.5} parent=55 // pred_check
          %p360 = pneg %p359
        $region58: #{drug_encoder_forward.5} parent=55 // pred_check_branch
          %362 = sbr.rel (%p360) target = $region60
        $region59: #{drug_encoder_forward.5} parent=55 // pred_region
          %v363 = vld [vmem:[%s5] sm:$0xff]
          %v364 = vld [vmem:[%s0] sm:$0xff]
          %v365 = vld [vmem:[%s0 + $0x8] sm:$0xff]
          %v366 = vpack.c.bf16 %v364, %v364
          %v367 = vpack.c.bf16 %v365, %v365
          %v368 = vld [vmem:[%s3] sm:$0xf]
          %v369 = vld [vmem:[%s3 + $0x4] sm:$0xf]
          %v370 = vld [vmem:[%s3 + $0x8] sm:$0xf]
          %v371 = vld [vmem:[%s3 + $0xc] sm:$0xf]
          %v372 = vld [vmem:[%s3 + $0x10] sm:$0xf]
          %v373 = vld [vmem:[%s3 + $0x14] sm:$0xf]
          %v374 = vld [vmem:[%s3 + $0x18] sm:$0xf]
          %v375 = vld [vmem:[%s3 + $0x1c] sm:$0xf]
          %v376 = vld [vmem:[%s3 + $0x20] sm:$0xf]
          %v377 = vld [vmem:[%s3 + $0x24] sm:$0xf]
          %v378 = vld [vmem:[%s3 + $0x28] sm:$0xf]
          %v379 = vld [vmem:[%s3 + $0x2c] sm:$0xf]
          %v380 = vld [vmem:[%s3 + $0x30] sm:$0xf]
          %v381 = vld [vmem:[%s3 + $0x34] sm:$0xf]
          %v382 = vld [vmem:[%s3 + $0x38] sm:$0xf]
          %v383 = vld [vmem:[%s3 + $0x3c] sm:$0xf]
          %v384 = vld [vmem:[%s3 + $0x40] sm:$0xf]
          %v385 = vld [vmem:[%s3 + $0x44] sm:$0xf]
          %v386 = vld [vmem:[%s3 + $0x48] sm:$0xf]
          %v387 = vld [vmem:[%s3 + $0x4c] sm:$0xf]
          %v388 = vld [vmem:[%s3 + $0x50] sm:$0xf]
          %v389 = vld [vmem:[%s3 + $0x54] sm:$0xf]
          %v390 = vld [vmem:[%s3 + $0x58] sm:$0xf]
          %v391 = vld [vmem:[%s3 + $0x5c] sm:$0xf]
          %v392 = vld [vmem:[%s3 + $0x60] sm:$0xf]
          %v393 = vld [vmem:[%s3 + $0x64] sm:$0xf]
          %v394 = vld [vmem:[%s3 + $0x68] sm:$0xf]
          %v395 = vld [vmem:[%s3 + $0x6c] sm:$0xf]
          %v396 = vld [vmem:[%s3 + $0x70] sm:$0xf]
          %v397 = vld [vmem:[%s3 + $0x74] sm:$0xf]
          %v398 = vld [vmem:[%s3 + $0x78] sm:$0xf]
          %v399 = vld [vmem:[%s3 + $0x7c] sm:$0xf]
          %v400 = vperm.slane %v363, 0
          %v433 = vunpack.c.l.b16 %v368
          %v434 = vunpack.c.l.b16 %v369
          %v435 = vunpack.c.l.b16 %v370
          %v436 = vunpack.c.l.b16 %v371
          %v437 = vunpack.c.l.b16 %v372
          %v438 = vunpack.c.l.b16 %v373
          %v439 = vunpack.c.l.b16 %v374
          %v440 = vunpack.c.l.b16 %v375
          %v441 = vunpack.c.l.b16 %v376
          %v442 = vunpack.c.l.b16 %v377
          %v443 = vunpack.c.l.b16 %v378
          %v444 = vunpack.c.l.b16 %v379
          %v445 = vunpack.c.l.b16 %v380
          %v446 = vunpack.c.l.b16 %v381
          %v447 = vunpack.c.l.b16 %v382
          %v448 = vunpack.c.l.b16 %v383
          %v449 = vunpack.c.l.b16 %v384
          %v450 = vunpack.c.l.b16 %v385
          %v451 = vunpack.c.l.b16 %v386
          %v452 = vunpack.c.l.b16 %v387
          %v453 = vunpack.c.l.b16 %v388
          %v454 = vunpack.c.l.b16 %v389
          %v455 = vunpack.c.l.b16 %v390
          %v456 = vunpack.c.l.b16 %v391
          %v457 = vunpack.c.l.b16 %v392
          %v458 = vunpack.c.l.b16 %v393
          %v459 = vunpack.c.l.b16 %v394
          %v460 = vunpack.c.l.b16 %v395
          %v461 = vunpack.c.l.b16 %v396
          %v462 = vunpack.c.l.b16 %v397
          %v463 = vunpack.c.l.b16 %v398
          %v464 = vunpack.c.l.b16 %v399
          %v465 = vpack.c.b16 %v434, %v433
          %v466 = vpack.c.b16 %v436, %v435
          %v467 = vpack.c.b16 %v438, %v437
          %v468 = vpack.c.b16 %v440, %v439
          %v469 = vpack.c.b16 %v442, %v441
          %v470 = vpack.c.b16 %v444, %v443
          %v471 = vpack.c.b16 %v446, %v445
          %v472 = vpack.c.b16 %v448, %v447
          %v473 = vpack.c.b16 %v450, %v449
          %v474 = vpack.c.b16 %v452, %v451
          %v475 = vpack.c.b16 %v454, %v453
          %v476 = vpack.c.b16 %v456, %v455
          %v477 = vpack.c.b16 %v458, %v457
          %v478 = vpack.c.b16 %v460, %v459
          %v479 = vpack.c.b16 %v462, %v461
          %v480 = vpack.c.b16 %v464, %v463
          %497 = vmatpush.bf16.msra.mxu0 %v472
          %498 = vmatpush.bf16.msra.mxu0 %v471
          %499 = vmatpush.bf16.msra.mxu0 %v470
          %500 = vmatpush.bf16.msra.mxu0 %v469
          %501 = vmatpush.bf16.msra.mxu0 %v468
          %502 = vmatpush.bf16.msra.mxu0 %v467
          %503 = vmatpush.bf16.msra.mxu0 %v466
          %504 = vmatpush.bf16.msra.mxu0 %v465
          %505 = vmatmul.bf16.gmra.mxu0 %v366
          %v506 = vpop.f32.mrf.mxu0
          %v507 = vadd.f32 %v400, %v506
          %v508 = vpop.f32.mrf.mxu0
          %509 = vdwg.mxu0
          %510 = vmatpush.bf16.msra.mxu0 %v480
          %511 = vmatpush.bf16.msra.mxu0 %v479
          %512 = vmatpush.bf16.msra.mxu0 %v478
          %513 = vmatpush.bf16.msra.mxu0 %v477
          %514 = vmatpush.bf16.msra.mxu0 %v476
          %515 = vmatpush.bf16.msra.mxu0 %v475
          %516 = vmatpush.bf16.msra.mxu0 %v474
          %517 = vmatpush.bf16.msra.mxu0 %v473
          %518 = vmatmul.bf16.gmra.mxu0 %v367
          %v519 = vpop.f32.mrf.mxu0
          %v520 = vadd.f32 %v507, %v519
          %v521 = vpop.f32.mrf.mxu0
          %522 = vdwg.mxu0
          %vm523 = vcmp.ge.f32.partialorder %v520, 0.0
          %v524 = vperm.slane %v363, 1
          %v525 = vmul.f32 %v524, %v520
          %v526 = vsel %vm523, %v520, %v525
          %v527 = vpack.c.bf16 %v526, %v526
          %v528 = vld [vmem:[%s4] sm:$0xf]
          %v529 = vld [vmem:[%s4 + $0x4] sm:$0xf]
          %v530 = vld [vmem:[%s4 + $0x8] sm:$0xf]
          %v531 = vld [vmem:[%s4 + $0xc] sm:$0xf]
          %v532 = vld [vmem:[%s4 + $0x10] sm:$0xf]
          %v533 = vld [vmem:[%s4 + $0x14] sm:$0xf]
          %v534 = vld [vmem:[%s4 + $0x18] sm:$0xf]
          %v535 = vld [vmem:[%s4 + $0x1c] sm:$0xf]
          %v536 = vld [vmem:[%s4 + $0x20] sm:$0xf]
          %v537 = vld [vmem:[%s4 + $0x24] sm:$0xf]
          %v538 = vld [vmem:[%s4 + $0x28] sm:$0xf]
          %v539 = vld [vmem:[%s4 + $0x2c] sm:$0xf]
          %v540 = vld [vmem:[%s4 + $0x30] sm:$0xf]
          %v541 = vld [vmem:[%s4 + $0x34] sm:$0xf]
          %v542 = vld [vmem:[%s4 + $0x38] sm:$0xf]
          %v543 = vld [vmem:[%s4 + $0x3c] sm:$0xf]
          %v544 = vperm.slane %v363, 2
          %v561 = vunpack.c.l.b16 %v528
          %v562 = vunpack.c.l.b16 %v529
          %v563 = vunpack.c.l.b16 %v530
          %v564 = vunpack.c.l.b16 %v531
          %v565 = vunpack.c.l.b16 %v532
          %v566 = vunpack.c.l.b16 %v533
          %v567 = vunpack.c.l.b16 %v534
          %v568 = vunpack.c.l.b16 %v535
          %v569 = vunpack.c.l.b16 %v536
          %v570 = vunpack.c.l.b16 %v537
          %v571 = vunpack.c.l.b16 %v538
          %v572 = vunpack.c.l.b16 %v539
          %v573 = vunpack.c.l.b16 %v540
          %v574 = vunpack.c.l.b16 %v541
          %v575 = vunpack.c.l.b16 %v542
          %v576 = vunpack.c.l.b16 %v543
          %v577 = vpack.c.b16 %v562, %v561
          %v578 = vpack.c.b16 %v564, %v563
          %v579 = vpack.c.b16 %v566, %v565
          %v580 = vpack.c.b16 %v568, %v567
          %v581 = vpack.c.b16 %v570, %v569
          %v582 = vpack.c.b16 %v572, %v571
          %v583 = vpack.c.b16 %v574, %v573
          %v584 = vpack.c.b16 %v576, %v575
          %593 = vmatpush.bf16.msra.mxu0 %v584
          %594 = vmatpush.bf16.msra.mxu0 %v583
          %595 = vmatpush.bf16.msra.mxu0 %v582
          %596 = vmatpush.bf16.msra.mxu0 %v581
          %597 = vmatpush.bf16.msra.mxu0 %v580
          %598 = vmatpush.bf16.msra.mxu0 %v579
          %599 = vmatpush.bf16.msra.mxu0 %v578
          %600 = vmatpush.bf16.msra.mxu0 %v577
          %601 = vmatmul.bf16.gmra.mxu0 %v527
          %v602 = vpop.f32.mrf.mxu0
          %v603 = vadd.f32 %v544, %v602
          %v604 = vpop.f32.mrf.mxu0
          %605 = vdwg.mxu0
          %v606 = vperm.slane %v363, 3
          %v607 = vmul.f32 %v603, %v606
          %v608 = vperm.slane %v363, 4
          %v609 = vadd.f32 %v607, %v608
          %610 = vst [vmem:[#allocation2] sm:$0xff] %v609
        $region60: #{drug_encoder_forward.5} parent=55 // pred_fallthru
          _
        %v611 = vld [vmem:[%s355] sm:$0xff]
        %v612 = vld [vmem:[#allocation2] sm:$0xff]
        %v613 = vpack.c.bf16 %v612, %v612
        %vm614 = vcmask 64512
        %v616 = vsel %vm614, %v357, 0
        %vm618 = vcmask 1043456
        %v620 = vsel %vm618, %v613, 0
        %622 = vmatpush.bf16.msra.mxu0 0
        %623 = vmatpush.bf16.msra.mxu0 0
        %624 = vmatpush.bf16.msra.mxu0 0
        %625 = vmatpush.bf16.msra.mxu0 0
        %626 = vmatpush.bf16.msra.mxu0 0
        %627 = vmatpush.bf16.msra.mxu0 0
        %628 = vmatpush.bf16.msra.mxu0 0
        %629 = vmatpush.bf16.msra.mxu0 %v620
        %630 = vmatmul.bf16.gmra.mxu0 %v616
        %v631 = vpop.f32.mrf.mxu0
        %v632 = vadd.f32 0.0, %v631
        %v633 = vpop.f32.mrf.mxu0
        %634 = vdwg.mxu0
        %636 = vset.pattern.permute.xlu0 0
        %637 = vperm.xlu0 %636, %v358
        %v638 = vpop.permute.xlu0 %637
        %v640 = vmul.f32 %v632, %v638
        %v641 = vadd.f32 %v612, %v640
        %v642 = vld [vmem:[%s346] sm:$0xf]
        %v643 = vld [vmem:[%s346 + $0x4] sm:$0xf]
        %v644 = vld [vmem:[%s346 + $0x8] sm:$0xf]
        %v645 = vld [vmem:[%s346 + $0xc] sm:$0xf]
        %v646 = vld [vmem:[%s346 + $0x10] sm:$0xf]
        %v647 = vld [vmem:[%s346 + $0x14] sm:$0xf]
        %v648 = vld [vmem:[%s346 + $0x18] sm:$0xf]
        %v649 = vld [vmem:[%s346 + $0x1c] sm:$0xf]
        %v650 = vld [vmem:[%s346 + $0x20] sm:$0xf]
        %v651 = vld [vmem:[%s346 + $0x24] sm:$0xf]
        %v652 = vld [vmem:[%s346 + $0x28] sm:$0xf]
        %v653 = vld [vmem:[%s346 + $0x2c] sm:$0xf]
        %v654 = vld [vmem:[%s346 + $0x30] sm:$0xf]
        %v655 = vld [vmem:[%s346 + $0x34] sm:$0xf]
        %v656 = vld [vmem:[%s346 + $0x38] sm:$0xf]
        %v657 = vld [vmem:[%s346 + $0x3c] sm:$0xf]
        %v658 = vld [vmem:[%s351] sm:$0xf]
        %v659 = vld [vmem:[%s351 + $0x4] sm:$0xf]
        %v660 = vld [vmem:[%s351 + $0x8] sm:$0xf]
        %v661 = vld [vmem:[%s351 + $0xc] sm:$0xf]
        %v662 = vld [vmem:[%s351 + $0x10] sm:$0xf]
        %v663 = vld [vmem:[%s351 + $0x14] sm:$0xf]
        %v664 = vld [vmem:[%s351 + $0x18] sm:$0xf]
        %v665 = vld [vmem:[%s351 + $0x1c] sm:$0xf]
        %v666 = vld [vmem:[%s351 + $0x20] sm:$0xf]
        %v667 = vld [vmem:[%s351 + $0x24] sm:$0xf]
        %v668 = vld [vmem:[%s351 + $0x28] sm:$0xf]
        %v669 = vld [vmem:[%s351 + $0x2c] sm:$0xf]
        %v670 = vld [vmem:[%s351 + $0x30] sm:$0xf]
        %v671 = vld [vmem:[%s351 + $0x34] sm:$0xf]
        %v672 = vld [vmem:[%s351 + $0x38] sm:$0xf]
        %v673 = vld [vmem:[%s351 + $0x3c] sm:$0xf]
        %v674 = vpack.c.bf16 %v641, %v641
        %v675 = vperm.slane %v611, 0
        %v692 = vunpack.c.l.b16 %v642
        %v693 = vunpack.c.l.b16 %v643
        %v694 = vunpack.c.l.b16 %v644
        %v695 = vunpack.c.l.b16 %v645
        %v696 = vunpack.c.l.b16 %v646
        %v697 = vunpack.c.l.b16 %v647
        %v698 = vunpack.c.l.b16 %v648
        %v699 = vunpack.c.l.b16 %v649
        %v700 = vunpack.c.l.b16 %v650
        %v701 = vunpack.c.l.b16 %v651
        %v702 = vunpack.c.l.b16 %v652
        %v703 = vunpack.c.l.b16 %v653
        %v704 = vunpack.c.l.b16 %v654
        %v705 = vunpack.c.l.b16 %v655
        %v706 = vunpack.c.l.b16 %v656
        %v707 = vunpack.c.l.b16 %v657
        %v708 = vpack.c.b16 %v693, %v692
        %v709 = vpack.c.b16 %v695, %v694
        %v710 = vpack.c.b16 %v697, %v696
        %v711 = vpack.c.b16 %v699, %v698
        %v712 = vpack.c.b16 %v701, %v700
        %v713 = vpack.c.b16 %v703, %v702
        %v714 = vpack.c.b16 %v705, %v704
        %v715 = vpack.c.b16 %v707, %v706
        %724 = vmatpush.bf16.msra.mxu0 %v715
        %725 = vmatpush.bf16.msra.mxu0 %v714
        %726 = vmatpush.bf16.msra.mxu0 %v713
        %727 = vmatpush.bf16.msra.mxu0 %v712
        %728 = vmatpush.bf16.msra.mxu0 %v711
        %729 = vmatpush.bf16.msra.mxu0 %v710
        %730 = vmatpush.bf16.msra.mxu0 %v709
        %731 = vmatpush.bf16.msra.mxu0 %v708
        %732 = vmatmul.bf16.gmra.mxu0 %v674
        %v733 = vpop.f32.mrf.mxu0
        %v734 = vadd.f32 %v675, %v733
        %v735 = vpop.f32.mrf.mxu0
        %736 = vdwg.mxu0
        %v737 = vperm.slane %v611, 1
        %v738 = vmul.f32 %v734, %v737
        %v739 = vperm.slane %v611, 2
        %v740 = vadd.f32 %v738, %v739
        %v741 = vmax.f32 %v740, 0.0
        %v742 = vpack.c.bf16 %v741, %v741
        %v743 = vperm.slane %v611, 3
        %v760 = vunpack.c.l.b16 %v658
        %v761 = vunpack.c.l.b16 %v659
        %v762 = vunpack.c.l.b16 %v660
        %v763 = vunpack.c.l.b16 %v661
        %v764 = vunpack.c.l.b16 %v662
        %v765 = vunpack.c.l.b16 %v663
        %v766 = vunpack.c.l.b16 %v664
        %v767 = vunpack.c.l.b16 %v665
        %v768 = vunpack.c.l.b16 %v666
        %v769 = vunpack.c.l.b16 %v667
        %v770 = vunpack.c.l.b16 %v668
        %v771 = vunpack.c.l.b16 %v669
        %v772 = vunpack.c.l.b16 %v670
        %v773 = vunpack.c.l.b16 %v671
        %v774 = vunpack.c.l.b16 %v672
        %v775 = vunpack.c.l.b16 %v673
        %v776 = vpack.c.b16 %v761, %v760
        %v777 = vpack.c.b16 %v763, %v762
        %v778 = vpack.c.b16 %v765, %v764
        %v779 = vpack.c.b16 %v767, %v766
        %v780 = vpack.c.b16 %v769, %v768
        %v781 = vpack.c.b16 %v771, %v770
        %v782 = vpack.c.b16 %v773, %v772
        %v783 = vpack.c.b16 %v775, %v774
        %792 = vmatpush.bf16.msra.mxu0 %v783
        %793 = vmatpush.bf16.msra.mxu0 %v782
        %794 = vmatpush.bf16.msra.mxu0 %v781
        %795 = vmatpush.bf16.msra.mxu0 %v780
        %796 = vmatpush.bf16.msra.mxu0 %v779
        %797 = vmatpush.bf16.msra.mxu0 %v778
        %798 = vmatpush.bf16.msra.mxu0 %v777
        %799 = vmatpush.bf16.msra.mxu0 %v776
        %800 = vmatmul.bf16.gmra.mxu0 %v742
        %v801 = vpop.f32.mrf.mxu0
        %v802 = vadd.f32 %v743, %v801
        %v803 = vpop.f32.mrf.mxu0
        %804 = vdwg.mxu0
        %vm805 = vcmp.gt.f32.partialorder %v802, 0.0
        %v806 = vmul.f32 %v802, 1.442695
        %v807 = vpow.pop %v806
        %v808 = vsub.f32 %v807, 1.0
        %v809 = vsel %vm805, %v802, %v808
        %810 = vst [vmem:[#allocation2] sm:$0xff] %v809
        // Predicated region
        $region61: #{drug_encoder_forward.5} parent=55 // pred_check
          %p811 = pneg %p238
        $region62: #{drug_encoder_forward.5} parent=55 // pred_check_branch
          %813 = sbr.rel (%p811) target = $region64
        $region63: #{drug_encoder_forward.5} parent=55 // pred_region
          %815 = vsyncadd [#allocation3], 0
          %s817 = sshll.u32 [#allocation2], 4
          %s818 = int_to_ptr.vmem [resolvable:$true] %s817
          %s819 = sshll.u32 %s9, 4
          %s820 = int_to_ptr.hbm [resolvable:$true] %s819
          %822 = dma.vmem_to_hbm [thread:$0]  %s818, 128, %s820, [#allocation3]
        $region64: #{drug_encoder_forward.5} parent=55 // pred_fallthru
          _
        // Predicated region
        $region65: #{drug_encoder_forward.5} parent=55 // pred_check
          %p823 = pneg %p238
        $region66: #{drug_encoder_forward.5} parent=55 // pred_check_branch
          %825 = sbr.rel (%p823) target = $region68
        $region67: #{drug_encoder_forward.5} parent=55 // pred_region
          %827 = dma.done [#allocation3], 128
        $region68: #{drug_encoder_forward.5} parent=55 // pred_fallthru
          _
      $region56: #{drug_encoder_forward.5} parent=5 // pred_fallthru
        _
      %p828 = scmp.le.s32.totalorder 2, %s16
      // Predicated region
      $region69: #{drug_encoder_forward.5} parent=5 // pred_check
        %p829 = pneg %p828
      $region70: #{drug_encoder_forward.5} parent=5 // pred_check_branch
        %831 = sbr.rel (%p829) target = $region72
      $region71: #{drug_encoder_forward.5} parent=5 // pred_region
        %s832 = ssub.s32 %s16, 2
      $region72: #{drug_encoder_forward.5} parent=5 // pred_fallthru
        _
    $region6: #{drug_encoder_forward.5} parent=1 // loop_footer
      %s20 = sadd.s32 1, %s16
    $region7: #{drug_encoder_forward.5} parent=1 // loop_footer_branch
      %15 = sbr.rel target = $region3
    $region8: #{drug_encoder_forward.5} parent=1 // loop_exit
      _
    %833 = vsyncpa [#allocation3], 1
    %s834 = scalar_lea.sflag [#allocation3], 1
    %835 = vsyncpa %s834, 1

</llo_original>
